<compile_context>
chip_gen: v7x
topology: tpu7x:2x2x1
jax: 0.10.0
libtpu: 0.0.40
codegen_flags: <defaults>
</compile_context>

<pallas_src>
import jax
import jax.numpy as jnp
from jax import lax
from jax.experimental import pallas as pl
from jax.experimental.pallas import tpu as pltpu


def _round_up(x, m):
    return ((x + m - 1) // m) * m


# ----------------------------- Pallas kernel ------------------------------ #

def program_encoder_kernel(
        emb_ref, len_ref,
        w_in0_ref, b_in0_ref,
        whh0_ref, bh0n_ref,
        w1ih_ref, w1hh_ref, b1_ref, whh1n_ref, bh1n_ref,
        wht_ref, whb_ref, bhead_ref,
        out_ref,
        gi0_ref):
    Bp = out_ref.shape[0]                 # padded batch (multiple of 8 sublanes)
    Hp = whh1n_ref.shape[0]               # padded hidden (multiple of 128 lanes)
    T = emb_ref.shape[0] // Bp

    def dot(a, b):
        return jnp.dot(a, b, preferred_element_type=jnp.float32)

    # ---- Phase 1: layer-0 input projection for ALL timesteps and ALL gates,
    # off the serial chain, as ONE (T*Bp, E) @ (E, 3*Hp) MXU call (+ one bias add).
    gi0_ref[...] = dot(emb_ref[...], w_in0_ref[...]) + b_in0_ref[...]

    # ---- Hoist tiny loop invariants (biases, broadcast lengths) into vregs once.
    # Large weight slabs stay as refs and are read inside the loop (keeps vreg
    # live ranges small across the unrolled recurrence).
    bh0n = bh0n_ref[...]                                  # (1, Hp)
    b1 = b1_ref[...]                                      # (1, 3Hp)
    bh1n = bh1n_ref[...]                                  # (1, Hp)
    lens_b = jnp.broadcast_to(len_ref[...], (Bp, Hp))     # (Bp, Hp) int32

    def step(t, carry):
        h0, h1 = carry
        m = lens_b > t                                    # packed-seq freeze mask
        row = pl.multiple_of(t * Bp, Bp)                  # sublane-aligned chunk

        # -------- layer 0: single fused hidden matmul for r/z/n gates.
        gi0 = gi0_ref[pl.ds(row, Bp), :]                  # (Bp, 3Hp), biases folded
        gh0 = dot(h0, whh0_ref[...])                      # (Bp, 3Hp)
        rz0 = jax.nn.sigmoid(gi0[:, :2 * Hp] + gh0[:, :2 * Hp])
        r0, z0 = rz0[:, :Hp], rz0[:, Hp:]
        n0 = jnp.tanh(gi0[:, 2 * Hp:] + r0 * (gh0[:, 2 * Hp:] + bh0n))
        h0 = jnp.where(m, (1.0 - z0) * n0 + z0 * h0, h0)

        # -------- layer 1: two accumulating fused matmuls (ih carries r/z/n,
        # hh carries r/z; the n-gate hh term must stay inside r1*(...)).
        g1 = dot(h0, w1ih_ref[...]) + dot(h1, w1hh_ref[...]) + b1   # (Bp, 3Hp)
        gh1n = dot(h1, whh1n_ref[...])                              # (Bp, Hp)
        rz1 = jax.nn.sigmoid(g1[:, :2 * Hp])
        r1, z1 = rz1[:, :Hp], rz1[:, Hp:]
        n1 = jnp.tanh(g1[:, 2 * Hp:] + r1 * (gh1n + bh1n))
        h1 = jnp.where(m, (1.0 - z1) * n1 + z1 * h1, h1)
        return (h0, h1)

    h0 = jnp.zeros((Bp, Hp), jnp.float32)
    h1 = jnp.zeros((Bp, Hp), jnp.float32)
    h0, h1 = lax.fori_loop(0, T, step, (h0, h1),
                           unroll=True if T <= 16 else 4)

    # Fused mu/logvar head: [h0|h1] @ [Wmu|Wlv] as two accumulating dots into one
    # lane-dense (Bp, 128) store (mu in lanes [0:Z], logvar in [Z:2Z]).
    out_ref[...] = dot(h0, wht_ref[...]) + dot(h1, whb_ref[...]) + bhead_ref[...]


# ------------------------------ Host wrapper ------------------------------ #

def program_encoder_forward(seq, length, params):
    """seq: (B, T) int32 token ids, length: (B,) int32 valid lengths."""
    emb_tbl = params["embedding"]                       # (V, E)
    B, T = seq.shape
    E = emb_tbl.shape[1]
    H = params["whh0"].shape[0]
    Z = params["wmu"].shape[1]

    Bp = _round_up(B, 8)            # sublane-aligned batch
    Hp = _round_up(H, 128)          # lane-aligned hidden
    Op = _round_up(2 * Z, 128)      # lane-aligned head output (mu | logvar)

    # Padded rows get length 0 -> frozen at h = 0 -> sliced off at the end.
    seq_p = jnp.pad(seq, ((0, Bp - B), (0, 0)))
    len_p = jnp.pad(length, (0, Bp - B)).astype(jnp.int32)[:, None]   # (Bp, 1)

    # Gather directly in time-major order (transpose the tiny (B,T) id matrix,
    # not the embedded activations) and flatten so the kernel never reshapes.
    # TODO(synk): move this gather in-kernel via scalar-prefetch for large T/V.
    emb2d = emb_tbl[seq_p.T].astype(jnp.float32).reshape(T * Bp, E)   # (T*Bp, E)

    def split3(w):                                      # (K, 3H) -> 3 x (K, H)
        return w[:, :H], w[:, H:2 * H], w[:, 2 * H:]

    wih0r, wih0z, wih0n = split3(params["wih0"])
    whh0r, whh0z, whh0n = split3(params["whh0"])
    bih0r, bih0z, bih0n = split3(params["bih0"])
    bhh0r, bhh0z, bhh0n = split3(params["bhh0"])
    wih1r, wih1z, wih1n = split3(params["wih1"])
    whh1r, whh1z, whh1n = split3(params["whh1"])
    bih1r, bih1z, bih1n = split3(params["bih1"])
    bhh1r, bhh1z, bhh1n = split3(params["bhh1"])

    f32 = jnp.float32

    def gate_slab(parts, rows):
        """Pack per-gate blocks into a zero-padded (rows, n_gates*Hp) slab so every
        gate block starts on a 128-lane boundary. None -> all-zero block."""
        slab = jnp.zeros((rows, len(parts) * Hp), f32)
        for g, p in enumerate(parts):
            if p is not None:
                r, c = p.shape
                slab = slab.at[:r, g * Hp:g * Hp + c].set(p.astype(f32))
        return slab

    # Layer-0 input-projection slab + folded r/z biases (bih+bhh); the n-gate
    # hh bias stays separate because PyTorch puts it inside r * (h@Whh_n + bhh_n).
    w_in0 = gate_slab([wih0r, wih0z, wih0n], E)                       # (E, 3Hp)
    b_in0 = gate_slab([bih0r + bhh0r, bih0z + bhh0z, bih0n], 1)       # (1, 3Hp)
    whh0 = gate_slab([whh0r, whh0z, whh0n], Hp)                       # (Hp, 3Hp)
    bh0n = gate_slab([bhh0n], 1)                                      # (1, Hp)

    # Layer-1 slabs: ih-path (input = h0) carries r/z/n; hh-path carries r/z only.
    w1ih = gate_slab([wih1r, wih1z, wih1n], Hp)                       # (Hp, 3Hp)
    w1hh = gate_slab([whh1r, whh1z, None], Hp)                        # (Hp, 3Hp)
    b1 = gate_slab([bih1r + bhh1r, bih1z + bhh1z, bih1n], 1)          # (1, 3Hp)
    whh1n_p = jnp.zeros((Hp, Hp), f32).at[:H, :H].set(whh1n.astype(f32))
    bh1n = gate_slab([bhh1n], 1)                                      # (1, Hp)

    # Fused mu/logvar head, split by which hidden-state half it consumes.
    wht = jnp.zeros((Hp, Op), f32)
    wht = wht.at[:H, :Z].set(params["wmu"][:H].astype(f32))
    wht = wht.at[:H, Z:2 * Z].set(params["wlv"][:H].astype(f32))
    whb = jnp.zeros((Hp, Op), f32)
    whb = whb.at[:H, :Z].set(params["wmu"][H:].astype(f32))
    whb = whb.at[:H, Z:2 * Z].set(params["wlv"][H:].astype(f32))
    bhead = jnp.zeros((1, Op), f32)
    bhead = bhead.at[:, :Z].set(params["bmu"].astype(f32))
    bhead = bhead.at[:, Z:2 * Z].set(params["blv"].astype(f32))

    inputs = (emb2d, len_p,
              w_in0, b_in0, whh0, bh0n,
              w1ih, w1hh, b1, whh1n_p, bh1n,
              wht, whb, bhead)

    vmem = pl.BlockSpec(memory_space=pltpu.MemorySpace.VMEM)

    # Explicit VMEM budget (default scoped limit is far below physical).
    nbytes = sum(int(x.size) * x.dtype.itemsize for x in inputs)
    nbytes += Bp * Op * 4                   # output
    nbytes += T * Bp * 3 * Hp * 4           # gi0 scratch
    vmem_limit = min(max(2 * nbytes + (4 << 20), 32 << 20), 100 << 20)

    out = pl.pallas_call(
        program_encoder_kernel,
        out_shape=jax.ShapeDtypeStruct((Bp, Op), jnp.float32),
        in_specs=[vmem] * len(inputs),
        out_specs=vmem,
        scratch_shapes=[pltpu.VMEM((T * Bp, 3 * Hp), jnp.float32)],
        compiler_params=pltpu.CompilerParams(vmem_limit_bytes=int(vmem_limit)),
    )(*inputs)

    out = out[:B]
    return out[:, :Z], out[:, Z:2 * Z]


# -------------------------- Pure-JAX reference ----------------------------- #

def reference_forward(seq, length, params):
    emb = params["embedding"][seq].astype(jnp.float32)  # (B, T, E)
    B, T, _ = emb.shape
    H = params["whh0"].shape[0]

    def cell(x, h, wih, whh, bih, bhh):
        gi = x @ wih + bih
        gh = h @ whh + bhh
        r = jax.nn.sigmoid(gi[:, :H] + gh[:, :H])
        z = jax.nn.sigmoid(gi[:, H:2 * H] + gh[:, H:2 * H])
        n = jnp.tanh(gi[:, 2 * H:] + r * gh[:, 2 * H:])
        return (1.0 - z) * n + z * h

    h0 = jnp.zeros((B, H), jnp.float32)
    h1 = jnp.zeros((B, H), jnp.float32)
    for t in range(T):
        m = (t < length).astype(jnp.float32)[:, None]
        x = emb[:, t, :]
        h0n = cell(x, h0, params["wih0"], params["whh0"],
                   params["bih0"], params["bhh0"])
        h0 = m * h0n + (1.0 - m) * h0
        h1n = cell(h0, h1, params["wih1"], params["whh1"],
                   params["bih1"], params["bhh1"])
        h1 = m * h1n + (1.0 - m) * h1
    hidden = jnp.concatenate([h0, h1], axis=1)
    return hidden @ params["wmu"] + params["bmu"], \
           hidden @ params["wlv"] + params["blv"]


# ------------------------------ Param init --------------------------------- #

def init_params(key, vocab_size, embedding_dim, hidden_dim, z_dim):
    ks = jax.random.split(key, 16)
    s = 0.1
    E, H, Z = embedding_dim, hidden_dim, z_dim
    p = {
        "embedding": jax.random.normal(ks[0], (vocab_size, E), jnp.float32),
        # GRU layer 0 (input E) -- stored transposed: x @ W with W (E, 3H)
        "wih0": s * jax.random.normal(ks[1], (E, 3 * H), jnp.float32),
        "whh0": s * jax.random.normal(ks[2], (H, 3 * H), jnp.float32),
        "bih0": s * jax.random.normal(ks[3], (1, 3 * H), jnp.float32),
        "bhh0": s * jax.random.normal(ks[4], (1, 3 * H), jnp.float32),
        # GRU layer 1 (input H)
        "wih1": s * jax.random.normal(ks[5], (H, 3 * H), jnp.float32),
        "whh1": s * jax.random.normal(ks[6], (H, 3 * H), jnp.float32),
        "bih1": s * jax.random.normal(ks[7], (1, 3 * H), jnp.float32),
        "bhh1": s * jax.random.normal(ks[8], (1, 3 * H), jnp.float32),
        # h2mu / h2logvar: Linear(2H -> Z), stored transposed
        "wmu": s * jax.random.normal(ks[9], (2 * H, Z), jnp.float32),
        "bmu": s * jax.random.normal(ks[10], (1, Z), jnp.float32),
        "wlv": s * jax.random.normal(ks[11], (2 * H, Z), jnp.float32),
        "blv": s * jax.random.normal(ks[12], (1, Z), jnp.float32),
    }
    return p


# --------------------------------- Main ------------------------------------ #

if __name__ == "__main__":
    key = jax.random.PRNGKey(0)
    k_params, k_seq = jax.random.split(key)

    vocab_size = 20
    embedding_dim = 32
    hidden_dim = 32
    z_dim = 16
    batch = 2
    seq_len = 8

    params = init_params(k_params, vocab_size, embedding_dim, hidden_dim, z_dim)

    seq = jax.random.randint(k_seq, (batch, seq_len), 0, vocab_size,
                             dtype=jnp.int32)
    length = jnp.array([seq_len, 5], dtype=jnp.int32)   # variable lengths

    z_mu, z_logvar = program_encoder_forward(seq, length, params)
    jax.block_until_ready((z_mu, z_logvar))

    ref_mu, ref_lv = reference_forward(seq, length, params)
    assert z_mu.shape == ref_mu.shape and z_logvar.shape == ref_lv.shape
    assert jnp.allclose(z_mu, ref_mu, atol=1e-4, rtol=1e-4), "z_mu mismatch"
    assert jnp.allclose(z_logvar, ref_lv, atol=1e-4, rtol=1e-4), "z_logvar mismatch"

    print("KERNEL_OK")
</pallas_src>

<mosaic_0001>
module attributes {stable_mosaic.version = 11 : i64} {
  func.func @program_encoder_kernel(%arg0: memref<64x32xf32, #tpu.memory_space<vmem>>, %arg1: memref<8x1xi32, #tpu.memory_space<vmem>>, %arg2: memref<32x384xf32, #tpu.memory_space<vmem>>, %arg3: memref<1x384xf32, #tpu.memory_space<vmem>>, %arg4: memref<128x384xf32, #tpu.memory_space<vmem>>, %arg5: memref<1x128xf32, #tpu.memory_space<vmem>>, %arg6: memref<128x384xf32, #tpu.memory_space<vmem>>, %arg7: memref<128x384xf32, #tpu.memory_space<vmem>>, %arg8: memref<1x384xf32, #tpu.memory_space<vmem>>, %arg9: memref<128x128xf32, #tpu.memory_space<vmem>>, %arg10: memref<1x128xf32, #tpu.memory_space<vmem>>, %arg11: memref<128x128xf32, #tpu.memory_space<vmem>>, %arg12: memref<128x128xf32, #tpu.memory_space<vmem>>, %arg13: memref<1x128xf32, #tpu.memory_space<vmem>>, %arg14: memref<8x128xf32, #tpu.memory_space<vmem>>, %arg15: memref<64x384xf32, #tpu.memory_space<vmem>>) attributes {dimension_semantics = [], scalar_prefetch = 0 : i64, scratch_operands = 1 : i64, tpu.core_type = #tpu.core_type<tc>} {
    %c0 = arith.constant 0 : index
    %c0_0 = arith.constant 0 : index
    %0 = vector.load %arg0[%c0, %c0_0] : memref<64x32xf32, #tpu.memory_space<vmem>>, vector<64x32xf32>
    %c0_1 = arith.constant 0 : index
    %c0_2 = arith.constant 0 : index
    %1 = vector.load %arg2[%c0_1, %c0_2] : memref<32x384xf32, #tpu.memory_space<vmem>>, vector<32x384xf32>
    %cst = arith.constant dense<0.000000e+00> : vector<64x384xf32>
    %2 = tpu.matmul %0, %1, %cst {dimension_numbers = #tpu.dot_dimension_numbers<[1], [0], [0], [1], [0, 0, 1, 1], [], []>} : vector<64x32xf32>, vector<32x384xf32>, vector<64x384xf32> -> vector<64x384xf32>
    %c0_3 = arith.constant 0 : index
    %c0_4 = arith.constant 0 : index
    %3 = vector.load %arg3[%c0_3, %c0_4] : memref<1x384xf32, #tpu.memory_space<vmem>>, vector<1x384xf32>
    %4 = vector.broadcast %3 : vector<1x384xf32> to vector<64x384xf32>
    %5 = arith.addf %2, %4 : vector<64x384xf32>
    %c0_5 = arith.constant 0 : index
    %c0_6 = arith.constant 0 : index
    %6 = vector.load %arg15[%c0_5, %c0_6] : memref<64x384xf32, #tpu.memory_space<vmem>>, vector<64x384xf32>
    tpu.vector_store %arg15[%c0_5, %c0_6], %5 {strides = array<i32>} : memref<64x384xf32, #tpu.memory_space<vmem>>, vector<64x384xf32>,
    %c0_7 = arith.constant 0 : index
    %c0_8 = arith.constant 0 : index
    %7 = vector.load %arg5[%c0_7, %c0_8] : memref<1x128xf32, #tpu.memory_space<vmem>>, vector<1x128xf32>
    %c0_9 = arith.constant 0 : index
    %c0_10 = arith.constant 0 : index
    %8 = vector.load %arg8[%c0_9, %c0_10] : memref<1x384xf32, #tpu.memory_space<vmem>>, vector<1x384xf32>
    %c0_11 = arith.constant 0 : index
    %c0_12 = arith.constant 0 : index
    %9 = vector.load %arg10[%c0_11, %c0_12] : memref<1x128xf32, #tpu.memory_space<vmem>>, vector<1x128xf32>
    %c0_13 = arith.constant 0 : index
    %c0_14 = arith.constant 0 : index
    %10 = vector.load %arg1[%c0_13, %c0_14] : memref<8x1xi32, #tpu.memory_space<vmem>>, vector<8x1xi32>
    %11 = vector.shape_cast %10 : vector<8x1xi32> to vector<8x1xi32>
    %12 = vector.broadcast %11 : vector<8x1xi32> to vector<8x128xi32>
    %cst_15 = arith.constant 0.000000e+00 : f32
    %13 = vector.broadcast %cst_15 : f32 to vector<8x128xf32>
    %cst_16 = arith.constant 0.000000e+00 : f32
    %14 = vector.broadcast %cst_16 : f32 to vector<8x128xf32>
    %c0_i32 = arith.constant 0 : i32
    %15 = vector.broadcast %c0_i32 : i32 to vector<8x128xi32>
    %16 = arith.cmpi sgt, %12, %15 : vector<8x128xi32>
    %c8_i32 = arith.constant 8 : i32
    %17 = arith.muli %c0_i32, %c8_i32 : i32
    %18 = tpu.assume_multiple %17, 8 : i32
    %19 = arith.index_cast %18 : i32 to index
    %c0_17 = arith.constant 0 : index
    %20 = vector.load %arg15[%19, %c0_17] : memref<64x384xf32, #tpu.memory_space<vmem>>, vector<8x384xf32>
    %c0_18 = arith.constant 0 : index
    %c0_19 = arith.constant 0 : index
    %21 = vector.load %arg4[%c0_18, %c0_19] : memref<128x384xf32, #tpu.memory_space<vmem>>, vector<128x384xf32>
    %cst_20 = arith.constant dense<0.000000e+00> : vector<8x384xf32>
    %22 = tpu.matmul %13, %21, %cst_20 {dimension_numbers = #tpu.dot_dimension_numbers<[1], [0], [0], [1], [0, 0, 1, 1], [], []>} : vector<8x128xf32>, vector<128x384xf32>, vector<8x384xf32> -> vector<8x384xf32>
    %23 = vector.extract_strided_slice %20 {offsets = [0, 0], sizes = [8, 256], strides = [1, 1]} : vector<8x384xf32> to vector<8x256xf32>
    %24 = vector.extract_strided_slice %22 {offsets = [0, 0], sizes = [8, 256], strides = [1, 1]} : vector<8x384xf32> to vector<8x256xf32>
    %25 = arith.addf %23, %24 : vector<8x256xf32>
    %26 = arith.negf %25 : vector<8x256xf32>
    %27 = math.exp %26 : vector<8x256xf32>
    %cst_21 = arith.constant 1.000000e+00 : f32
    %28 = vector.broadcast %cst_21 : f32 to vector<8x256xf32>
    %29 = arith.addf %28, %27 : vector<8x256xf32>
    %30 = arith.divf %28, %29 : vector<8x256xf32>
    %31 = vector.extract_strided_slice %30 {offsets = [0, 0], sizes = [8, 128], strides = [1, 1]} : vector<8x256xf32> to vector<8x128xf32>
    %32 = vector.extract_strided_slice %30 {offsets = [0, 128], sizes = [8, 128], strides = [1, 1]} : vector<8x256xf32> to vector<8x128xf32>
    %33 = vector.extract_strided_slice %20 {offsets = [0, 256], sizes = [8, 128], strides = [1, 1]} : vector<8x384xf32> to vector<8x128xf32>
    %34 = vector.extract_strided_slice %22 {offsets = [0, 256], sizes = [8, 128], strides = [1, 1]} : vector<8x384xf32> to vector<8x128xf32>
    %35 = vector.broadcast %7 : vector<1x128xf32> to vector<8x128xf32>
    %36 = arith.addf %34, %35 : vector<8x128xf32>
    %37 = arith.mulf %31, %36 : vector<8x128xf32>
    %38 = arith.addf %33, %37 : vector<8x128xf32>
    %39 = math.tanh %38 : vector<8x128xf32>
    %cst_22 = arith.constant 1.000000e+00 : f32
    %40 = vector.broadcast %cst_22 : f32 to vector<8x128xf32>
    %41 = arith.subf %40, %32 : vector<8x128xf32>
    %42 = arith.mulf %41, %39 : vector<8x128xf32>
    %43 = arith.mulf %32, %13 : vector<8x128xf32>
    %44 = arith.addf %42, %43 : vector<8x128xf32>
    %45 = arith.select %16, %44, %13 : vector<8x128xi1>, vector<8x128xf32>
    %c0_23 = arith.constant 0 : index
    %c0_24 = arith.constant 0 : index
    %46 = vector.load %arg6[%c0_23, %c0_24] : memref<128x384xf32, #tpu.memory_space<vmem>>, vector<128x384xf32>
    %cst_25 = arith.constant dense<0.000000e+00> : vector<8x384xf32>
    %47 = tpu.matmul %45, %46, %cst_25 {dimension_numbers = #tpu.dot_dimension_numbers<[1], [0], [0], [1], [0, 0, 1, 1], [], []>} : vector<8x128xf32>, vector<128x384xf32>, vector<8x384xf32> -> vector<8x384xf32>
    %c0_26 = arith.constant 0 : index
    %c0_27 = arith.constant 0 : index
    %48 = vector.load %arg7[%c0_26, %c0_27] : memref<128x384xf32, #tpu.memory_space<vmem>>, vector<128x384xf32>
    %cst_28 = arith.constant dense<0.000000e+00> : vector<8x384xf32>
    %49 = tpu.matmul %14, %48, %cst_28 {dimension_numbers = #tpu.dot_dimension_numbers<[1], [0], [0], [1], [0, 0, 1, 1], [], []>} : vector<8x128xf32>, vector<128x384xf32>, vector<8x384xf32> -> vector<8x384xf32>
    %50 = arith.addf %47, %49 : vector<8x384xf32>
    %51 = vector.broadcast %8 : vector<1x384xf32> to vector<8x384xf32>
    %52 = arith.addf %50, %51 : vector<8x384xf32>
    %c0_29 = arith.constant 0 : index
    %c0_30 = arith.constant 0 : index
    %53 = vector.load %arg9[%c0_29, %c0_30] : memref<128x128xf32, #tpu.memory_space<vmem>>, vector<128x128xf32>
    %cst_31 = arith.constant dense<0.000000e+00> : vector<8x128xf32>
    %54 = tpu.matmul %14, %53, %cst_31 {dimension_numbers = #tpu.dot_dimension_numbers<[1], [0], [0], [1], [0, 0, 1, 1], [], []>} : vector<8x128xf32>, vector<128x128xf32>, vector<8x128xf32> -> vector<8x128xf32>
    %55 = vector.extract_strided_slice %52 {offsets = [0, 0], sizes = [8, 256], strides = [1, 1]} : vector<8x384xf32> to vector<8x256xf32>
    %56 = arith.negf %55 : vector<8x256xf32>
    %57 = math.exp %56 : vector<8x256xf32>
    %cst_32 = arith.constant 1.000000e+00 : f32
    %58 = vector.broadcast %cst_32 : f32 to vector<8x256xf32>
    %59 = arith.addf %58, %57 : vector<8x256xf32>
    %60 = arith.divf %58, %59 : vector<8x256xf32>
    %61 = vector.extract_strided_slice %60 {offsets = [0, 0], sizes = [8, 128], strides = [1, 1]} : vector<8x256xf32> to vector<8x128xf32>
    %62 = vector.extract_strided_slice %60 {offsets = [0, 128], sizes = [8, 128], strides = [1, 1]} : vector<8x256xf32> to vector<8x128xf32>
    %63 = vector.extract_strided_slice %52 {offsets = [0, 256], sizes = [8, 128], strides = [1, 1]} : vector<8x384xf32> to vector<8x128xf32>
    %64 = vector.broadcast %9 : vector<1x128xf32> to vector<8x128xf32>
    %65 = arith.addf %54, %64 : vector<8x128xf32>
    %66 = arith.mulf %61, %65 : vector<8x128xf32>
    %67 = arith.addf %63, %66 : vector<8x128xf32>
    %68 = math.tanh %67 : vector<8x128xf32>
    %cst_33 = arith.constant 1.000000e+00 : f32
    %69 = vector.broadcast %cst_33 : f32 to vector<8x128xf32>
    %70 = arith.subf %69, %62 : vector<8x128xf32>
    %71 = arith.mulf %70, %68 : vector<8x128xf32>
    %72 = arith.mulf %62, %14 : vector<8x128xf32>
    %73 = arith.addf %71, %72 : vector<8x128xf32>
    %74 = arith.select %16, %73, %14 : vector<8x128xi1>, vector<8x128xf32>
    %c1_i32 = arith.constant 1 : i32
    %75 = vector.broadcast %c1_i32 : i32 to vector<8x128xi32>
    %76 = arith.cmpi sgt, %12, %75 : vector<8x128xi32>
    %c8_i32_34 = arith.constant 8 : i32
    %77 = arith.muli %c1_i32, %c8_i32_34 : i32
    %78 = tpu.assume_multiple %77, 8 : i32
    %79 = arith.index_cast %78 : i32 to index
    %c0_35 = arith.constant 0 : index
    %80 = vector.load %arg15[%79, %c0_35] : memref<64x384xf32, #tpu.memory_space<vmem>>, vector<8x384xf32>
    %c0_36 = arith.constant 0 : index
    %c0_37 = arith.constant 0 : index
    %81 = vector.load %arg4[%c0_36, %c0_37] : memref<128x384xf32, #tpu.memory_space<vmem>>, vector<128x384xf32>
    %cst_38 = arith.constant dense<0.000000e+00> : vector<8x384xf32>
    %82 = tpu.matmul %45, %81, %cst_38 {dimension_numbers = #tpu.dot_dimension_numbers<[1], [0], [0], [1], [0, 0, 1, 1], [], []>} : vector<8x128xf32>, vector<128x384xf32>, vector<8x384xf32> -> vector<8x384xf32>
    %83 = vector.extract_strided_slice %80 {offsets = [0, 0], sizes = [8, 256], strides = [1, 1]} : vector<8x384xf32> to vector<8x256xf32>
    %84 = vector.extract_strided_slice %82 {offsets = [0, 0], sizes = [8, 256], strides = [1, 1]} : vector<8x384xf32> to vector<8x256xf32>
    %85 = arith.addf %83, %84 : vector<8x256xf32>
    %86 = arith.negf %85 : vector<8x256xf32>
    %87 = math.exp %86 : vector<8x256xf32>
    %cst_39 = arith.constant 1.000000e+00 : f32
    %88 = vector.broadcast %cst_39 : f32 to vector<8x256xf32>
    %89 = arith.addf %88, %87 : vector<8x256xf32>
    %90 = arith.divf %88, %89 : vector<8x256xf32>
    %91 = vector.extract_strided_slice %90 {offsets = [0, 0], sizes = [8, 128], strides = [1, 1]} : vector<8x256xf32> to vector<8x128xf32>
    %92 = vector.extract_strided_slice %90 {offsets = [0, 128], sizes = [8, 128], strides = [1, 1]} : vector<8x256xf32> to vector<8x128xf32>
    %93 = vector.extract_strided_slice %80 {offsets = [0, 256], sizes = [8, 128], strides = [1, 1]} : vector<8x384xf32> to vector<8x128xf32>
    %94 = vector.extract_strided_slice %82 {offsets = [0, 256], sizes = [8, 128], strides = [1, 1]} : vector<8x384xf32> to vector<8x128xf32>
    %95 = vector.broadcast %7 : vector<1x128xf32> to vector<8x128xf32>
    %96 = arith.addf %94, %95 : vector<8x128xf32>
    %97 = arith.mulf %91, %96 : vector<8x128xf32>
    %98 = arith.addf %93, %97 : vector<8x128xf32>
    %99 = math.tanh %98 : vector<8x128xf32>
    %cst_40 = arith.constant 1.000000e+00 : f32
    %100 = vector.broadcast %cst_40 : f32 to vector<8x128xf32>
    %101 = arith.subf %100, %92 : vector<8x128xf32>
    %102 = arith.mulf %101, %99 : vector<8x128xf32>
    %103 = arith.mulf %92, %45 : vector<8x128xf32>
    %104 = arith.addf %102, %103 : vector<8x128xf32>
    %105 = arith.select %76, %104, %45 : vector<8x128xi1>, vector<8x128xf32>
    %c0_41 = arith.constant 0 : index
    %c0_42 = arith.constant 0 : index
    %106 = vector.load %arg6[%c0_41, %c0_42] : memref<128x384xf32, #tpu.memory_space<vmem>>, vector<128x384xf32>
    %cst_43 = arith.constant dense<0.000000e+00> : vector<8x384xf32>
    %107 = tpu.matmul %105, %106, %cst_43 {dimension_numbers = #tpu.dot_dimension_numbers<[1], [0], [0], [1], [0, 0, 1, 1], [], []>} : vector<8x128xf32>, vector<128x384xf32>, vector<8x384xf32> -> vector<8x384xf32>
    %c0_44 = arith.constant 0 : index
    %c0_45 = arith.constant 0 : index
    %108 = vector.load %arg7[%c0_44, %c0_45] : memref<128x384xf32, #tpu.memory_space<vmem>>, vector<128x384xf32>
    %cst_46 = arith.constant dense<0.000000e+00> : vector<8x384xf32>
    %109 = tpu.matmul %74, %108, %cst_46 {dimension_numbers = #tpu.dot_dimension_numbers<[1], [0], [0], [1], [0, 0, 1, 1], [], []>} : vector<8x128xf32>, vector<128x384xf32>, vector<8x384xf32> -> vector<8x384xf32>
    %110 = arith.addf %107, %109 : vector<8x384xf32>
    %111 = vector.broadcast %8 : vector<1x384xf32> to vector<8x384xf32>
    %112 = arith.addf %110, %111 : vector<8x384xf32>
    %c0_47 = arith.constant 0 : index
    %c0_48 = arith.constant 0 : index
    %113 = vector.load %arg9[%c0_47, %c0_48] : memref<128x128xf32, #tpu.memory_space<vmem>>, vector<128x128xf32>
    %cst_49 = arith.constant dense<0.000000e+00> : vector<8x128xf32>
    %114 = tpu.matmul %74, %113, %cst_49 {dimension_numbers = #tpu.dot_dimension_numbers<[1], [0], [0], [1], [0, 0, 1, 1], [], []>} : vector<8x128xf32>, vector<128x128xf32>, vector<8x128xf32> -> vector<8x128xf32>
    %115 = vector.extract_strided_slice %112 {offsets = [0, 0], sizes = [8, 256], strides = [1, 1]} : vector<8x384xf32> to vector<8x256xf32>
    %116 = arith.negf %115 : vector<8x256xf32>
    %117 = math.exp %116 : vector<8x256xf32>
    %cst_50 = arith.constant 1.000000e+00 : f32
    %118 = vector.broadcast %cst_50 : f32 to vector<8x256xf32>
    %119 = arith.addf %118, %117 : vector<8x256xf32>
    %120 = arith.divf %118, %119 : vector<8x256xf32>
    %121 = vector.extract_strided_slice %120 {offsets = [0, 0], sizes = [8, 128], strides = [1, 1]} : vector<8x256xf32> to vector<8x128xf32>
    %122 = vector.extract_strided_slice %120 {offsets = [0, 128], sizes = [8, 128], strides = [1, 1]} : vector<8x256xf32> to vector<8x128xf32>
    %123 = vector.extract_strided_slice %112 {offsets = [0, 256], sizes = [8, 128], strides = [1, 1]} : vector<8x384xf32> to vector<8x128xf32>
    %124 = vector.broadcast %9 : vector<1x128xf32> to vector<8x128xf32>
    %125 = arith.addf %114, %124 : vector<8x128xf32>
    %126 = arith.mulf %121, %125 : vector<8x128xf32>
    %127 = arith.addf %123, %126 : vector<8x128xf32>
    %128 = math.tanh %127 : vector<8x128xf32>
    %cst_51 = arith.constant 1.000000e+00 : f32
    %129 = vector.broadcast %cst_51 : f32 to vector<8x128xf32>
    %130 = arith.subf %129, %122 : vector<8x128xf32>
    %131 = arith.mulf %130, %128 : vector<8x128xf32>
    %132 = arith.mulf %122, %74 : vector<8x128xf32>
    %133 = arith.addf %131, %132 : vector<8x128xf32>
    %134 = arith.select %76, %133, %74 : vector<8x128xi1>, vector<8x128xf32>
    %c2_i32 = arith.constant 2 : i32
    %135 = vector.broadcast %c2_i32 : i32 to vector<8x128xi32>
    %136 = arith.cmpi sgt, %12, %135 : vector<8x128xi32>
    %c8_i32_52 = arith.constant 8 : i32
    %137 = arith.muli %c2_i32, %c8_i32_52 : i32
    %138 = tpu.assume_multiple %137, 8 : i32
    %139 = arith.index_cast %138 : i32 to index
    %c0_53 = arith.constant 0 : index
    %140 = vector.load %arg15[%139, %c0_53] : memref<64x384xf32, #tpu.memory_space<vmem>>, vector<8x384xf32>
    %c0_54 = arith.constant 0 : index
    %c0_55 = arith.constant 0 : index
    %141 = vector.load %arg4[%c0_54, %c0_55] : memref<128x384xf32, #tpu.memory_space<vmem>>, vector<128x384xf32>
    %cst_56 = arith.constant dense<0.000000e+00> : vector<8x384xf32>
    %142 = tpu.matmul %105, %141, %cst_56 {dimension_numbers = #tpu.dot_dimension_numbers<[1], [0], [0], [1], [0, 0, 1, 1], [], []>} : vector<8x128xf32>, vector<128x384xf32>, vector<8x384xf32> -> vector<8x384xf32>
    %143 = vector.extract_strided_slice %140 {offsets = [0, 0], sizes = [8, 256], strides = [1, 1]} : vector<8x384xf32> to vector<8x256xf32>
    %144 = vector.extract_strided_slice %142 {offsets = [0, 0], sizes = [8, 256], strides = [1, 1]} : vector<8x384xf32> to vector<8x256xf32>
    %145 = arith.addf %143, %144 : vector<8x256xf32>
    %146 = arith.negf %145 : vector<8x256xf32>
    %147 = math.exp %146 : vector<8x256xf32>
    %cst_57 = arith.constant 1.000000e+00 : f32
    %148 = vector.broadcast %cst_57 : f32 to vector<8x256xf32>
    %149 = arith.addf %148, %147 : vector<8x256xf32>
    %150 = arith.divf %148, %149 : vector<8x256xf32>
    %151 = vector.extract_strided_slice %150 {offsets = [0, 0], sizes = [8, 128], strides = [1, 1]} : vector<8x256xf32> to vector<8x128xf32>
    %152 = vector.extract_strided_slice %150 {offsets = [0, 128], sizes = [8, 128], strides = [1, 1]} : vector<8x256xf32> to vector<8x128xf32>
    %153 = vector.extract_strided_slice %140 {offsets = [0, 256], sizes = [8, 128], strides = [1, 1]} : vector<8x384xf32> to vector<8x128xf32>
    %154 = vector.extract_strided_slice %142 {offsets = [0, 256], sizes = [8, 128], strides = [1, 1]} : vector<8x384xf32> to vector<8x128xf32>
    %155 = vector.broadcast %7 : vector<1x128xf32> to vector<8x128xf32>
    %156 = arith.addf %154, %155 : vector<8x128xf32>
    %157 = arith.mulf %151, %156 : vector<8x128xf32>
    %158 = arith.addf %153, %157 : vector<8x128xf32>
    %159 = math.tanh %158 : vector<8x128xf32>
    %cst_58 = arith.constant 1.000000e+00 : f32
    %160 = vector.broadcast %cst_58 : f32 to vector<8x128xf32>
    %161 = arith.subf %160, %152 : vector<8x128xf32>
    %162 = arith.mulf %161, %159 : vector<8x128xf32>
    %163 = arith.mulf %152, %105 : vector<8x128xf32>
    %164 = arith.addf %162, %163 : vector<8x128xf32>
    %165 = arith.select %136, %164, %105 : vector<8x128xi1>, vector<8x128xf32>
    %c0_59 = arith.constant 0 : index
    %c0_60 = arith.constant 0 : index
    %166 = vector.load %arg6[%c0_59, %c0_60] : memref<128x384xf32, #tpu.memory_space<vmem>>, vector<128x384xf32>
    %cst_61 = arith.constant dense<0.000000e+00> : vector<8x384xf32>
    %167 = tpu.matmul %165, %166, %cst_61 {dimension_numbers = #tpu.dot_dimension_numbers<[1], [0], [0], [1], [0, 0, 1, 1], [], []>} : vector<8x128xf32>, vector<128x384xf32>, vector<8x384xf32> -> vector<8x384xf32>
    %c0_62 = arith.constant 0 : index
    %c0_63 = arith.constant 0 : index
    %168 = vector.load %arg7[%c0_62, %c0_63] : memref<128x384xf32, #tpu.memory_space<vmem>>, vector<128x384xf32>
    %cst_64 = arith.constant dense<0.000000e+00> : vector<8x384xf32>
    %169 = tpu.matmul %134, %168, %cst_64 {dimension_numbers = #tpu.dot_dimension_numbers<[1], [0], [0], [1], [0, 0, 1, 1], [], []>} : vector<8x128xf32>, vector<128x384xf32>, vector<8x384xf32> -> vector<8x384xf32>
    %170 = arith.addf %167, %169 : vector<8x384xf32>
    %171 = vector.broadcast %8 : vector<1x384xf32> to vector<8x384xf32>
    %172 = arith.addf %170, %171 : vector<8x384xf32>
    %c0_65 = arith.constant 0 : index
    %c0_66 = arith.constant 0 : index
    %173 = vector.load %arg9[%c0_65, %c0_66] : memref<128x128xf32, #tpu.memory_space<vmem>>, vector<128x128xf32>
    %cst_67 = arith.constant dense<0.000000e+00> : vector<8x128xf32>
    %174 = tpu.matmul %134, %173, %cst_67 {dimension_numbers = #tpu.dot_dimension_numbers<[1], [0], [0], [1], [0, 0, 1, 1], [], []>} : vector<8x128xf32>, vector<128x128xf32>, vector<8x128xf32> -> vector<8x128xf32>
    %175 = vector.extract_strided_slice %172 {offsets = [0, 0], sizes = [8, 256], strides = [1, 1]} : vector<8x384xf32> to vector<8x256xf32>
    %176 = arith.negf %175 : vector<8x256xf32>
    %177 = math.exp %176 : vector<8x256xf32>
    %cst_68 = arith.constant 1.000000e+00 : f32
    %178 = vector.broadcast %cst_68 : f32 to vector<8x256xf32>
    %179 = arith.addf %178, %177 : vector<8x256xf32>
    %180 = arith.divf %178, %179 : vector<8x256xf32>
    %181 = vector.extract_strided_slice %180 {offsets = [0, 0], sizes = [8, 128], strides = [1, 1]} : vector<8x256xf32> to vector<8x128xf32>
    %182 = vector.extract_strided_slice %180 {offsets = [0, 128], sizes = [8, 128], strides = [1, 1]} : vector<8x256xf32> to vector<8x128xf32>
    %183 = vector.extract_strided_slice %172 {offsets = [0, 256], sizes = [8, 128], strides = [1, 1]} : vector<8x384xf32> to vector<8x128xf32>
    %184 = vector.broadcast %9 : vector<1x128xf32> to vector<8x128xf32>
    %185 = arith.addf %174, %184 : vector<8x128xf32>
    %186 = arith.mulf %181, %185 : vector<8x128xf32>
    %187 = arith.addf %183, %186 : vector<8x128xf32>
    %188 = math.tanh %187 : vector<8x128xf32>
    %cst_69 = arith.constant 1.000000e+00 : f32
    %189 = vector.broadcast %cst_69 : f32 to vector<8x128xf32>
    %190 = arith.subf %189, %182 : vector<8x128xf32>
    %191 = arith.mulf %190, %188 : vector<8x128xf32>
    %192 = arith.mulf %182, %134 : vector<8x128xf32>
    %193 = arith.addf %191, %192 : vector<8x128xf32>
    %194 = arith.select %136, %193, %134 : vector<8x128xi1>, vector<8x128xf32>
    %c3_i32 = arith.constant 3 : i32
    %195 = vector.broadcast %c3_i32 : i32 to vector<8x128xi32>
    %196 = arith.cmpi sgt, %12, %195 : vector<8x128xi32>
    %c8_i32_70 = arith.constant 8 : i32
    %197 = arith.muli %c3_i32, %c8_i32_70 : i32
    %198 = tpu.assume_multiple %197, 8 : i32
    %199 = arith.index_cast %198 : i32 to index
    %c0_71 = arith.constant 0 : index
    %200 = vector.load %arg15[%199, %c0_71] : memref<64x384xf32, #tpu.memory_space<vmem>>, vector<8x384xf32>
    %c0_72 = arith.constant 0 : index
    %c0_73 = arith.constant 0 : index
    %201 = vector.load %arg4[%c0_72, %c0_73] : memref<128x384xf32, #tpu.memory_space<vmem>>, vector<128x384xf32>
    %cst_74 = arith.constant dense<0.000000e+00> : vector<8x384xf32>
    %202 = tpu.matmul %165, %201, %cst_74 {dimension_numbers = #tpu.dot_dimension_numbers<[1], [0], [0], [1], [0, 0, 1, 1], [], []>} : vector<8x128xf32>, vector<128x384xf32>, vector<8x384xf32> -> vector<8x384xf32>
    %203 = vector.extract_strided_slice %200 {offsets = [0, 0], sizes = [8, 256], strides = [1, 1]} : vector<8x384xf32> to vector<8x256xf32>
    %204 = vector.extract_strided_slice %202 {offsets = [0, 0], sizes = [8, 256], strides = [1, 1]} : vector<8x384xf32> to vector<8x256xf32>
    %205 = arith.addf %203, %204 : vector<8x256xf32>
    %206 = arith.negf %205 : vector<8x256xf32>
    %207 = math.exp %206 : vector<8x256xf32>
    %cst_75 = arith.constant 1.000000e+00 : f32
    %208 = vector.broadcast %cst_75 : f32 to vector<8x256xf32>
    %209 = arith.addf %208, %207 : vector<8x256xf32>
    %210 = arith.divf %208, %209 : vector<8x256xf32>
    %211 = vector.extract_strided_slice %210 {offsets = [0, 0], sizes = [8, 128], strides = [1, 1]} : vector<8x256xf32> to vector<8x128xf32>
    %212 = vector.extract_strided_slice %210 {offsets = [0, 128], sizes = [8, 128], strides = [1, 1]} : vector<8x256xf32> to vector<8x128xf32>
    %213 = vector.extract_strided_slice %200 {offsets = [0, 256], sizes = [8, 128], strides = [1, 1]} : vector<8x384xf32> to vector<8x128xf32>
    %214 = vector.extract_strided_slice %202 {offsets = [0, 256], sizes = [8, 128], strides = [1, 1]} : vector<8x384xf32> to vector<8x128xf32>
    %215 = vector.broadcast %7 : vector<1x128xf32> to vector<8x128xf32>
    %216 = arith.addf %214, %215 : vector<8x128xf32>
    %217 = arith.mulf %211, %216 : vector<8x128xf32>
    %218 = arith.addf %213, %217 : vector<8x128xf32>
    %219 = math.tanh %218 : vector<8x128xf32>
    %cst_76 = arith.constant 1.000000e+00 : f32
    %220 = vector.broadcast %cst_76 : f32 to vector<8x128xf32>
    %221 = arith.subf %220, %212 : vector<8x128xf32>
    %222 = arith.mulf %221, %219 : vector<8x128xf32>
    %223 = arith.mulf %212, %165 : vector<8x128xf32>
    %224 = arith.addf %222, %223 : vector<8x128xf32>
    %225 = arith.select %196, %224, %165 : vector<8x128xi1>, vector<8x128xf32>
    %c0_77 = arith.constant 0 : index
    %c0_78 = arith.constant 0 : index
    %226 = vector.load %arg6[%c0_77, %c0_78] : memref<128x384xf32, #tpu.memory_space<vmem>>, vector<128x384xf32>
    %cst_79 = arith.constant dense<0.000000e+00> : vector<8x384xf32>
    %227 = tpu.matmul %225, %226, %cst_79 {dimension_numbers = #tpu.dot_dimension_numbers<[1], [0], [0], [1], [0, 0, 1, 1], [], []>} : vector<8x128xf32>, vector<128x384xf32>, vector<8x384xf32> -> vector<8x384xf32>
    %c0_80 = arith.constant 0 : index
    %c0_81 = arith.constant 0 : index
    %228 = vector.load %arg7[%c0_80, %c0_81] : memref<128x384xf32, #tpu.memory_space<vmem>>, vector<128x384xf32>
    %cst_82 = arith.constant dense<0.000000e+00> : vector<8x384xf32>
    %229 = tpu.matmul %194, %228, %cst_82 {dimension_numbers = #tpu.dot_dimension_numbers<[1], [0], [0], [1], [0, 0, 1, 1], [], []>} : vector<8x128xf32>, vector<128x384xf32>, vector<8x384xf32> -> vector<8x384xf32>
    %230 = arith.addf %227, %229 : vector<8x384xf32>
    %231 = vector.broadcast %8 : vector<1x384xf32> to vector<8x384xf32>
    %232 = arith.addf %230, %231 : vector<8x384xf32>
    %c0_83 = arith.constant 0 : index
    %c0_84 = arith.constant 0 : index
    %233 = vector.load %arg9[%c0_83, %c0_84] : memref<128x128xf32, #tpu.memory_space<vmem>>, vector<128x128xf32>
    %cst_85 = arith.constant dense<0.000000e+00> : vector<8x128xf32>
    %234 = tpu.matmul %194, %233, %cst_85 {dimension_numbers = #tpu.dot_dimension_numbers<[1], [0], [0], [1], [0, 0, 1, 1], [], []>} : vector<8x128xf32>, vector<128x128xf32>, vector<8x128xf32> -> vector<8x128xf32>
    %235 = vector.extract_strided_slice %232 {offsets = [0, 0], sizes = [8, 256], strides = [1, 1]} : vector<8x384xf32> to vector<8x256xf32>
    %236 = arith.negf %235 : vector<8x256xf32>
    %237 = math.exp %236 : vector<8x256xf32>
    %cst_86 = arith.constant 1.000000e+00 : f32
    %238 = vector.broadcast %cst_86 : f32 to vector<8x256xf32>
    %239 = arith.addf %238, %237 : vector<8x256xf32>
    %240 = arith.divf %238, %239 : vector<8x256xf32>
    %241 = vector.extract_strided_slice %240 {offsets = [0, 0], sizes = [8, 128], strides = [1, 1]} : vector<8x256xf32> to vector<8x128xf32>
    %242 = vector.extract_strided_slice %240 {offsets = [0, 128], sizes = [8, 128], strides = [1, 1]} : vector<8x256xf32> to vector<8x128xf32>
    %243 = vector.extract_strided_slice %232 {offsets = [0, 256], sizes = [8, 128], strides = [1, 1]} : vector<8x384xf32> to vector<8x128xf32>
    %244 = vector.broadcast %9 : vector<1x128xf32> to vector<8x128xf32>
    %245 = arith.addf %234, %244 : vector<8x128xf32>
    %246 = arith.mulf %241, %245 : vector<8x128xf32>
    %247 = arith.addf %243, %246 : vector<8x128xf32>
    %248 = math.tanh %247 : vector<8x128xf32>
    %cst_87 = arith.constant 1.000000e+00 : f32
    %249 = vector.broadcast %cst_87 : f32 to vector<8x128xf32>
    %250 = arith.subf %249, %242 : vector<8x128xf32>
    %251 = arith.mulf %250, %248 : vector<8x128xf32>
    %252 = arith.mulf %242, %194 : vector<8x128xf32>
    %253 = arith.addf %251, %252 : vector<8x128xf32>
    %254 = arith.select %196, %253, %194 : vector<8x128xi1>, vector<8x128xf32>
    %c4_i32 = arith.constant 4 : i32
    %255 = vector.broadcast %c4_i32 : i32 to vector<8x128xi32>
    %256 = arith.cmpi sgt, %12, %255 : vector<8x128xi32>
    %c8_i32_88 = arith.constant 8 : i32
    %257 = arith.muli %c4_i32, %c8_i32_88 : i32
    %258 = tpu.assume_multiple %257, 8 : i32
    %259 = arith.index_cast %258 : i32 to index
    %c0_89 = arith.constant 0 : index
    %260 = vector.load %arg15[%259, %c0_89] : memref<64x384xf32, #tpu.memory_space<vmem>>, vector<8x384xf32>
    %c0_90 = arith.constant 0 : index
    %c0_91 = arith.constant 0 : index
    %261 = vector.load %arg4[%c0_90, %c0_91] : memref<128x384xf32, #tpu.memory_space<vmem>>, vector<128x384xf32>
    %cst_92 = arith.constant dense<0.000000e+00> : vector<8x384xf32>
    %262 = tpu.matmul %225, %261, %cst_92 {dimension_numbers = #tpu.dot_dimension_numbers<[1], [0], [0], [1], [0, 0, 1, 1], [], []>} : vector<8x128xf32>, vector<128x384xf32>, vector<8x384xf32> -> vector<8x384xf32>
    %263 = vector.extract_strided_slice %260 {offsets = [0, 0], sizes = [8, 256], strides = [1, 1]} : vector<8x384xf32> to vector<8x256xf32>
    %264 = vector.extract_strided_slice %262 {offsets = [0, 0], sizes = [8, 256], strides = [1, 1]} : vector<8x384xf32> to vector<8x256xf32>
    %265 = arith.addf %263, %264 : vector<8x256xf32>
    %266 = arith.negf %265 : vector<8x256xf32>
    %267 = math.exp %266 : vector<8x256xf32>
    %cst_93 = arith.constant 1.000000e+00 : f32
    %268 = vector.broadcast %cst_93 : f32 to vector<8x256xf32>
    %269 = arith.addf %268, %267 : vector<8x256xf32>
    %270 = arith.divf %268, %269 : vector<8x256xf32>
    %271 = vector.extract_strided_slice %270 {offsets = [0, 0], sizes = [8, 128], strides = [1, 1]} : vector<8x256xf32> to vector<8x128xf32>
    %272 = vector.extract_strided_slice %270 {offsets = [0, 128], sizes = [8, 128], strides = [1, 1]} : vector<8x256xf32> to vector<8x128xf32>
    %273 = vector.extract_strided_slice %260 {offsets = [0, 256], sizes = [8, 128], strides = [1, 1]} : vector<8x384xf32> to vector<8x128xf32>
    %274 = vector.extract_strided_slice %262 {offsets = [0, 256], sizes = [8, 128], strides = [1, 1]} : vector<8x384xf32> to vector<8x128xf32>
    %275 = vector.broadcast %7 : vector<1x128xf32> to vector<8x128xf32>
    %276 = arith.addf %274, %275 : vector<8x128xf32>
    %277 = arith.mulf %271, %276 : vector<8x128xf32>
    %278 = arith.addf %273, %277 : vector<8x128xf32>
    %279 = math.tanh %278 : vector<8x128xf32>
    %cst_94 = arith.constant 1.000000e+00 : f32
    %280 = vector.broadcast %cst_94 : f32 to vector<8x128xf32>
    %281 = arith.subf %280, %272 : vector<8x128xf32>
    %282 = arith.mulf %281, %279 : vector<8x128xf32>
    %283 = arith.mulf %272, %225 : vector<8x128xf32>
    %284 = arith.addf %282, %283 : vector<8x128xf32>
    %285 = arith.select %256, %284, %225 : vector<8x128xi1>, vector<8x128xf32>
    %c0_95 = arith.constant 0 : index
    %c0_96 = arith.constant 0 : index
    %286 = vector.load %arg6[%c0_95, %c0_96] : memref<128x384xf32, #tpu.memory_space<vmem>>, vector<128x384xf32>
    %cst_97 = arith.constant dense<0.000000e+00> : vector<8x384xf32>
    %287 = tpu.matmul %285, %286, %cst_97 {dimension_numbers = #tpu.dot_dimension_numbers<[1], [0], [0], [1], [0, 0, 1, 1], [], []>} : vector<8x128xf32>, vector<128x384xf32>, vector<8x384xf32> -> vector<8x384xf32>
    %c0_98 = arith.constant 0 : index
    %c0_99 = arith.constant 0 : index
    %288 = vector.load %arg7[%c0_98, %c0_99] : memref<128x384xf32, #tpu.memory_space<vmem>>, vector<128x384xf32>
    %cst_100 = arith.constant dense<0.000000e+00> : vector<8x384xf32>
    %289 = tpu.matmul %254, %288, %cst_100 {dimension_numbers = #tpu.dot_dimension_numbers<[1], [0], [0], [1], [0, 0, 1, 1], [], []>} : vector<8x128xf32>, vector<128x384xf32>, vector<8x384xf32> -> vector<8x384xf32>
    %290 = arith.addf %287, %289 : vector<8x384xf32>
    %291 = vector.broadcast %8 : vector<1x384xf32> to vector<8x384xf32>
    %292 = arith.addf %290, %291 : vector<8x384xf32>
    %c0_101 = arith.constant 0 : index
    %c0_102 = arith.constant 0 : index
    %293 = vector.load %arg9[%c0_101, %c0_102] : memref<128x128xf32, #tpu.memory_space<vmem>>, vector<128x128xf32>
    %cst_103 = arith.constant dense<0.000000e+00> : vector<8x128xf32>
    %294 = tpu.matmul %254, %293, %cst_103 {dimension_numbers = #tpu.dot_dimension_numbers<[1], [0], [0], [1], [0, 0, 1, 1], [], []>} : vector<8x128xf32>, vector<128x128xf32>, vector<8x128xf32> -> vector<8x128xf32>
    %295 = vector.extract_strided_slice %292 {offsets = [0, 0], sizes = [8, 256], strides = [1, 1]} : vector<8x384xf32> to vector<8x256xf32>
    %296 = arith.negf %295 : vector<8x256xf32>
    %297 = math.exp %296 : vector<8x256xf32>
    %cst_104 = arith.constant 1.000000e+00 : f32
    %298 = vector.broadcast %cst_104 : f32 to vector<8x256xf32>
    %299 = arith.addf %298, %297 : vector<8x256xf32>
    %300 = arith.divf %298, %299 : vector<8x256xf32>
    %301 = vector.extract_strided_slice %300 {offsets = [0, 0], sizes = [8, 128], strides = [1, 1]} : vector<8x256xf32> to vector<8x128xf32>
    %302 = vector.extract_strided_slice %300 {offsets = [0, 128], sizes = [8, 128], strides = [1, 1]} : vector<8x256xf32> to vector<8x128xf32>
    %303 = vector.extract_strided_slice %292 {offsets = [0, 256], sizes = [8, 128], strides = [1, 1]} : vector<8x384xf32> to vector<8x128xf32>
    %304 = vector.broadcast %9 : vector<1x128xf32> to vector<8x128xf32>
    %305 = arith.addf %294, %304 : vector<8x128xf32>
    %306 = arith.mulf %301, %305 : vector<8x128xf32>
    %307 = arith.addf %303, %306 : vector<8x128xf32>
    %308 = math.tanh %307 : vector<8x128xf32>
    %cst_105 = arith.constant 1.000000e+00 : f32
    %309 = vector.broadcast %cst_105 : f32 to vector<8x128xf32>
    %310 = arith.subf %309, %302 : vector<8x128xf32>
    %311 = arith.mulf %310, %308 : vector<8x128xf32>
    %312 = arith.mulf %302, %254 : vector<8x128xf32>
    %313 = arith.addf %311, %312 : vector<8x128xf32>
    %314 = arith.select %256, %313, %254 : vector<8x128xi1>, vector<8x128xf32>
    %c5_i32 = arith.constant 5 : i32
    %315 = vector.broadcast %c5_i32 : i32 to vector<8x128xi32>
    %316 = arith.cmpi sgt, %12, %315 : vector<8x128xi32>
    %c8_i32_106 = arith.constant 8 : i32
    %317 = arith.muli %c5_i32, %c8_i32_106 : i32
    %318 = tpu.assume_multiple %317, 8 : i32
    %319 = arith.index_cast %318 : i32 to index
    %c0_107 = arith.constant 0 : index
    %320 = vector.load %arg15[%319, %c0_107] : memref<64x384xf32, #tpu.memory_space<vmem>>, vector<8x384xf32>
    %c0_108 = arith.constant 0 : index
    %c0_109 = arith.constant 0 : index
    %321 = vector.load %arg4[%c0_108, %c0_109] : memref<128x384xf32, #tpu.memory_space<vmem>>, vector<128x384xf32>
    %cst_110 = arith.constant dense<0.000000e+00> : vector<8x384xf32>
    %322 = tpu.matmul %285, %321, %cst_110 {dimension_numbers = #tpu.dot_dimension_numbers<[1], [0], [0], [1], [0, 0, 1, 1], [], []>} : vector<8x128xf32>, vector<128x384xf32>, vector<8x384xf32> -> vector<8x384xf32>
    %323 = vector.extract_strided_slice %320 {offsets = [0, 0], sizes = [8, 256], strides = [1, 1]} : vector<8x384xf32> to vector<8x256xf32>
    %324 = vector.extract_strided_slice %322 {offsets = [0, 0], sizes = [8, 256], strides = [1, 1]} : vector<8x384xf32> to vector<8x256xf32>
    %325 = arith.addf %323, %324 : vector<8x256xf32>
    %326 = arith.negf %325 : vector<8x256xf32>
    %327 = math.exp %326 : vector<8x256xf32>
    %cst_111 = arith.constant 1.000000e+00 : f32
    %328 = vector.broadcast %cst_111 : f32 to vector<8x256xf32>
    %329 = arith.addf %328, %327 : vector<8x256xf32>
    %330 = arith.divf %328, %329 : vector<8x256xf32>
    %331 = vector.extract_strided_slice %330 {offsets = [0, 0], sizes = [8, 128], strides = [1, 1]} : vector<8x256xf32> to vector<8x128xf32>
    %332 = vector.extract_strided_slice %330 {offsets = [0, 128], sizes = [8, 128], strides = [1, 1]} : vector<8x256xf32> to vector<8x128xf32>
    %333 = vector.extract_strided_slice %320 {offsets = [0, 256], sizes = [8, 128], strides = [1, 1]} : vector<8x384xf32> to vector<8x128xf32>
    %334 = vector.extract_strided_slice %322 {offsets = [0, 256], sizes = [8, 128], strides = [1, 1]} : vector<8x384xf32> to vector<8x128xf32>
    %335 = vector.broadcast %7 : vector<1x128xf32> to vector<8x128xf32>
    %336 = arith.addf %334, %335 : vector<8x128xf32>
    %337 = arith.mulf %331, %336 : vector<8x128xf32>
    %338 = arith.addf %333, %337 : vector<8x128xf32>
    %339 = math.tanh %338 : vector<8x128xf32>
    %cst_112 = arith.constant 1.000000e+00 : f32
    %340 = vector.broadcast %cst_112 : f32 to vector<8x128xf32>
    %341 = arith.subf %340, %332 : vector<8x128xf32>
    %342 = arith.mulf %341, %339 : vector<8x128xf32>
    %343 = arith.mulf %332, %285 : vector<8x128xf32>
    %344 = arith.addf %342, %343 : vector<8x128xf32>
    %345 = arith.select %316, %344, %285 : vector<8x128xi1>, vector<8x128xf32>
    %c0_113 = arith.constant 0 : index
    %c0_114 = arith.constant 0 : index
    %346 = vector.load %arg6[%c0_113, %c0_114] : memref<128x384xf32, #tpu.memory_space<vmem>>, vector<128x384xf32>
    %cst_115 = arith.constant dense<0.000000e+00> : vector<8x384xf32>
    %347 = tpu.matmul %345, %346, %cst_115 {dimension_numbers = #tpu.dot_dimension_numbers<[1], [0], [0], [1], [0, 0, 1, 1], [], []>} : vector<8x128xf32>, vector<128x384xf32>, vector<8x384xf32> -> vector<8x384xf32>
    %c0_116 = arith.constant 0 : index
    %c0_117 = arith.constant 0 : index
    %348 = vector.load %arg7[%c0_116, %c0_117] : memref<128x384xf32, #tpu.memory_space<vmem>>, vector<128x384xf32>
    %cst_118 = arith.constant dense<0.000000e+00> : vector<8x384xf32>
    %349 = tpu.matmul %314, %348, %cst_118 {dimension_numbers = #tpu.dot_dimension_numbers<[1], [0], [0], [1], [0, 0, 1, 1], [], []>} : vector<8x128xf32>, vector<128x384xf32>, vector<8x384xf32> -> vector<8x384xf32>
    %350 = arith.addf %347, %349 : vector<8x384xf32>
    %351 = vector.broadcast %8 : vector<1x384xf32> to vector<8x384xf32>
    %352 = arith.addf %350, %351 : vector<8x384xf32>
    %c0_119 = arith.constant 0 : index
    %c0_120 = arith.constant 0 : index
    %353 = vector.load %arg9[%c0_119, %c0_120] : memref<128x128xf32, #tpu.memory_space<vmem>>, vector<128x128xf32>
    %cst_121 = arith.constant dense<0.000000e+00> : vector<8x128xf32>
    %354 = tpu.matmul %314, %353, %cst_121 {dimension_numbers = #tpu.dot_dimension_numbers<[1], [0], [0], [1], [0, 0, 1, 1], [], []>} : vector<8x128xf32>, vector<128x128xf32>, vector<8x128xf32> -> vector<8x128xf32>
    %355 = vector.extract_strided_slice %352 {offsets = [0, 0], sizes = [8, 256], strides = [1, 1]} : vector<8x384xf32> to vector<8x256xf32>
    %356 = arith.negf %355 : vector<8x256xf32>
    %357 = math.exp %356 : vector<8x256xf32>
    %cst_122 = arith.constant 1.000000e+00 : f32
    %358 = vector.broadcast %cst_122 : f32 to vector<8x256xf32>
    %359 = arith.addf %358, %357 : vector<8x256xf32>
    %360 = arith.divf %358, %359 : vector<8x256xf32>
    %361 = vector.extract_strided_slice %360 {offsets = [0, 0], sizes = [8, 128], strides = [1, 1]} : vector<8x256xf32> to vector<8x128xf32>
    %362 = vector.extract_strided_slice %360 {offsets = [0, 128], sizes = [8, 128], strides = [1, 1]} : vector<8x256xf32> to vector<8x128xf32>
    %363 = vector.extract_strided_slice %352 {offsets = [0, 256], sizes = [8, 128], strides = [1, 1]} : vector<8x384xf32> to vector<8x128xf32>
    %364 = vector.broadcast %9 : vector<1x128xf32> to vector<8x128xf32>
    %365 = arith.addf %354, %364 : vector<8x128xf32>
    %366 = arith.mulf %361, %365 : vector<8x128xf32>
    %367 = arith.addf %363, %366 : vector<8x128xf32>
    %368 = math.tanh %367 : vector<8x128xf32>
    %cst_123 = arith.constant 1.000000e+00 : f32
    %369 = vector.broadcast %cst_123 : f32 to vector<8x128xf32>
    %370 = arith.subf %369, %362 : vector<8x128xf32>
    %371 = arith.mulf %370, %368 : vector<8x128xf32>
    %372 = arith.mulf %362, %314 : vector<8x128xf32>
    %373 = arith.addf %371, %372 : vector<8x128xf32>
    %374 = arith.select %316, %373, %314 : vector<8x128xi1>, vector<8x128xf32>
    %c6_i32 = arith.constant 6 : i32
    %375 = vector.broadcast %c6_i32 : i32 to vector<8x128xi32>
    %376 = arith.cmpi sgt, %12, %375 : vector<8x128xi32>
    %c8_i32_124 = arith.constant 8 : i32
    %377 = arith.muli %c6_i32, %c8_i32_124 : i32
    %378 = tpu.assume_multiple %377, 8 : i32
    %379 = arith.index_cast %378 : i32 to index
    %c0_125 = arith.constant 0 : index
    %380 = vector.load %arg15[%379, %c0_125] : memref<64x384xf32, #tpu.memory_space<vmem>>, vector<8x384xf32>
    %c0_126 = arith.constant 0 : index
    %c0_127 = arith.constant 0 : index
    %381 = vector.load %arg4[%c0_126, %c0_127] : memref<128x384xf32, #tpu.memory_space<vmem>>, vector<128x384xf32>
    %cst_128 = arith.constant dense<0.000000e+00> : vector<8x384xf32>
    %382 = tpu.matmul %345, %381, %cst_128 {dimension_numbers = #tpu.dot_dimension_numbers<[1], [0], [0], [1], [0, 0, 1, 1], [], []>} : vector<8x128xf32>, vector<128x384xf32>, vector<8x384xf32> -> vector<8x384xf32>
    %383 = vector.extract_strided_slice %380 {offsets = [0, 0], sizes = [8, 256], strides = [1, 1]} : vector<8x384xf32> to vector<8x256xf32>
    %384 = vector.extract_strided_slice %382 {offsets = [0, 0], sizes = [8, 256], strides = [1, 1]} : vector<8x384xf32> to vector<8x256xf32>
    %385 = arith.addf %383, %384 : vector<8x256xf32>
    %386 = arith.negf %385 : vector<8x256xf32>
    %387 = math.exp %386 : vector<8x256xf32>
    %cst_129 = arith.constant 1.000000e+00 : f32
    %388 = vector.broadcast %cst_129 : f32 to vector<8x256xf32>
    %389 = arith.addf %388, %387 : vector<8x256xf32>
    %390 = arith.divf %388, %389 : vector<8x256xf32>
    %391 = vector.extract_strided_slice %390 {offsets = [0, 0], sizes = [8, 128], strides = [1, 1]} : vector<8x256xf32> to vector<8x128xf32>
    %392 = vector.extract_strided_slice %390 {offsets = [0, 128], sizes = [8, 128], strides = [1, 1]} : vector<8x256xf32> to vector<8x128xf32>
    %393 = vector.extract_strided_slice %380 {offsets = [0, 256], sizes = [8, 128], strides = [1, 1]} : vector<8x384xf32> to vector<8x128xf32>
    %394 = vector.extract_strided_slice %382 {offsets = [0, 256], sizes = [8, 128], strides = [1, 1]} : vector<8x384xf32> to vector<8x128xf32>
    %395 = vector.broadcast %7 : vector<1x128xf32> to vector<8x128xf32>
    %396 = arith.addf %394, %395 : vector<8x128xf32>
    %397 = arith.mulf %391, %396 : vector<8x128xf32>
    %398 = arith.addf %393, %397 : vector<8x128xf32>
    %399 = math.tanh %398 : vector<8x128xf32>
    %cst_130 = arith.constant 1.000000e+00 : f32
    %400 = vector.broadcast %cst_130 : f32 to vector<8x128xf32>
    %401 = arith.subf %400, %392 : vector<8x128xf32>
    %402 = arith.mulf %401, %399 : vector<8x128xf32>
    %403 = arith.mulf %392, %345 : vector<8x128xf32>
    %404 = arith.addf %402, %403 : vector<8x128xf32>
    %405 = arith.select %376, %404, %345 : vector<8x128xi1>, vector<8x128xf32>
    %c0_131 = arith.constant 0 : index
    %c0_132 = arith.constant 0 : index
    %406 = vector.load %arg6[%c0_131, %c0_132] : memref<128x384xf32, #tpu.memory_space<vmem>>, vector<128x384xf32>
    %cst_133 = arith.constant dense<0.000000e+00> : vector<8x384xf32>
    %407 = tpu.matmul %405, %406, %cst_133 {dimension_numbers = #tpu.dot_dimension_numbers<[1], [0], [0], [1], [0, 0, 1, 1], [], []>} : vector<8x128xf32>, vector<128x384xf32>, vector<8x384xf32> -> vector<8x384xf32>
    %c0_134 = arith.constant 0 : index
    %c0_135 = arith.constant 0 : index
    %408 = vector.load %arg7[%c0_134, %c0_135] : memref<128x384xf32, #tpu.memory_space<vmem>>, vector<128x384xf32>
    %cst_136 = arith.constant dense<0.000000e+00> : vector<8x384xf32>
    %409 = tpu.matmul %374, %408, %cst_136 {dimension_numbers = #tpu.dot_dimension_numbers<[1], [0], [0], [1], [0, 0, 1, 1], [], []>} : vector<8x128xf32>, vector<128x384xf32>, vector<8x384xf32> -> vector<8x384xf32>
    %410 = arith.addf %407, %409 : vector<8x384xf32>
    %411 = vector.broadcast %8 : vector<1x384xf32> to vector<8x384xf32>
    %412 = arith.addf %410, %411 : vector<8x384xf32>
    %c0_137 = arith.constant 0 : index
    %c0_138 = arith.constant 0 : index
    %413 = vector.load %arg9[%c0_137, %c0_138] : memref<128x128xf32, #tpu.memory_space<vmem>>, vector<128x128xf32>
    %cst_139 = arith.constant dense<0.000000e+00> : vector<8x128xf32>
    %414 = tpu.matmul %374, %413, %cst_139 {dimension_numbers = #tpu.dot_dimension_numbers<[1], [0], [0], [1], [0, 0, 1, 1], [], []>} : vector<8x128xf32>, vector<128x128xf32>, vector<8x128xf32> -> vector<8x128xf32>
    %415 = vector.extract_strided_slice %412 {offsets = [0, 0], sizes = [8, 256], strides = [1, 1]} : vector<8x384xf32> to vector<8x256xf32>
    %416 = arith.negf %415 : vector<8x256xf32>
    %417 = math.exp %416 : vector<8x256xf32>
    %cst_140 = arith.constant 1.000000e+00 : f32
    %418 = vector.broadcast %cst_140 : f32 to vector<8x256xf32>
    %419 = arith.addf %418, %417 : vector<8x256xf32>
    %420 = arith.divf %418, %419 : vector<8x256xf32>
    %421 = vector.extract_strided_slice %420 {offsets = [0, 0], sizes = [8, 128], strides = [1, 1]} : vector<8x256xf32> to vector<8x128xf32>
    %422 = vector.extract_strided_slice %420 {offsets = [0, 128], sizes = [8, 128], strides = [1, 1]} : vector<8x256xf32> to vector<8x128xf32>
    %423 = vector.extract_strided_slice %412 {offsets = [0, 256], sizes = [8, 128], strides = [1, 1]} : vector<8x384xf32> to vector<8x128xf32>
    %424 = vector.broadcast %9 : vector<1x128xf32> to vector<8x128xf32>
    %425 = arith.addf %414, %424 : vector<8x128xf32>
    %426 = arith.mulf %421, %425 : vector<8x128xf32>
    %427 = arith.addf %423, %426 : vector<8x128xf32>
    %428 = math.tanh %427 : vector<8x128xf32>
    %cst_141 = arith.constant 1.000000e+00 : f32
    %429 = vector.broadcast %cst_141 : f32 to vector<8x128xf32>
    %430 = arith.subf %429, %422 : vector<8x128xf32>
    %431 = arith.mulf %430, %428 : vector<8x128xf32>
    %432 = arith.mulf %422, %374 : vector<8x128xf32>
    %433 = arith.addf %431, %432 : vector<8x128xf32>
    %434 = arith.select %376, %433, %374 : vector<8x128xi1>, vector<8x128xf32>
    %c7_i32 = arith.constant 7 : i32
    %435 = vector.broadcast %c7_i32 : i32 to vector<8x128xi32>
    %436 = arith.cmpi sgt, %12, %435 : vector<8x128xi32>
    %c8_i32_142 = arith.constant 8 : i32
    %437 = arith.muli %c7_i32, %c8_i32_142 : i32
    %438 = tpu.assume_multiple %437, 8 : i32
    %439 = arith.index_cast %438 : i32 to index
    %c0_143 = arith.constant 0 : index
    %440 = vector.load %arg15[%439, %c0_143] : memref<64x384xf32, #tpu.memory_space<vmem>>, vector<8x384xf32>
    %c0_144 = arith.constant 0 : index
    %c0_145 = arith.constant 0 : index
    %441 = vector.load %arg4[%c0_144, %c0_145] : memref<128x384xf32, #tpu.memory_space<vmem>>, vector<128x384xf32>
    %cst_146 = arith.constant dense<0.000000e+00> : vector<8x384xf32>
    %442 = tpu.matmul %405, %441, %cst_146 {dimension_numbers = #tpu.dot_dimension_numbers<[1], [0], [0], [1], [0, 0, 1, 1], [], []>} : vector<8x128xf32>, vector<128x384xf32>, vector<8x384xf32> -> vector<8x384xf32>
    %443 = vector.extract_strided_slice %440 {offsets = [0, 0], sizes = [8, 256], strides = [1, 1]} : vector<8x384xf32> to vector<8x256xf32>
    %444 = vector.extract_strided_slice %442 {offsets = [0, 0], sizes = [8, 256], strides = [1, 1]} : vector<8x384xf32> to vector<8x256xf32>
    %445 = arith.addf %443, %444 : vector<8x256xf32>
    %446 = arith.negf %445 : vector<8x256xf32>
    %447 = math.exp %446 : vector<8x256xf32>
    %cst_147 = arith.constant 1.000000e+00 : f32
    %448 = vector.broadcast %cst_147 : f32 to vector<8x256xf32>
    %449 = arith.addf %448, %447 : vector<8x256xf32>
    %450 = arith.divf %448, %449 : vector<8x256xf32>
    %451 = vector.extract_strided_slice %450 {offsets = [0, 0], sizes = [8, 128], strides = [1, 1]} : vector<8x256xf32> to vector<8x128xf32>
    %452 = vector.extract_strided_slice %450 {offsets = [0, 128], sizes = [8, 128], strides = [1, 1]} : vector<8x256xf32> to vector<8x128xf32>
    %453 = vector.extract_strided_slice %440 {offsets = [0, 256], sizes = [8, 128], strides = [1, 1]} : vector<8x384xf32> to vector<8x128xf32>
    %454 = vector.extract_strided_slice %442 {offsets = [0, 256], sizes = [8, 128], strides = [1, 1]} : vector<8x384xf32> to vector<8x128xf32>
    %455 = vector.broadcast %7 : vector<1x128xf32> to vector<8x128xf32>
    %456 = arith.addf %454, %455 : vector<8x128xf32>
    %457 = arith.mulf %451, %456 : vector<8x128xf32>
    %458 = arith.addf %453, %457 : vector<8x128xf32>
    %459 = math.tanh %458 : vector<8x128xf32>
    %cst_148 = arith.constant 1.000000e+00 : f32
    %460 = vector.broadcast %cst_148 : f32 to vector<8x128xf32>
    %461 = arith.subf %460, %452 : vector<8x128xf32>
    %462 = arith.mulf %461, %459 : vector<8x128xf32>
    %463 = arith.mulf %452, %405 : vector<8x128xf32>
    %464 = arith.addf %462, %463 : vector<8x128xf32>
    %465 = arith.select %436, %464, %405 : vector<8x128xi1>, vector<8x128xf32>
    %c0_149 = arith.constant 0 : index
    %c0_150 = arith.constant 0 : index
    %466 = vector.load %arg6[%c0_149, %c0_150] : memref<128x384xf32, #tpu.memory_space<vmem>>, vector<128x384xf32>
    %cst_151 = arith.constant dense<0.000000e+00> : vector<8x384xf32>
    %467 = tpu.matmul %465, %466, %cst_151 {dimension_numbers = #tpu.dot_dimension_numbers<[1], [0], [0], [1], [0, 0, 1, 1], [], []>} : vector<8x128xf32>, vector<128x384xf32>, vector<8x384xf32> -> vector<8x384xf32>
    %c0_152 = arith.constant 0 : index
    %c0_153 = arith.constant 0 : index
    %468 = vector.load %arg7[%c0_152, %c0_153] : memref<128x384xf32, #tpu.memory_space<vmem>>, vector<128x384xf32>
    %cst_154 = arith.constant dense<0.000000e+00> : vector<8x384xf32>
    %469 = tpu.matmul %434, %468, %cst_154 {dimension_numbers = #tpu.dot_dimension_numbers<[1], [0], [0], [1], [0, 0, 1, 1], [], []>} : vector<8x128xf32>, vector<128x384xf32>, vector<8x384xf32> -> vector<8x384xf32>
    %470 = arith.addf %467, %469 : vector<8x384xf32>
    %471 = vector.broadcast %8 : vector<1x384xf32> to vector<8x384xf32>
    %472 = arith.addf %470, %471 : vector<8x384xf32>
    %c0_155 = arith.constant 0 : index
    %c0_156 = arith.constant 0 : index
    %473 = vector.load %arg9[%c0_155, %c0_156] : memref<128x128xf32, #tpu.memory_space<vmem>>, vector<128x128xf32>
    %cst_157 = arith.constant dense<0.000000e+00> : vector<8x128xf32>
    %474 = tpu.matmul %434, %473, %cst_157 {dimension_numbers = #tpu.dot_dimension_numbers<[1], [0], [0], [1], [0, 0, 1, 1], [], []>} : vector<8x128xf32>, vector<128x128xf32>, vector<8x128xf32> -> vector<8x128xf32>
    %475 = vector.extract_strided_slice %472 {offsets = [0, 0], sizes = [8, 256], strides = [1, 1]} : vector<8x384xf32> to vector<8x256xf32>
    %476 = arith.negf %475 : vector<8x256xf32>
    %477 = math.exp %476 : vector<8x256xf32>
    %cst_158 = arith.constant 1.000000e+00 : f32
    %478 = vector.broadcast %cst_158 : f32 to vector<8x256xf32>
    %479 = arith.addf %478, %477 : vector<8x256xf32>
    %480 = arith.divf %478, %479 : vector<8x256xf32>
    %481 = vector.extract_strided_slice %480 {offsets = [0, 0], sizes = [8, 128], strides = [1, 1]} : vector<8x256xf32> to vector<8x128xf32>
    %482 = vector.extract_strided_slice %480 {offsets = [0, 128], sizes = [8, 128], strides = [1, 1]} : vector<8x256xf32> to vector<8x128xf32>
    %483 = vector.extract_strided_slice %472 {offsets = [0, 256], sizes = [8, 128], strides = [1, 1]} : vector<8x384xf32> to vector<8x128xf32>
    %484 = vector.broadcast %9 : vector<1x128xf32> to vector<8x128xf32>
    %485 = arith.addf %474, %484 : vector<8x128xf32>
    %486 = arith.mulf %481, %485 : vector<8x128xf32>
    %487 = arith.addf %483, %486 : vector<8x128xf32>
    %488 = math.tanh %487 : vector<8x128xf32>
    %cst_159 = arith.constant 1.000000e+00 : f32
    %489 = vector.broadcast %cst_159 : f32 to vector<8x128xf32>
    %490 = arith.subf %489, %482 : vector<8x128xf32>
    %491 = arith.mulf %490, %488 : vector<8x128xf32>
    %492 = arith.mulf %482, %434 : vector<8x128xf32>
    %493 = arith.addf %491, %492 : vector<8x128xf32>
    %494 = arith.select %436, %493, %434 : vector<8x128xi1>, vector<8x128xf32>
    %c8_i32_160 = arith.constant 8 : i32
    %c0_161 = arith.constant 0 : index
    %c0_162 = arith.constant 0 : index
    %495 = vector.load %arg11[%c0_161, %c0_162] : memref<128x128xf32, #tpu.memory_space<vmem>>, vector<128x128xf32>
    %cst_163 = arith.constant dense<0.000000e+00> : vector<8x128xf32>
    %496 = tpu.matmul %465, %495, %cst_163 {dimension_numbers = #tpu.dot_dimension_numbers<[1], [0], [0], [1], [0, 0, 1, 1], [], []>} : vector<8x128xf32>, vector<128x128xf32>, vector<8x128xf32> -> vector<8x128xf32>
    %c0_164 = arith.constant 0 : index
    %c0_165 = arith.constant 0 : index
    %497 = vector.load %arg12[%c0_164, %c0_165] : memref<128x128xf32, #tpu.memory_space<vmem>>, vector<128x128xf32>
    %cst_166 = arith.constant dense<0.000000e+00> : vector<8x128xf32>
    %498 = tpu.matmul %494, %497, %cst_166 {dimension_numbers = #tpu.dot_dimension_numbers<[1], [0], [0], [1], [0, 0, 1, 1], [], []>} : vector<8x128xf32>, vector<128x128xf32>, vector<8x128xf32> -> vector<8x128xf32>
    %499 = arith.addf %496, %498 : vector<8x128xf32>
    %c0_167 = arith.constant 0 : index
    %c0_168 = arith.constant 0 : index
    %500 = vector.load %arg13[%c0_167, %c0_168] : memref<1x128xf32, #tpu.memory_space<vmem>>, vector<1x128xf32>
    %501 = vector.broadcast %500 : vector<1x128xf32> to vector<8x128xf32>
    %502 = arith.addf %499, %501 : vector<8x128xf32>
    %c0_169 = arith.constant 0 : index
    %c0_170 = arith.constant 0 : index
    %503 = vector.load %arg14[%c0_169, %c0_170] : memref<8x128xf32, #tpu.memory_space<vmem>>, vector<8x128xf32>
    tpu.vector_store %arg14[%c0_169, %c0_170], %502 {strides = array<i32>} : memref<8x128xf32, #tpu.memory_space<vmem>>, vector<8x128xf32>,
    return
  }
}

</mosaic_0001>

<llo_original>
// kernel: tpu_custom_call.1
$region0: #{tpu_custom_call.1}
  #allocation0 [shape = 'u32[]', space=smem, size = 0x4, offset = 0x4, fixed_abs, tag = 'smem constant byte address 0x4 - core index']
  #allocation1 [shape = 'u32[144,128]{1,0:T(1,128)}', space=vmem, size = 0x12000, scoped, tag = 'internal scratch']
  #allocation2 [shape = 'f32[64,384]{1,0:T(8,128)}', space=vmem, size = 0x18000, scoped, tag = 'scratch operand']
  %s0 = inlined_call_operand.vmem [shape: f32[64,32], index: 0, kind: input, shape index: {}]
  %s1 = inlined_call_operand.vmem [shape: s32[8,1], index: 1, kind: input, shape index: {}]
  %s2 = inlined_call_operand.hbm [shape: f32[32,384], index: 2, kind: input, shape index: {}]
  %s3 = inlined_call_operand.vmem [shape: f32[1,384], index: 3, kind: input, shape index: {}]
  %s4 = inlined_call_operand.hbm [shape: f32[128,384], index: 4, kind: input, shape index: {}]
  %s5 = inlined_call_operand.vmem [shape: f32[1,128], index: 5, kind: input, shape index: {}]
  %s6 = inlined_call_operand.hbm [shape: f32[128,384], index: 6, kind: input, shape index: {}]
  %s7 = inlined_call_operand.hbm [shape: f32[128,384], index: 7, kind: input, shape index: {}]
  %s8 = inlined_call_operand.vmem [shape: f32[1,384], index: 8, kind: input, shape index: {}]
  %s9 = inlined_call_operand.vmem [shape: f32[128,128], index: 9, kind: input, shape index: {}]
  %s10 = inlined_call_operand.vmem [shape: f32[1,128], index: 10, kind: input, shape index: {}]
  %s11 = inlined_call_operand.hbm [shape: f32[128,128], index: 11, kind: input, shape index: {}]
  %s12 = inlined_call_operand.hbm [shape: f32[128,128], index: 12, kind: input, shape index: {}]
  %s13 = inlined_call_operand.vmem [shape: f32[1,128], index: 13, kind: input, shape index: {}]
  %s14 = inlined_call_operand.hbm [shape: f32[8,128], index: 14, kind: output, shape index: {}]
  %s15 = sld [smem:[#allocation0]]
  $region90: #{tpu_custom_call.1} parent=0
    _
  %s17 = ssub.s32 1, %s15
  %s18 = scalar_select 0, %s17, %s15
  $region1: #{tpu_custom_call.1} parent=0
    #allocation3 [shape = 'u8[49152]{0}', space=vmem, size = 0xc000, scoped, tag = 'input window, operand 2, single buffered']
    #allocation4 [shape = 's32[1]{0}', space=sflag, size = 0x4, scoped, tag = 'scoped memory for tpu_custom_call.1']
    #allocation5 [shape = 's32[1]{0}', space=sflag, size = 0x4, scoped, tag = 'scoped memory for tpu_custom_call.1']
    #allocation6 [shape = 'u8[196608]{0}', space=vmem, size = 0x30000, scoped, tag = 'input window, operand 4, single buffered']
    #allocation7 [shape = 's32[1]{0}', space=sflag, size = 0x4, scoped, tag = 'scoped memory for tpu_custom_call.1']
    #allocation8 [shape = 'u8[196608]{0}', space=vmem, size = 0x30000, scoped, tag = 'input window, operand 6, single buffered']
    #allocation9 [shape = 'u8[196608]{0}', space=vmem, size = 0x30000, scoped, tag = 'input window, operand 7, single buffered']
    #allocation10 [shape = 's32[1]{0}', space=sflag, size = 0x4, scoped, tag = 'scoped memory for tpu_custom_call.1']
    #allocation11 [shape = 'u8[65536]{0}', space=vmem, size = 0x10000, scoped, tag = 'input window, operand 11, single buffered']
    #allocation12 [shape = 'u8[65536]{0}', space=vmem, size = 0x10000, scoped, tag = 'input window, operand 12, single buffered']
    #allocation13 [shape = 's32[1]{0}', space=sflag, size = 0x4, scoped, tag = 'scoped memory for tpu_custom_call.1']
    #allocation14 [shape = 'u8[4096]{0}', space=vmem, size = 0x1000, scoped, tag = 'output window, operand 0, single buffered']
    %19 = vsyncpa [#allocation4], 0
    %20 = vsyncpa [#allocation7], 0
    %21 = vsyncpa [#allocation10], 0
    %22 = vsyncpa [#allocation13], 0
    %23 = vsyncpa [#allocation5], 0
    // Predicated region
    $region2: #{tpu_custom_call.1} parent=1 // pred_check
      _
    $region3: #{tpu_custom_call.1} parent=1 // pred_check_branch
      %25 = sbr.rel (0) target = $region5
    $region4: #{tpu_custom_call.1} parent=1 // pred_region
      _
    $region5: #{tpu_custom_call.1} parent=1 // pred_fallthru
      _
    // Predicated region
    $region6: #{tpu_custom_call.1} parent=1 // pred_check
      _
    $region7: #{tpu_custom_call.1} parent=1 // pred_check_branch
      %27 = sbr.rel (0) target = $region9
    $region8: #{tpu_custom_call.1} parent=1 // pred_region
      _
    $region9: #{tpu_custom_call.1} parent=1 // pred_fallthru
      _
    // Predicated region
    $region10: #{tpu_custom_call.1} parent=1 // pred_check
      _
    $region11: #{tpu_custom_call.1} parent=1 // pred_check_branch
      %29 = sbr.rel (0) target = $region13
    $region12: #{tpu_custom_call.1} parent=1 // pred_region
      %s31 = ssub.s32 1536, 1536
      %32 = vsyncadd [#allocation4], %s31
      %s33 = sshll.u32 [#allocation3], 4
      %s34 = int_to_ptr.vmem [resolvable:$true] %s33
      %39 = dma.hbm_to_vmem [thread:$0]  %s2, 1536, %s34, [#allocation4], 384, 384, 24
    $region13: #{tpu_custom_call.1} parent=1 // pred_fallthru
      _
    // Predicated region
    $region14: #{tpu_custom_call.1} parent=1 // pred_check
      _
    $region15: #{tpu_custom_call.1} parent=1 // pred_check_branch
      %41 = sbr.rel (0) target = $region17
    $region16: #{tpu_custom_call.1} parent=1 // pred_region
      _
    $region17: #{tpu_custom_call.1} parent=1 // pred_fallthru
      _
    // Predicated region
    $region18: #{tpu_custom_call.1} parent=1 // pred_check
      _
    $region19: #{tpu_custom_call.1} parent=1 // pred_check_branch
      %43 = sbr.rel (0) target = $region21
    $region20: #{tpu_custom_call.1} parent=1 // pred_region
      %s45 = ssub.s32 6144, 6144
      %46 = vsyncadd [#allocation7], %s45
      %s47 = sshll.u32 [#allocation6], 4
      %s48 = int_to_ptr.vmem [resolvable:$true] %s47
      %53 = dma.hbm_to_vmem [thread:$0]  %s4, 6144, %s48, [#allocation7], 384, 384, 24
    $region21: #{tpu_custom_call.1} parent=1 // pred_fallthru
      _
    // Predicated region
    $region22: #{tpu_custom_call.1} parent=1 // pred_check
      _
    $region23: #{tpu_custom_call.1} parent=1 // pred_check_branch
      %55 = sbr.rel (0) target = $region25
    $region24: #{tpu_custom_call.1} parent=1 // pred_region
      _
    $region25: #{tpu_custom_call.1} parent=1 // pred_fallthru
      _
    // Predicated region
    $region26: #{tpu_custom_call.1} parent=1 // pred_check
      _
    $region27: #{tpu_custom_call.1} parent=1 // pred_check_branch
      %57 = sbr.rel (0) target = $region29
    $region28: #{tpu_custom_call.1} parent=1 // pred_region
      %s59 = ssub.s32 6144, 6144
      %60 = vsyncadd [#allocation7], %s59
      %s61 = sshll.u32 [#allocation8], 4
      %s62 = int_to_ptr.vmem [resolvable:$true] %s61
      %67 = dma.hbm_to_vmem [thread:$0]  %s6, 6144, %s62, [#allocation7], 384, 384, 24
    $region29: #{tpu_custom_call.1} parent=1 // pred_fallthru
      _
    // Predicated region
    $region30: #{tpu_custom_call.1} parent=1 // pred_check
      _
    $region31: #{tpu_custom_call.1} parent=1 // pred_check_branch
      %69 = sbr.rel (0) target = $region33
    $region32: #{tpu_custom_call.1} parent=1 // pred_region
      %s71 = ssub.s32 6144, 6144
      %72 = vsyncadd [#allocation10], %s71
      %s73 = sshll.u32 [#allocation9], 4
      %s74 = int_to_ptr.vmem [resolvable:$true] %s73
      %79 = dma.hbm_to_vmem [thread:$0]  %s7, 6144, %s74, [#allocation10], 384, 384, 24
    $region33: #{tpu_custom_call.1} parent=1 // pred_fallthru
      _
    // Predicated region
    $region34: #{tpu_custom_call.1} parent=1 // pred_check
      _
    $region35: #{tpu_custom_call.1} parent=1 // pred_check_branch
      %81 = sbr.rel (0) target = $region37
    $region36: #{tpu_custom_call.1} parent=1 // pred_region
      _
    $region37: #{tpu_custom_call.1} parent=1 // pred_fallthru
      _
    // Predicated region
    $region38: #{tpu_custom_call.1} parent=1 // pred_check
      _
    $region39: #{tpu_custom_call.1} parent=1 // pred_check_branch
      %83 = sbr.rel (0) target = $region41
    $region40: #{tpu_custom_call.1} parent=1 // pred_region
      _
    $region41: #{tpu_custom_call.1} parent=1 // pred_fallthru
      _
    // Predicated region
    $region42: #{tpu_custom_call.1} parent=1 // pred_check
      _
    $region43: #{tpu_custom_call.1} parent=1 // pred_check_branch
      %85 = sbr.rel (0) target = $region45
    $region44: #{tpu_custom_call.1} parent=1 // pred_region
      _
    $region45: #{tpu_custom_call.1} parent=1 // pred_fallthru
      _
    // Predicated region
    $region46: #{tpu_custom_call.1} parent=1 // pred_check
      _
    $region47: #{tpu_custom_call.1} parent=1 // pred_check_branch
      %87 = sbr.rel (0) target = $region49
    $region48: #{tpu_custom_call.1} parent=1 // pred_region
      %s89 = ssub.s32 2048, 2048
      %90 = vsyncadd [#allocation10], %s89
      %s91 = sshll.u32 [#allocation11], 4
      %s92 = int_to_ptr.vmem [resolvable:$true] %s91
      %97 = dma.hbm_to_vmem [thread:$0]  %s11, 2048, %s92, [#allocation10], 128, 128, 8
    $region49: #{tpu_custom_call.1} parent=1 // pred_fallthru
      _
    // Predicated region
    $region50: #{tpu_custom_call.1} parent=1 // pred_check
      _
    $region51: #{tpu_custom_call.1} parent=1 // pred_check_branch
      %99 = sbr.rel (0) target = $region53
    $region52: #{tpu_custom_call.1} parent=1 // pred_region
      %s101 = ssub.s32 2048, 2048
      %102 = vsyncadd [#allocation13], %s101
      %s103 = sshll.u32 [#allocation12], 4
      %s104 = int_to_ptr.vmem [resolvable:$true] %s103
      %109 = dma.hbm_to_vmem [thread:$0]  %s12, 2048, %s104, [#allocation13], 128, 128, 8
    $region53: #{tpu_custom_call.1} parent=1 // pred_fallthru
      _
    // Predicated region
    $region54: #{tpu_custom_call.1} parent=1 // pred_check
      _
    $region55: #{tpu_custom_call.1} parent=1 // pred_check_branch
      %111 = sbr.rel (0) target = $region57
    $region56: #{tpu_custom_call.1} parent=1 // pred_region
      _
    $region57: #{tpu_custom_call.1} parent=1 // pred_fallthru
      _
    // Predicated region
    $region58: #{tpu_custom_call.1} parent=1 // pred_check
      _
    $region59: #{tpu_custom_call.1} parent=1 // pred_check_branch
      %113 = sbr.rel (0) target = $region61
    $region60: #{tpu_custom_call.1} parent=1 // pred_region
      %114 = dma.done [#allocation4], 1536
    $region61: #{tpu_custom_call.1} parent=1 // pred_fallthru
      _
    // Predicated region
    $region62: #{tpu_custom_call.1} parent=1 // pred_check
      _
    $region63: #{tpu_custom_call.1} parent=1 // pred_check_branch
      %116 = sbr.rel (0) target = $region65
    $region64: #{tpu_custom_call.1} parent=1 // pred_region
      %117 = dma.done [#allocation7], 6144
    $region65: #{tpu_custom_call.1} parent=1 // pred_fallthru
      _
    // Predicated region
    $region66: #{tpu_custom_call.1} parent=1 // pred_check
      _
    $region67: #{tpu_custom_call.1} parent=1 // pred_check_branch
      %119 = sbr.rel (0) target = $region69
    $region68: #{tpu_custom_call.1} parent=1 // pred_region
      %120 = dma.done [#allocation7], 6144
    $region69: #{tpu_custom_call.1} parent=1 // pred_fallthru
      _
    // Predicated region
    $region70: #{tpu_custom_call.1} parent=1 // pred_check
      _
    $region71: #{tpu_custom_call.1} parent=1 // pred_check_branch
      %122 = sbr.rel (0) target = $region73
    $region72: #{tpu_custom_call.1} parent=1 // pred_region
      %123 = dma.done [#allocation10], 6144
    $region73: #{tpu_custom_call.1} parent=1 // pred_fallthru
      _
    // Predicated region
    $region74: #{tpu_custom_call.1} parent=1 // pred_check
      _
    $region75: #{tpu_custom_call.1} parent=1 // pred_check_branch
      %125 = sbr.rel (0) target = $region77
    $region76: #{tpu_custom_call.1} parent=1 // pred_region
      %126 = dma.done [#allocation10], 2048
    $region77: #{tpu_custom_call.1} parent=1 // pred_fallthru
      _
    // Predicated region
    $region78: #{tpu_custom_call.1} parent=1 // pred_check
      _
    $region79: #{tpu_custom_call.1} parent=1 // pred_check_branch
      %128 = sbr.rel (0) target = $region81
    $region80: #{tpu_custom_call.1} parent=1 // pred_region
      %129 = dma.done [#allocation13], 2048
    $region81: #{tpu_custom_call.1} parent=1 // pred_fallthru
      _
    %v130 = vld [vmem:[%s0] sm:$0xff]
    %v131 = vld [vmem:[%s0 + $0x8] sm:$0xff]
    %v132 = vld [vmem:[%s0 + $0x10] sm:$0xff]
    %v133 = vld [vmem:[%s0 + $0x18] sm:$0xff]
    %v134 = vld [vmem:[%s0 + $0x20] sm:$0xff]
    %v135 = vld [vmem:[%s0 + $0x28] sm:$0xff]
    %v136 = vld [vmem:[%s0 + $0x30] sm:$0xff]
    %v137 = vld [vmem:[%s0 + $0x38] sm:$0xff]
    %v138 = vld [vmem:[#allocation3] sm:$0xff]
    %v139 = vld [vmem:[#allocation3 + $0x8] sm:$0xff]
    %v140 = vld [vmem:[#allocation3 + $0x10] sm:$0xff]
    %v141 = vld [vmem:[#allocation3 + $0x18] sm:$0xff]
    %v142 = vld [vmem:[#allocation3 + $0x20] sm:$0xff]
    %v143 = vld [vmem:[#allocation3 + $0x28] sm:$0xff]
    %v144 = vld [vmem:[#allocation3 + $0x30] sm:$0xff]
    %v145 = vld [vmem:[#allocation3 + $0x38] sm:$0xff]
    %v146 = vld [vmem:[#allocation3 + $0x40] sm:$0xff]
    %v147 = vld [vmem:[#allocation3 + $0x48] sm:$0xff]
    %v148 = vld [vmem:[#allocation3 + $0x50] sm:$0xff]
    %v149 = vld [vmem:[#allocation3 + $0x58] sm:$0xff]
    %v150 = vld [vmem:[%s3] sm:$0x7]
    %v152 = vlaneseq
    %v153 = vshrl.u32 %v152, 7
    %v154 = vsub.s32 0, %v153
    %v155 = vrot.slane %v150, %v154
    %v156 = vlaneseq
    %v157 = vshrl.u32 %v156, 7
    %v158 = vsub.s32 1, %v157
    %v159 = vrot.slane %v150, %v158
    %v160 = vlaneseq
    %v161 = vshrl.u32 %v160, 7
    %v162 = vsub.s32 2, %v161
    %v163 = vrot.slane %v150, %v162
    %vm167 = vcmask 261120
    %v169 = vsel %vm167, %v130, 0
    %v172 = vsel %vm167, %v131, 0
    %v175 = vsel %vm167, %v132, 0
    %v178 = vsel %vm167, %v133, 0
    %v181 = vsel %vm167, %v134, 0
    %v184 = vsel %vm167, %v135, 0
    %v187 = vsel %vm167, %v136, 0
    %v190 = vsel %vm167, %v137, 0
    %192 = vmatprep.subr.mxu0 %v139
    %193 = vmatpush1.msra.mxu0 %v138
    %194 = vmatprep.subr.mxu0 %v142
    %195 = vmatpush1.msra.mxu0 %v141
    %196 = vmatprep.subr.mxu0 %v145
    %197 = vmatpush1.msra.mxu0 %v144
    %198 = vmatprep.subr.mxu0 %v148
    %199 = vmatpush1.msra.mxu0 %v147
    %200 = vmatprep.subr.mxu0 0.0
    %201 = vmatpush1.msra.mxu0 0.0
    %202 = vmatprep.subr.mxu0 0.0
    %203 = vmatpush1.msra.mxu0 0.0
    %204 = vmatprep.subr.mxu0 0.0
    %205 = vmatpush1.msra.mxu0 0.0
    %206 = vmatprep.subr.mxu0 0.0
    %207 = vmatpush1.msra.mxu0 0.0
    %208 = vmatprep.subr.mxu0 0.0
    %209 = vmatpush1.msra.mxu0 0.0
    %210 = vmatprep.subr.mxu0 0.0
    %211 = vmatpush1.msra.mxu0 0.0
    %212 = vmatprep.subr.mxu0 0.0
    %213 = vmatpush1.msra.mxu0 0.0
    %214 = vmatprep.subr.mxu0 0.0
    %215 = vmatpush1.msra.mxu0 0.0
    %216 = vmatprep.subr.mxu0 0.0
    %217 = vmatpush1.msra.mxu0 0.0
    %218 = vmatprep.subr.mxu0 0.0
    %219 = vmatpush1.msra.mxu0 0.0
    %220 = vmatprep.subr.mxu0 0.0
    %221 = vmatpush1.msra.mxu0 0.0
    %222 = vmatprep.subr.mxu0 0.0
    %223 = vmatpush1.msra.mxu0 0.0
    %224 = vmatprep.subr.mxu0 0.0
    %225 = vmatpush1.msra.mxu0 0.0
    %226 = vmatprep.subr.mxu0 0.0
    %227 = vmatpush1.msra.mxu0 0.0
    %228 = vmatprep.subr.mxu0 0.0
    %229 = vmatpush1.msra.mxu0 0.0
    %230 = vmatprep.subr.mxu0 0.0
    %231 = vmatpush1.msra.mxu0 0.0
    %232 = vmatprep.subr.mxu0 0.0
    %233 = vmatpush1.msra.mxu0 0.0
    %234 = vmatprep.subr.mxu0 0.0
    %235 = vmatpush1.msra.mxu0 0.0
    %236 = vmatprep.subr.mxu0 0.0
    %237 = vmatpush1.msra.mxu0 0.0
    %238 = vmatprep.subr.mxu0 0.0
    %239 = vmatpush1.msra.mxu0 0.0
    %240 = vmatprep.subr.mxu0 0.0
    %241 = vmatpush1.msra.mxu0 0.0
    %242 = vmatprep.subr.mxu0 0.0
    %243 = vmatpush1.msra.mxu0 0.0
    %244 = vmatprep.subr.mxu0 0.0
    %245 = vmatpush1.msra.mxu0 0.0
    %246 = vmatprep.subr.mxu0 0.0
    %247 = vmatpush1.msra.mxu0 0.0
    %248 = vmatprep.subr.mxu0 0.0
    %249 = vmatpush1.msra.mxu0 0.0
    %250 = vmatprep.subr.mxu0 0.0
    %251 = vmatpush1.msra.mxu0 0.0
    %252 = vmatprep.subr.mxu0 0.0
    %253 = vmatpush1.msra.mxu0 0.0
    %254 = vmatprep.subr.mxu0 0.0
    %255 = vmatpush1.msra.mxu0 0.0
    %256 = vmatprep.mubr.f32.mxu0 0.0
    %257 = vmatmul.mubr.f32.gmra.mrb[0].mxu0 %v169
    %v258 = vpop.f32.mrb[0].mxu0
    %v259 = vadd.f32 %v155, %v258
    %v260 = vpop.f32.mrb[0].mxu0
    %v261 = vadd.f32 %v159, %v260
    %262 = vmatprep.mubr.f32.mxu0 0.0
    %263 = vmatmul.mubr.f32.gmra.mrb[0].mxu0 %v172
    %v264 = vpop.f32.mrb[0].mxu0
    %v265 = vadd.f32 %v155, %v264
    %v266 = vpop.f32.mrb[0].mxu0
    %v267 = vadd.f32 %v159, %v266
    %268 = vmatprep.mubr.f32.mxu0 0.0
    %269 = vmatmul.mubr.f32.gmra.mrb[0].mxu0 %v175
    %v270 = vpop.f32.mrb[0].mxu0
    %v271 = vadd.f32 %v155, %v270
    %v272 = vpop.f32.mrb[0].mxu0
    %v273 = vadd.f32 %v159, %v272
    %274 = vmatprep.mubr.f32.mxu0 0.0
    %275 = vmatmul.mubr.f32.gmra.mrb[0].mxu0 %v178
    %v276 = vpop.f32.mrb[0].mxu0
    %v277 = vadd.f32 %v155, %v276
    %v278 = vpop.f32.mrb[0].mxu0
    %v279 = vadd.f32 %v159, %v278
    %280 = vmatprep.mubr.f32.mxu0 0.0
    %281 = vmatmul.mubr.f32.gmra.mrb[0].mxu0 %v181
    %v282 = vpop.f32.mrb[0].mxu0
    %v283 = vadd.f32 %v155, %v282
    %v284 = vpop.f32.mrb[0].mxu0
    %v285 = vadd.f32 %v159, %v284
    %286 = vmatprep.mubr.f32.mxu0 0.0
    %287 = vmatmul.mubr.f32.gmra.mrb[0].mxu0 %v184
    %v288 = vpop.f32.mrb[0].mxu0
    %v289 = vadd.f32 %v155, %v288
    %v290 = vpop.f32.mrb[0].mxu0
    %v291 = vadd.f32 %v159, %v290
    %292 = vmatprep.mubr.f32.mxu0 0.0
    %293 = vmatmul.mubr.f32.gmra.mrb[0].mxu0 %v187
    %v294 = vpop.f32.mrb[0].mxu0
    %v295 = vadd.f32 %v155, %v294
    %v296 = vpop.f32.mrb[0].mxu0
    %v297 = vadd.f32 %v159, %v296
    %298 = vmatprep.mubr.f32.mxu0 0.0
    %299 = vmatmul.mubr.f32.gmra.mrb[0].mxu0 %v190
    %v300 = vpop.f32.mrb[0].mxu0
    %v301 = vadd.f32 %v155, %v300
    %v302 = vpop.f32.mrb[0].mxu0
    %v303 = vadd.f32 %v159, %v302
    %304 = vdwg.mxu0
    %305 = vmatprep.subr.mxu0 0.0
    %306 = vmatpush1.msra.mxu0 %v140
    %307 = vmatprep.subr.mxu0 0.0
    %308 = vmatpush1.msra.mxu0 %v143
    %309 = vmatprep.subr.mxu0 0.0
    %310 = vmatpush1.msra.mxu0 %v146
    %311 = vmatprep.subr.mxu0 0.0
    %312 = vmatpush1.msra.mxu0 %v149
    %313 = vmatprep.subr.mxu0 0.0
    %314 = vmatpush1.msra.mxu0 0.0
    %315 = vmatprep.subr.mxu0 0.0
    %316 = vmatpush1.msra.mxu0 0.0
    %317 = vmatprep.subr.mxu0 0.0
    %318 = vmatpush1.msra.mxu0 0.0
    %319 = vmatprep.subr.mxu0 0.0
    %320 = vmatpush1.msra.mxu0 0.0
    %321 = vmatprep.subr.mxu0 0.0
    %322 = vmatpush1.msra.mxu0 0.0
    %323 = vmatprep.subr.mxu0 0.0
    %324 = vmatpush1.msra.mxu0 0.0
    %325 = vmatprep.subr.mxu0 0.0
    %326 = vmatpush1.msra.mxu0 0.0
    %327 = vmatprep.subr.mxu0 0.0
    %328 = vmatpush1.msra.mxu0 0.0
    %329 = vmatprep.subr.mxu0 0.0
    %330 = vmatpush1.msra.mxu0 0.0
    %331 = vmatprep.subr.mxu0 0.0
    %332 = vmatpush1.msra.mxu0 0.0
    %333 = vmatprep.subr.mxu0 0.0
    %334 = vmatpush1.msra.mxu0 0.0
    %335 = vmatprep.subr.mxu0 0.0
    %336 = vmatpush1.msra.mxu0 0.0
    %337 = vmatprep.subr.mxu0 0.0
    %338 = vmatpush1.msra.mxu0 0.0
    %339 = vmatprep.subr.mxu0 0.0
    %340 = vmatpush1.msra.mxu0 0.0
    %341 = vmatprep.subr.mxu0 0.0
    %342 = vmatpush1.msra.mxu0 0.0
    %343 = vmatprep.subr.mxu0 0.0
    %344 = vmatpush1.msra.mxu0 0.0
    %345 = vmatprep.subr.mxu0 0.0
    %346 = vmatpush1.msra.mxu0 0.0
    %347 = vmatprep.subr.mxu0 0.0
    %348 = vmatpush1.msra.mxu0 0.0
    %349 = vmatprep.subr.mxu0 0.0
    %350 = vmatpush1.msra.mxu0 0.0
    %351 = vmatprep.subr.mxu0 0.0
    %352 = vmatpush1.msra.mxu0 0.0
    %353 = vmatprep.subr.mxu0 0.0
    %354 = vmatpush1.msra.mxu0 0.0
    %355 = vmatprep.subr.mxu0 0.0
    %356 = vmatpush1.msra.mxu0 0.0
    %357 = vmatprep.subr.mxu0 0.0
    %358 = vmatpush1.msra.mxu0 0.0
    %359 = vmatprep.subr.mxu0 0.0
    %360 = vmatpush1.msra.mxu0 0.0
    %361 = vmatprep.subr.mxu0 0.0
    %362 = vmatpush1.msra.mxu0 0.0
    %363 = vmatprep.subr.mxu0 0.0
    %364 = vmatpush1.msra.mxu0 0.0
    %365 = vmatprep.subr.mxu0 0.0
    %366 = vmatpush1.msra.mxu0 0.0
    %367 = vmatprep.subr.mxu0 0.0
    %368 = vmatpush1.msra.mxu0 0.0
    %369 = vmatprep.mubr.f32.mxu0 0.0
    %370 = vmatmul.mubr.f32.gmra.mrb[0].mxu0 %v169
    %v371 = vpop.f32.mrb[0].mxu0
    %v372 = vadd.f32 %v163, %v371
    %v373 = vpop.f32.mrb[0].mxu0
    %374 = vmatprep.mubr.f32.mxu0 0.0
    %375 = vmatmul.mubr.f32.gmra.mrb[0].mxu0 %v172
    %v376 = vpop.f32.mrb[0].mxu0
    %v377 = vadd.f32 %v163, %v376
    %v378 = vpop.f32.mrb[0].mxu0
    %379 = vmatprep.mubr.f32.mxu0 0.0
    %380 = vmatmul.mubr.f32.gmra.mrb[0].mxu0 %v175
    %v381 = vpop.f32.mrb[0].mxu0
    %v382 = vadd.f32 %v163, %v381
    %v383 = vpop.f32.mrb[0].mxu0
    %384 = vmatprep.mubr.f32.mxu0 0.0
    %385 = vmatmul.mubr.f32.gmra.mrb[0].mxu0 %v178
    %v386 = vpop.f32.mrb[0].mxu0
    %v387 = vadd.f32 %v163, %v386
    %v388 = vpop.f32.mrb[0].mxu0
    %389 = vmatprep.mubr.f32.mxu0 0.0
    %390 = vmatmul.mubr.f32.gmra.mrb[0].mxu0 %v181
    %v391 = vpop.f32.mrb[0].mxu0
    %v392 = vadd.f32 %v163, %v391
    %v393 = vpop.f32.mrb[0].mxu0
    %394 = vmatprep.mubr.f32.mxu0 0.0
    %395 = vmatmul.mubr.f32.gmra.mrb[0].mxu0 %v184
    %v396 = vpop.f32.mrb[0].mxu0
    %v397 = vadd.f32 %v163, %v396
    %v398 = vpop.f32.mrb[0].mxu0
    %399 = vmatprep.mubr.f32.mxu0 0.0
    %400 = vmatmul.mubr.f32.gmra.mrb[0].mxu0 %v187
    %v401 = vpop.f32.mrb[0].mxu0
    %v402 = vadd.f32 %v163, %v401
    %v403 = vpop.f32.mrb[0].mxu0
    %404 = vmatprep.mubr.f32.mxu0 0.0
    %405 = vmatmul.mubr.f32.gmra.mrb[0].mxu0 %v190
    %v406 = vpop.f32.mrb[0].mxu0
    %v407 = vadd.f32 %v163, %v406
    %v408 = vpop.f32.mrb[0].mxu0
    %409 = vdwg.mxu0
    %410 = vst [vmem:[#allocation2] sm:$0xff] %v259
    %411 = vst [vmem:[#allocation2 + $0x8] sm:$0xff] %v261
    %412 = vst [vmem:[#allocation2 + $0x10] sm:$0xff] %v372
    %413 = vst [vmem:[#allocation2 + $0x18] sm:$0xff] %v265
    %414 = vst [vmem:[#allocation2 + $0x20] sm:$0xff] %v267
    %415 = vst [vmem:[#allocation2 + $0x28] sm:$0xff] %v377
    %416 = vst [vmem:[#allocation2 + $0x30] sm:$0xff] %v271
    %417 = vst [vmem:[#allocation2 + $0x38] sm:$0xff] %v273
    %418 = vst [vmem:[#allocation2 + $0x40] sm:$0xff] %v382
    %419 = vst [vmem:[#allocation2 + $0x48] sm:$0xff] %v277
    %420 = vst [vmem:[#allocation2 + $0x50] sm:$0xff] %v279
    %421 = vst [vmem:[#allocation2 + $0x58] sm:$0xff] %v387
    %422 = vst [vmem:[#allocation2 + $0x60] sm:$0xff] %v283
    %423 = vst [vmem:[#allocation2 + $0x68] sm:$0xff] %v285
    %424 = vst [vmem:[#allocation2 + $0x70] sm:$0xff] %v392
    %425 = vst [vmem:[#allocation2 + $0x78] sm:$0xff] %v289
    %426 = vst [vmem:[#allocation2 + $0x80] sm:$0xff] %v291
    %427 = vst [vmem:[#allocation2 + $0x88] sm:$0xff] %v397
    %428 = vst [vmem:[#allocation2 + $0x90] sm:$0xff] %v295
    %429 = vst [vmem:[#allocation2 + $0x98] sm:$0xff] %v297
    %430 = vst [vmem:[#allocation2 + $0xa0] sm:$0xff] %v402
    %431 = vst [vmem:[#allocation2 + $0xa8] sm:$0xff] %v301
    %432 = vst [vmem:[#allocation2 + $0xb0] sm:$0xff] %v303
    %433 = vst [vmem:[#allocation2 + $0xb8] sm:$0xff] %v407
    %v434 = vld [vmem:[%s5] sm:$0x1]
    %v435 = vld [vmem:[%s8] sm:$0x7]
    %v436 = vld [vmem:[%s10] sm:$0x1]
    %v437 = vld [vmem:[%s1] sm:$0xff]
    %438 = vset.pattern.permute.xlu0 0
    %439 = vperm.xlu0 %438, %v437
    %v440 = vpop.permute.xlu0 %439
    %vm441 = vcmp.gt.s32.totalorder %v440, 0
    %s442 = smul.u32 0, 3
    %s443 = smul.addr %s442, 8
    %s444 = scalar_lea.vmem [#allocation2], %s443
    %v445 = vld [vmem:[%s444] sm:$0xff]
    %v446 = vld [vmem:[%s444 + $0x8] sm:$0xff]
    %v447 = vld [vmem:[%s444 + $0x10] sm:$0xff]
    %v448 = vld [vmem:[#allocation6] sm:$0xff]
    %v449 = vld [vmem:[#allocation6 + $0x8] sm:$0xff]
    %v450 = vld [vmem:[#allocation6 + $0x10] sm:$0xff]
    %v451 = vld [vmem:[#allocation6 + $0x18] sm:$0xff]
    %v452 = vld [vmem:[#allocation6 + $0x20] sm:$0xff]
    %v453 = vld [vmem:[#allocation6 + $0x28] sm:$0xff]
    %v454 = vld [vmem:[#allocation6 + $0x30] sm:$0xff]
    %v455 = vld [vmem:[#allocation6 + $0x38] sm:$0xff]
    %v456 = vld [vmem:[#allocation6 + $0x40] sm:$0xff]
    %v457 = vld [vmem:[#allocation6 + $0x48] sm:$0xff]
    %v458 = vld [vmem:[#allocation6 + $0x50] sm:$0xff]
    %v459 = vld [vmem:[#allocation6 + $0x58] sm:$0xff]
    %v460 = vld [vmem:[#allocation6 + $0x60] sm:$0xff]
    %v461 = vld [vmem:[#allocation6 + $0x68] sm:$0xff]
    %v462 = vld [vmem:[#allocation6 + $0x70] sm:$0xff]
    %v463 = vld [vmem:[#allocation6 + $0x78] sm:$0xff]
    %v464 = vld [vmem:[#allocation6 + $0x80] sm:$0xff]
    %v465 = vld [vmem:[#allocation6 + $0x88] sm:$0xff]
    %v466 = vld [vmem:[#allocation6 + $0x90] sm:$0xff]
    %v467 = vld [vmem:[#allocation6 + $0x98] sm:$0xff]
    %v468 = vld [vmem:[#allocation6 + $0xa0] sm:$0xff]
    %v469 = vld [vmem:[#allocation6 + $0xa8] sm:$0xff]
    %v470 = vld [vmem:[#allocation6 + $0xb0] sm:$0xff]
    %v471 = vld [vmem:[#allocation6 + $0xb8] sm:$0xff]
    %v472 = vld [vmem:[#allocation6 + $0xc0] sm:$0xff]
    %v473 = vld [vmem:[#allocation6 + $0xc8] sm:$0xff]
    %v474 = vld [vmem:[#allocation6 + $0xd0] sm:$0xff]
    %v475 = vld [vmem:[#allocation6 + $0xd8] sm:$0xff]
    %v476 = vld [vmem:[#allocation6 + $0xe0] sm:$0xff]
    %v477 = vld [vmem:[#allocation6 + $0xe8] sm:$0xff]
    %v478 = vld [vmem:[#allocation6 + $0xf0] sm:$0xff]
    %v479 = vld [vmem:[#allocation6 + $0xf8] sm:$0xff]
    %v480 = vld [vmem:[#allocation6 + $0x100] sm:$0xff]
    %v481 = vld [vmem:[#allocation6 + $0x108] sm:$0xff]
    %v482 = vld [vmem:[#allocation6 + $0x110] sm:$0xff]
    %v483 = vld [vmem:[#allocation6 + $0x118] sm:$0xff]
    %v484 = vld [vmem:[#allocation6 + $0x120] sm:$0xff]
    %v485 = vld [vmem:[#allocation6 + $0x128] sm:$0xff]
    %v486 = vld [vmem:[#allocation6 + $0x130] sm:$0xff]
    %v487 = vld [vmem:[#allocation6 + $0x138] sm:$0xff]
    %v488 = vld [vmem:[#allocation6 + $0x140] sm:$0xff]
    %v489 = vld [vmem:[#allocation6 + $0x148] sm:$0xff]
    %v490 = vld [vmem:[#allocation6 + $0x150] sm:$0xff]
    %v491 = vld [vmem:[#allocation6 + $0x158] sm:$0xff]
    %v492 = vld [vmem:[#allocation6 + $0x160] sm:$0xff]
    %v493 = vld [vmem:[#allocation6 + $0x168] sm:$0xff]
    %v494 = vld [vmem:[#allocation6 + $0x170] sm:$0xff]
    %v495 = vld [vmem:[#allocation6 + $0x178] sm:$0xff]
    %496 = vmatprep.subr.mxu0 %v449
    %497 = vmatpush1.msra.mxu0 %v448
    %498 = vmatprep.subr.mxu0 %v452
    %499 = vmatpush1.msra.mxu0 %v451
    %500 = vmatprep.subr.mxu0 %v455
    %501 = vmatpush1.msra.mxu0 %v454
    %502 = vmatprep.subr.mxu0 %v458
    %503 = vmatpush1.msra.mxu0 %v457
    %504 = vmatprep.subr.mxu0 %v461
    %505 = vmatpush1.msra.mxu0 %v460
    %506 = vmatprep.subr.mxu0 %v464
    %507 = vmatpush1.msra.mxu0 %v463
    %508 = vmatprep.subr.mxu0 %v467
    %509 = vmatpush1.msra.mxu0 %v466
    %510 = vmatprep.subr.mxu0 %v470
    %511 = vmatpush1.msra.mxu0 %v469
    %512 = vmatprep.subr.mxu0 %v473
    %513 = vmatpush1.msra.mxu0 %v472
    %514 = vmatprep.subr.mxu0 %v476
    %515 = vmatpush1.msra.mxu0 %v475
    %516 = vmatprep.subr.mxu0 %v479
    %517 = vmatpush1.msra.mxu0 %v478
    %518 = vmatprep.subr.mxu0 %v482
    %519 = vmatpush1.msra.mxu0 %v481
    %520 = vmatprep.subr.mxu0 %v485
    %521 = vmatpush1.msra.mxu0 %v484
    %522 = vmatprep.subr.mxu0 %v488
    %523 = vmatpush1.msra.mxu0 %v487
    %524 = vmatprep.subr.mxu0 %v491
    %525 = vmatpush1.msra.mxu0 %v490
    %526 = vmatprep.subr.mxu0 %v494
    %527 = vmatpush1.msra.mxu0 %v493
    %528 = vmatprep.subr.mxu0 0.0
    %529 = vmatpush1.msra.mxu0 0.0
    %530 = vmatprep.subr.mxu0 0.0
    %531 = vmatpush1.msra.mxu0 0.0
    %532 = vmatprep.subr.mxu0 0.0
    %533 = vmatpush1.msra.mxu0 0.0
    %534 = vmatprep.subr.mxu0 0.0
    %535 = vmatpush1.msra.mxu0 0.0
    %536 = vmatprep.subr.mxu0 0.0
    %537 = vmatpush1.msra.mxu0 0.0
    %538 = vmatprep.subr.mxu0 0.0
    %539 = vmatpush1.msra.mxu0 0.0
    %540 = vmatprep.subr.mxu0 0.0
    %541 = vmatpush1.msra.mxu0 0.0
    %542 = vmatprep.subr.mxu0 0.0
    %543 = vmatpush1.msra.mxu0 0.0
    %544 = vmatprep.subr.mxu0 0.0
    %545 = vmatpush1.msra.mxu0 0.0
    %546 = vmatprep.subr.mxu0 0.0
    %547 = vmatpush1.msra.mxu0 0.0
    %548 = vmatprep.subr.mxu0 0.0
    %549 = vmatpush1.msra.mxu0 0.0
    %550 = vmatprep.subr.mxu0 0.0
    %551 = vmatpush1.msra.mxu0 0.0
    %552 = vmatprep.subr.mxu0 0.0
    %553 = vmatpush1.msra.mxu0 0.0
    %554 = vmatprep.subr.mxu0 0.0
    %555 = vmatpush1.msra.mxu0 0.0
    %556 = vmatprep.subr.mxu0 0.0
    %557 = vmatpush1.msra.mxu0 0.0
    %558 = vmatprep.subr.mxu0 0.0
    %559 = vmatpush1.msra.mxu0 0.0
    %560 = vmatprep.mubr.f32.mxu0 0.0
    %561 = vmatmul.mubr.f32.gmra.mrb[0].mxu0 0.0
    %v562 = vpop.f32.mrb[0].mxu0
    %v563 = vadd.f32 0.0, %v562
    %v564 = vpop.f32.mrb[0].mxu0
    %v565 = vadd.f32 0.0, %v564
    %566 = vdwg.mxu0
    %567 = vmatprep.subr.mxu0 0.0
    %568 = vmatpush1.msra.mxu0 %v450
    %569 = vmatprep.subr.mxu0 0.0
    %570 = vmatpush1.msra.mxu0 %v453
    %571 = vmatprep.subr.mxu0 0.0
    %572 = vmatpush1.msra.mxu0 %v456
    %573 = vmatprep.subr.mxu0 0.0
    %574 = vmatpush1.msra.mxu0 %v459
    %575 = vmatprep.subr.mxu0 0.0
    %576 = vmatpush1.msra.mxu0 %v462
    %577 = vmatprep.subr.mxu0 0.0
    %578 = vmatpush1.msra.mxu0 %v465
    %579 = vmatprep.subr.mxu0 0.0
    %580 = vmatpush1.msra.mxu0 %v468
    %581 = vmatprep.subr.mxu0 0.0
    %582 = vmatpush1.msra.mxu0 %v471
    %583 = vmatprep.subr.mxu0 0.0
    %584 = vmatpush1.msra.mxu0 %v474
    %585 = vmatprep.subr.mxu0 0.0
    %586 = vmatpush1.msra.mxu0 %v477
    %587 = vmatprep.subr.mxu0 0.0
    %588 = vmatpush1.msra.mxu0 %v480
    %589 = vmatprep.subr.mxu0 0.0
    %590 = vmatpush1.msra.mxu0 %v483
    %591 = vmatprep.subr.mxu0 0.0
    %592 = vmatpush1.msra.mxu0 %v486
    %593 = vmatprep.subr.mxu0 0.0
    %594 = vmatpush1.msra.mxu0 %v489
    %595 = vmatprep.subr.mxu0 0.0
    %596 = vmatpush1.msra.mxu0 %v492
    %597 = vmatprep.subr.mxu0 0.0
    %598 = vmatpush1.msra.mxu0 %v495
    %599 = vmatprep.subr.mxu0 0.0
    %600 = vmatpush1.msra.mxu0 0.0
    %601 = vmatprep.subr.mxu0 0.0
    %602 = vmatpush1.msra.mxu0 0.0
    %603 = vmatprep.subr.mxu0 0.0
    %604 = vmatpush1.msra.mxu0 0.0
    %605 = vmatprep.subr.mxu0 0.0
    %606 = vmatpush1.msra.mxu0 0.0
    %607 = vmatprep.subr.mxu0 0.0
    %608 = vmatpush1.msra.mxu0 0.0
    %609 = vmatprep.subr.mxu0 0.0
    %610 = vmatpush1.msra.mxu0 0.0
    %611 = vmatprep.subr.mxu0 0.0
    %612 = vmatpush1.msra.mxu0 0.0
    %613 = vmatprep.subr.mxu0 0.0
    %614 = vmatpush1.msra.mxu0 0.0
    %615 = vmatprep.subr.mxu0 0.0
    %616 = vmatpush1.msra.mxu0 0.0
    %617 = vmatprep.subr.mxu0 0.0
    %618 = vmatpush1.msra.mxu0 0.0
    %619 = vmatprep.subr.mxu0 0.0
    %620 = vmatpush1.msra.mxu0 0.0
    %621 = vmatprep.subr.mxu0 0.0
    %622 = vmatpush1.msra.mxu0 0.0
    %623 = vmatprep.subr.mxu0 0.0
    %624 = vmatpush1.msra.mxu0 0.0
    %625 = vmatprep.subr.mxu0 0.0
    %626 = vmatpush1.msra.mxu0 0.0
    %627 = vmatprep.subr.mxu0 0.0
    %628 = vmatpush1.msra.mxu0 0.0
    %629 = vmatprep.subr.mxu0 0.0
    %630 = vmatpush1.msra.mxu0 0.0
    %631 = vmatprep.mubr.f32.mxu0 0.0
    %632 = vmatmul.mubr.f32.gmra.mrb[0].mxu0 0.0
    %v633 = vpop.f32.mrb[0].mxu0
    %v634 = vadd.f32 0.0, %v633
    %v635 = vpop.f32.mrb[0].mxu0
    %636 = vdwg.mxu0
    %v637 = vadd.f32 %v445, %v563
    %v638 = vadd.f32 %v446, %v565
    %v639 = vxor.u32 %v637, 2147483648
    %v640 = vxor.u32 %v638, 2147483648
    %v641 = vmul.f32 %v639, 1.442695
    %v642 = vpow.pop %v641
    %v643 = vmul.f32 %v640, 1.442695
    %v644 = vpow.pop %v643
    %v645 = vadd.f32 %v642, 1.0
    %v646 = vadd.f32 %v644, 1.0
    %v647 = vrcp.pop %v645
    %v648 = vmul.f32 1.0, %v647
    %v649 = vrcp.pop %v646
    %v650 = vmul.f32 1.0, %v649
    %v652 = vlaneseq
    %v653 = vshrl.u32 %v652, 7
    %v654 = vsub.s32 0, %v653
    %v655 = vrot.slane %v434, %v654
    %v657 = vadd.f32 %v634, %v655
    %v658 = vmul.f32 %v648, %v657
    %v659 = vadd.f32 %v447, %v658
    %v660 = vtanh.pop %v659
    %v661 = vsub.f32 1.0, %v650
    %v662 = vmul.f32 %v661, %v660
    %v663 = vmul.f32 %v650, 0.0
    %v664 = vadd.f32 %v662, %v663
    %v665 = vsel %vm441, %v664, 0.0
    %v666 = vld [vmem:[#allocation8] sm:$0xff]
    %v667 = vld [vmem:[#allocation8 + $0x8] sm:$0xff]
    %v668 = vld [vmem:[#allocation8 + $0x10] sm:$0xff]
    %v669 = vld [vmem:[#allocation8 + $0x18] sm:$0xff]
    %v670 = vld [vmem:[#allocation8 + $0x20] sm:$0xff]
    %v671 = vld [vmem:[#allocation8 + $0x28] sm:$0xff]
    %v672 = vld [vmem:[#allocation8 + $0x30] sm:$0xff]
    %v673 = vld [vmem:[#allocation8 + $0x38] sm:$0xff]
    %v674 = vld [vmem:[#allocation8 + $0x40] sm:$0xff]
    %v675 = vld [vmem:[#allocation8 + $0x48] sm:$0xff]
    %v676 = vld [vmem:[#allocation8 + $0x50] sm:$0xff]
    %v677 = vld [vmem:[#allocation8 + $0x58] sm:$0xff]
    %v678 = vld [vmem:[#allocation8 + $0x60] sm:$0xff]
    %v679 = vld [vmem:[#allocation8 + $0x68] sm:$0xff]
    %v680 = vld [vmem:[#allocation8 + $0x70] sm:$0xff]
    %v681 = vld [vmem:[#allocation8 + $0x78] sm:$0xff]
    %v682 = vld [vmem:[#allocation8 + $0x80] sm:$0xff]
    %v683 = vld [vmem:[#allocation8 + $0x88] sm:$0xff]
    %v684 = vld [vmem:[#allocation8 + $0x90] sm:$0xff]
    %v685 = vld [vmem:[#allocation8 + $0x98] sm:$0xff]
    %v686 = vld [vmem:[#allocation8 + $0xa0] sm:$0xff]
    %v687 = vld [vmem:[#allocation8 + $0xa8] sm:$0xff]
    %v688 = vld [vmem:[#allocation8 + $0xb0] sm:$0xff]
    %v689 = vld [vmem:[#allocation8 + $0xb8] sm:$0xff]
    %v690 = vld [vmem:[#allocation8 + $0xc0] sm:$0xff]
    %v691 = vld [vmem:[#allocation8 + $0xc8] sm:$0xff]
    %v692 = vld [vmem:[#allocation8 + $0xd0] sm:$0xff]
    %v693 = vld [vmem:[#allocation8 + $0xd8] sm:$0xff]
    %v694 = vld [vmem:[#allocation8 + $0xe0] sm:$0xff]
    %v695 = vld [vmem:[#allocation8 + $0xe8] sm:$0xff]
    %v696 = vld [vmem:[#allocation8 + $0xf0] sm:$0xff]
    %v697 = vld [vmem:[#allocation8 + $0xf8] sm:$0xff]
    %v698 = vld [vmem:[#allocation8 + $0x100] sm:$0xff]
    %v699 = vld [vmem:[#allocation8 + $0x108] sm:$0xff]
    %v700 = vld [vmem:[#allocation8 + $0x110] sm:$0xff]
    %v701 = vld [vmem:[#allocation8 + $0x118] sm:$0xff]
    %v702 = vld [vmem:[#allocation8 + $0x120] sm:$0xff]
    %v703 = vld [vmem:[#allocation8 + $0x128] sm:$0xff]
    %v704 = vld [vmem:[#allocation8 + $0x130] sm:$0xff]
    %v705 = vld [vmem:[#allocation8 + $0x138] sm:$0xff]
    %v706 = vld [vmem:[#allocation8 + $0x140] sm:$0xff]
    %v707 = vld [vmem:[#allocation8 + $0x148] sm:$0xff]
    %v708 = vld [vmem:[#allocation8 + $0x150] sm:$0xff]
    %v709 = vld [vmem:[#allocation8 + $0x158] sm:$0xff]
    %v710 = vld [vmem:[#allocation8 + $0x160] sm:$0xff]
    %v711 = vld [vmem:[#allocation8 + $0x168] sm:$0xff]
    %v712 = vld [vmem:[#allocation8 + $0x170] sm:$0xff]
    %v713 = vld [vmem:[#allocation8 + $0x178] sm:$0xff]
    %v714 = vld [vmem:[#allocation9] sm:$0xff]
    %v715 = vld [vmem:[#allocation9 + $0x8] sm:$0xff]
    %v716 = vld [vmem:[#allocation9 + $0x10] sm:$0xff]
    %v717 = vld [vmem:[#allocation9 + $0x18] sm:$0xff]
    %v718 = vld [vmem:[#allocation9 + $0x20] sm:$0xff]
    %v719 = vld [vmem:[#allocation9 + $0x28] sm:$0xff]
    %v720 = vld [vmem:[#allocation9 + $0x30] sm:$0xff]
    %v721 = vld [vmem:[#allocation9 + $0x38] sm:$0xff]
    %v722 = vld [vmem:[#allocation9 + $0x40] sm:$0xff]
    %v723 = vld [vmem:[#allocation9 + $0x48] sm:$0xff]
    %v724 = vld [vmem:[#allocation9 + $0x50] sm:$0xff]
    %v725 = vld [vmem:[#allocation9 + $0x58] sm:$0xff]
    %v726 = vld [vmem:[#allocation9 + $0x60] sm:$0xff]
    %v727 = vld [vmem:[#allocation9 + $0x68] sm:$0xff]
    %v728 = vld [vmem:[#allocation9 + $0x70] sm:$0xff]
    %v729 = vld [vmem:[#allocation9 + $0x78] sm:$0xff]
    %v730 = vld [vmem:[#allocation9 + $0x80] sm:$0xff]
    %v731 = vld [vmem:[#allocation9 + $0x88] sm:$0xff]
    %v732 = vld [vmem:[#allocation9 + $0x90] sm:$0xff]
    %v733 = vld [vmem:[#allocation9 + $0x98] sm:$0xff]
    %v734 = vld [vmem:[#allocation9 + $0xa0] sm:$0xff]
    %v735 = vld [vmem:[#allocation9 + $0xa8] sm:$0xff]
    %v736 = vld [vmem:[#allocation9 + $0xb0] sm:$0xff]
    %v737 = vld [vmem:[#allocation9 + $0xb8] sm:$0xff]
    %v738 = vld [vmem:[#allocation9 + $0xc0] sm:$0xff]
    %v739 = vld [vmem:[#allocation9 + $0xc8] sm:$0xff]
    %v740 = vld [vmem:[#allocation9 + $0xd0] sm:$0xff]
    %v741 = vld [vmem:[#allocation9 + $0xd8] sm:$0xff]
    %v742 = vld [vmem:[#allocation9 + $0xe0] sm:$0xff]
    %v743 = vld [vmem:[#allocation9 + $0xe8] sm:$0xff]
    %v744 = vld [vmem:[#allocation9 + $0xf0] sm:$0xff]
    %v745 = vld [vmem:[#allocation9 + $0xf8] sm:$0xff]
    %v746 = vld [vmem:[#allocation9 + $0x100] sm:$0xff]
    %v747 = vld [vmem:[#allocation9 + $0x108] sm:$0xff]
    %v748 = vld [vmem:[#allocation9 + $0x110] sm:$0xff]
    %v749 = vld [vmem:[#allocation9 + $0x118] sm:$0xff]
    %v750 = vld [vmem:[#allocation9 + $0x120] sm:$0xff]
    %v751 = vld [vmem:[#allocation9 + $0x128] sm:$0xff]
    %v752 = vld [vmem:[#allocation9 + $0x130] sm:$0xff]
    %v753 = vld [vmem:[#allocation9 + $0x138] sm:$0xff]
    %v754 = vld [vmem:[#allocation9 + $0x140] sm:$0xff]
    %v755 = vld [vmem:[#allocation9 + $0x148] sm:$0xff]
    %v756 = vld [vmem:[#allocation9 + $0x150] sm:$0xff]
    %v757 = vld [vmem:[#allocation9 + $0x158] sm:$0xff]
    %v758 = vld [vmem:[#allocation9 + $0x160] sm:$0xff]
    %v759 = vld [vmem:[#allocation9 + $0x168] sm:$0xff]
    %v760 = vld [vmem:[#allocation9 + $0x170] sm:$0xff]
    %v761 = vld [vmem:[#allocation9 + $0x178] sm:$0xff]
    %762 = vmatprep.subr.mxu0 %v715
    %763 = vmatpush1.msra.mxu0 %v714
    %764 = vmatprep.subr.mxu0 %v718
    %765 = vmatpush1.msra.mxu0 %v717
    %766 = vmatprep.subr.mxu0 %v721
    %767 = vmatpush1.msra.mxu0 %v720
    %768 = vmatprep.subr.mxu0 %v724
    %769 = vmatpush1.msra.mxu0 %v723
    %770 = vmatprep.subr.mxu0 %v727
    %771 = vmatpush1.msra.mxu0 %v726
    %772 = vmatprep.subr.mxu0 %v730
    %773 = vmatpush1.msra.mxu0 %v729
    %774 = vmatprep.subr.mxu0 %v733
    %775 = vmatpush1.msra.mxu0 %v732
    %776 = vmatprep.subr.mxu0 %v736
    %777 = vmatpush1.msra.mxu0 %v735
    %778 = vmatprep.subr.mxu0 %v739
    %779 = vmatpush1.msra.mxu0 %v738
    %780 = vmatprep.subr.mxu0 %v742
    %781 = vmatpush1.msra.mxu0 %v741
    %782 = vmatprep.subr.mxu0 %v745
    %783 = vmatpush1.msra.mxu0 %v744
    %784 = vmatprep.subr.mxu0 %v748
    %785 = vmatpush1.msra.mxu0 %v747
    %786 = vmatprep.subr.mxu0 %v751
    %787 = vmatpush1.msra.mxu0 %v750
    %788 = vmatprep.subr.mxu0 %v754
    %789 = vmatpush1.msra.mxu0 %v753
    %790 = vmatprep.subr.mxu0 %v757
    %791 = vmatpush1.msra.mxu0 %v756
    %792 = vmatprep.subr.mxu0 %v760
    %793 = vmatpush1.msra.mxu0 %v759
    %794 = vmatprep.subr.mxu0 0.0
    %795 = vmatpush1.msra.mxu0 0.0
    %796 = vmatprep.subr.mxu0 0.0
    %797 = vmatpush1.msra.mxu0 0.0
    %798 = vmatprep.subr.mxu0 0.0
    %799 = vmatpush1.msra.mxu0 0.0
    %800 = vmatprep.subr.mxu0 0.0
    %801 = vmatpush1.msra.mxu0 0.0
    %802 = vmatprep.subr.mxu0 0.0
    %803 = vmatpush1.msra.mxu0 0.0
    %804 = vmatprep.subr.mxu0 0.0
    %805 = vmatpush1.msra.mxu0 0.0
    %806 = vmatprep.subr.mxu0 0.0
    %807 = vmatpush1.msra.mxu0 0.0
    %808 = vmatprep.subr.mxu0 0.0
    %809 = vmatpush1.msra.mxu0 0.0
    %810 = vmatprep.subr.mxu0 0.0
    %811 = vmatpush1.msra.mxu0 0.0
    %812 = vmatprep.subr.mxu0 0.0
    %813 = vmatpush1.msra.mxu0 0.0
    %814 = vmatprep.subr.mxu0 0.0
    %815 = vmatpush1.msra.mxu0 0.0
    %816 = vmatprep.subr.mxu0 0.0
    %817 = vmatpush1.msra.mxu0 0.0
    %818 = vmatprep.subr.mxu0 0.0
    %819 = vmatpush1.msra.mxu0 0.0
    %820 = vmatprep.subr.mxu0 0.0
    %821 = vmatpush1.msra.mxu0 0.0
    %822 = vmatprep.subr.mxu0 0.0
    %823 = vmatpush1.msra.mxu0 0.0
    %824 = vmatprep.subr.mxu0 0.0
    %825 = vmatpush1.msra.mxu0 0.0
    %826 = vmatprep.mubr.f32.mxu0 0.0
    %827 = vmatmul.mubr.f32.gmra.mrb[0].mxu0 0.0
    %v828 = vpop.f32.mrb[0].mxu0
    %v829 = vadd.f32 0.0, %v828
    %v830 = vpop.f32.mrb[0].mxu0
    %v831 = vadd.f32 0.0, %v830
    %832 = vdwg.mxu0
    %833 = vmatprep.subr.mxu0 0.0
    %834 = vmatpush1.msra.mxu0 %v716
    %835 = vmatprep.subr.mxu0 0.0
    %836 = vmatpush1.msra.mxu0 %v719
    %837 = vmatprep.subr.mxu0 0.0
    %838 = vmatpush1.msra.mxu0 %v722
    %839 = vmatprep.subr.mxu0 0.0
    %840 = vmatpush1.msra.mxu0 %v725
    %841 = vmatprep.subr.mxu0 0.0
    %842 = vmatpush1.msra.mxu0 %v728
    %843 = vmatprep.subr.mxu0 0.0
    %844 = vmatpush1.msra.mxu0 %v731
    %845 = vmatprep.subr.mxu0 0.0
    %846 = vmatpush1.msra.mxu0 %v734
    %847 = vmatprep.subr.mxu0 0.0
    %848 = vmatpush1.msra.mxu0 %v737
    %849 = vmatprep.subr.mxu0 0.0
    %850 = vmatpush1.msra.mxu0 %v740
    %851 = vmatprep.subr.mxu0 0.0
    %852 = vmatpush1.msra.mxu0 %v743
    %853 = vmatprep.subr.mxu0 0.0
    %854 = vmatpush1.msra.mxu0 %v746
    %855 = vmatprep.subr.mxu0 0.0
    %856 = vmatpush1.msra.mxu0 %v749
    %857 = vmatprep.subr.mxu0 0.0
    %858 = vmatpush1.msra.mxu0 %v752
    %859 = vmatprep.subr.mxu0 0.0
    %860 = vmatpush1.msra.mxu0 %v755
    %861 = vmatprep.subr.mxu0 0.0
    %862 = vmatpush1.msra.mxu0 %v758
    %863 = vmatprep.subr.mxu0 0.0
    %864 = vmatpush1.msra.mxu0 %v761
    %865 = vmatprep.subr.mxu0 0.0
    %866 = vmatpush1.msra.mxu0 0.0
    %867 = vmatprep.subr.mxu0 0.0
    %868 = vmatpush1.msra.mxu0 0.0
    %869 = vmatprep.subr.mxu0 0.0
    %870 = vmatpush1.msra.mxu0 0.0
    %871 = vmatprep.subr.mxu0 0.0
    %872 = vmatpush1.msra.mxu0 0.0
    %873 = vmatprep.subr.mxu0 0.0
    %874 = vmatpush1.msra.mxu0 0.0
    %875 = vmatprep.subr.mxu0 0.0
    %876 = vmatpush1.msra.mxu0 0.0
    %877 = vmatprep.subr.mxu0 0.0
    %878 = vmatpush1.msra.mxu0 0.0
    %879 = vmatprep.subr.mxu0 0.0
    %880 = vmatpush1.msra.mxu0 0.0
    %881 = vmatprep.subr.mxu0 0.0
    %882 = vmatpush1.msra.mxu0 0.0
    %883 = vmatprep.subr.mxu0 0.0
    %884 = vmatpush1.msra.mxu0 0.0
    %885 = vmatprep.subr.mxu0 0.0
    %886 = vmatpush1.msra.mxu0 0.0
    %887 = vmatprep.subr.mxu0 0.0
    %888 = vmatpush1.msra.mxu0 0.0
    %889 = vmatprep.subr.mxu0 0.0
    %890 = vmatpush1.msra.mxu0 0.0
    %891 = vmatprep.subr.mxu0 0.0
    %892 = vmatpush1.msra.mxu0 0.0
    %893 = vmatprep.subr.mxu0 0.0
    %894 = vmatpush1.msra.mxu0 0.0
    %895 = vmatprep.subr.mxu0 0.0
    %896 = vmatpush1.msra.mxu0 0.0
    %897 = vmatprep.mubr.f32.mxu0 0.0
    %898 = vmatmul.mubr.f32.gmra.mrb[0].mxu0 0.0
    %v899 = vpop.f32.mrb[0].mxu0
    %v900 = vadd.f32 0.0, %v899
    %v901 = vpop.f32.mrb[0].mxu0
    %902 = vdwg.mxu0
    %903 = vmatprep.subr.mxu0 %v667
    %904 = vmatpush1.msra.mxu0 %v666
    %905 = vmatprep.subr.mxu0 %v670
    %906 = vmatpush1.msra.mxu0 %v669
    %907 = vmatprep.subr.mxu0 %v673
    %908 = vmatpush1.msra.mxu0 %v672
    %909 = vmatprep.subr.mxu0 %v676
    %910 = vmatpush1.msra.mxu0 %v675
    %911 = vmatprep.subr.mxu0 %v679
    %912 = vmatpush1.msra.mxu0 %v678
    %913 = vmatprep.subr.mxu0 %v682
    %914 = vmatpush1.msra.mxu0 %v681
    %915 = vmatprep.subr.mxu0 %v685
    %916 = vmatpush1.msra.mxu0 %v684
    %917 = vmatprep.subr.mxu0 %v688
    %918 = vmatpush1.msra.mxu0 %v687
    %919 = vmatprep.subr.mxu0 %v691
    %920 = vmatpush1.msra.mxu0 %v690
    %921 = vmatprep.subr.mxu0 %v694
    %922 = vmatpush1.msra.mxu0 %v693
    %923 = vmatprep.subr.mxu0 %v697
    %924 = vmatpush1.msra.mxu0 %v696
    %925 = vmatprep.subr.mxu0 %v700
    %926 = vmatpush1.msra.mxu0 %v699
    %927 = vmatprep.subr.mxu0 %v703
    %928 = vmatpush1.msra.mxu0 %v702
    %929 = vmatprep.subr.mxu0 %v706
    %930 = vmatpush1.msra.mxu0 %v705
    %931 = vmatprep.subr.mxu0 %v709
    %932 = vmatpush1.msra.mxu0 %v708
    %933 = vmatprep.subr.mxu0 %v712
    %934 = vmatpush1.msra.mxu0 %v711
    %935 = vmatprep.subr.mxu0 0.0
    %936 = vmatpush1.msra.mxu0 0.0
    %937 = vmatprep.subr.mxu0 0.0
    %938 = vmatpush1.msra.mxu0 0.0
    %939 = vmatprep.subr.mxu0 0.0
    %940 = vmatpush1.msra.mxu0 0.0
    %941 = vmatprep.subr.mxu0 0.0
    %942 = vmatpush1.msra.mxu0 0.0
    %943 = vmatprep.subr.mxu0 0.0
    %944 = vmatpush1.msra.mxu0 0.0
    %945 = vmatprep.subr.mxu0 0.0
    %946 = vmatpush1.msra.mxu0 0.0
    %947 = vmatprep.subr.mxu0 0.0
    %948 = vmatpush1.msra.mxu0 0.0
    %949 = vmatprep.subr.mxu0 0.0
    %950 = vmatpush1.msra.mxu0 0.0
    %951 = vmatprep.subr.mxu0 0.0
    %952 = vmatpush1.msra.mxu0 0.0
    %953 = vmatprep.subr.mxu0 0.0
    %954 = vmatpush1.msra.mxu0 0.0
    %955 = vmatprep.subr.mxu0 0.0
    %956 = vmatpush1.msra.mxu0 0.0
    %957 = vmatprep.subr.mxu0 0.0
    %958 = vmatpush1.msra.mxu0 0.0
    %959 = vmatprep.subr.mxu0 0.0
    %960 = vmatpush1.msra.mxu0 0.0
    %961 = vmatprep.subr.mxu0 0.0
    %962 = vmatpush1.msra.mxu0 0.0
    %963 = vmatprep.subr.mxu0 0.0
    %964 = vmatpush1.msra.mxu0 0.0
    %965 = vmatprep.subr.mxu0 0.0
    %966 = vmatpush1.msra.mxu0 0.0
    %967 = vmatprep.mubr.f32.mxu0 0.0
    %968 = vmatmul.mubr.f32.gmra.mrb[0].mxu0 %v665
    %v969 = vpop.f32.mrb[0].mxu0
    %v970 = vadd.f32 %v829, %v969
    %v971 = vpop.f32.mrb[0].mxu0
    %v972 = vadd.f32 %v831, %v971
    %973 = vdwg.mxu0
    %974 = vmatprep.subr.mxu0 0.0
    %975 = vmatpush1.msra.mxu0 %v668
    %976 = vmatprep.subr.mxu0 0.0
    %977 = vmatpush1.msra.mxu0 %v671
    %978 = vmatprep.subr.mxu0 0.0
    %979 = vmatpush1.msra.mxu0 %v674
    %980 = vmatprep.subr.mxu0 0.0
    %981 = vmatpush1.msra.mxu0 %v677
    %982 = vmatprep.subr.mxu0 0.0
    %983 = vmatpush1.msra.mxu0 %v680
    %984 = vmatprep.subr.mxu0 0.0
    %985 = vmatpush1.msra.mxu0 %v683
    %986 = vmatprep.subr.mxu0 0.0
    %987 = vmatpush1.msra.mxu0 %v686
    %988 = vmatprep.subr.mxu0 0.0
    %989 = vmatpush1.msra.mxu0 %v689
    %990 = vmatprep.subr.mxu0 0.0
    %991 = vmatpush1.msra.mxu0 %v692
    %992 = vmatprep.subr.mxu0 0.0
    %993 = vmatpush1.msra.mxu0 %v695
    %994 = vmatprep.subr.mxu0 0.0
    %995 = vmatpush1.msra.mxu0 %v698
    %996 = vmatprep.subr.mxu0 0.0
    %997 = vmatpush1.msra.mxu0 %v701
    %998 = vmatprep.subr.mxu0 0.0
    %999 = vmatpush1.msra.mxu0 %v704
    %1000 = vmatprep.subr.mxu0 0.0
    %1001 = vmatpush1.msra.mxu0 %v707
    %1002 = vmatprep.subr.mxu0 0.0
    %1003 = vmatpush1.msra.mxu0 %v710
    %1004 = vmatprep.subr.mxu0 0.0
    %1005 = vmatpush1.msra.mxu0 %v713
    %1006 = vmatprep.subr.mxu0 0.0
    %1007 = vmatpush1.msra.mxu0 0.0
    %1008 = vmatprep.subr.mxu0 0.0
    %1009 = vmatpush1.msra.mxu0 0.0
    %1010 = vmatprep.subr.mxu0 0.0
    %1011 = vmatpush1.msra.mxu0 0.0
    %1012 = vmatprep.subr.mxu0 0.0
    %1013 = vmatpush1.msra.mxu0 0.0
    %1014 = vmatprep.subr.mxu0 0.0
    %1015 = vmatpush1.msra.mxu0 0.0
    %1016 = vmatprep.subr.mxu0 0.0
    %1017 = vmatpush1.msra.mxu0 0.0
    %1018 = vmatprep.subr.mxu0 0.0
    %1019 = vmatpush1.msra.mxu0 0.0
    %1020 = vmatprep.subr.mxu0 0.0
    %1021 = vmatpush1.msra.mxu0 0.0
    %1022 = vmatprep.subr.mxu0 0.0
    %1023 = vmatpush1.msra.mxu0 0.0
    %1024 = vmatprep.subr.mxu0 0.0
    %1025 = vmatpush1.msra.mxu0 0.0
    %1026 = vmatprep.subr.mxu0 0.0
    %1027 = vmatpush1.msra.mxu0 0.0
    %1028 = vmatprep.subr.mxu0 0.0
    %1029 = vmatpush1.msra.mxu0 0.0
    %1030 = vmatprep.subr.mxu0 0.0
    %1031 = vmatpush1.msra.mxu0 0.0
    %1032 = vmatprep.subr.mxu0 0.0
    %1033 = vmatpush1.msra.mxu0 0.0
    %1034 = vmatprep.subr.mxu0 0.0
    %1035 = vmatpush1.msra.mxu0 0.0
    %1036 = vmatprep.subr.mxu0 0.0
    %1037 = vmatpush1.msra.mxu0 0.0
    %1038 = vmatprep.mubr.f32.mxu0 0.0
    %1039 = vmatmul.mubr.f32.gmra.mrb[0].mxu0 %v665
    %v1040 = vpop.f32.mrb[0].mxu0
    %v1041 = vadd.f32 %v900, %v1040
    %v1042 = vpop.f32.mrb[0].mxu0
    %1043 = vdwg.mxu0
    %v1045 = vlaneseq
    %v1046 = vshrl.u32 %v1045, 7
    %v1047 = vsub.s32 0, %v1046
    %v1048 = vrot.slane %v435, %v1047
    %v1049 = vlaneseq
    %v1050 = vshrl.u32 %v1049, 7
    %v1051 = vsub.s32 1, %v1050
    %v1052 = vrot.slane %v435, %v1051
    %v1053 = vlaneseq
    %v1054 = vshrl.u32 %v1053, 7
    %v1055 = vsub.s32 2, %v1054
    %v1056 = vrot.slane %v435, %v1055
    %v1060 = vadd.f32 %v970, %v1048
    %v1061 = vadd.f32 %v972, %v1052
    %v1062 = vadd.f32 %v1041, %v1056
    %v1063 = vld [vmem:[%s9] sm:$0xff]
    %v1064 = vld [vmem:[%s9 + $0x8] sm:$0xff]
    %v1065 = vld [vmem:[%s9 + $0x10] sm:$0xff]
    %v1066 = vld [vmem:[%s9 + $0x18] sm:$0xff]
    %v1067 = vld [vmem:[%s9 + $0x20] sm:$0xff]
    %v1068 = vld [vmem:[%s9 + $0x28] sm:$0xff]
    %v1069 = vld [vmem:[%s9 + $0x30] sm:$0xff]
    %v1070 = vld [vmem:[%s9 + $0x38] sm:$0xff]
    %v1071 = vld [vmem:[%s9 + $0x40] sm:$0xff]
    %v1072 = vld [vmem:[%s9 + $0x48] sm:$0xff]
    %v1073 = vld [vmem:[%s9 + $0x50] sm:$0xff]
    %v1074 = vld [vmem:[%s9 + $0x58] sm:$0xff]
    %v1075 = vld [vmem:[%s9 + $0x60] sm:$0xff]
    %v1076 = vld [vmem:[%s9 + $0x68] sm:$0xff]
    %v1077 = vld [vmem:[%s9 + $0x70] sm:$0xff]
    %v1078 = vld [vmem:[%s9 + $0x78] sm:$0xff]
    %v1079 = vxor.u32 %v1060, 2147483648
    %v1080 = vxor.u32 %v1061, 2147483648
    %v1081 = vmul.f32 %v1079, 1.442695
    %v1082 = vpow.pop %v1081
    %v1083 = vmul.f32 %v1080, 1.442695
    %v1084 = vpow.pop %v1083
    %v1085 = vadd.f32 %v1082, 1.0
    %v1086 = vadd.f32 %v1084, 1.0
    %v1087 = vrcp.pop %v1085
    %v1088 = vmul.f32 1.0, %v1087
    %v1089 = vrcp.pop %v1086
    %v1090 = vmul.f32 1.0, %v1089
    %v1092 = vlaneseq
    %v1093 = vshrl.u32 %v1092, 7
    %v1094 = vsub.s32 0, %v1093
    %v1095 = vrot.slane %v436, %v1094
    %1097 = vmatprep.subr.mxu0 0.0
    %1098 = vmatpush1.msra.mxu0 %v1063
    %1099 = vmatprep.subr.mxu0 0.0
    %1100 = vmatpush1.msra.mxu0 %v1064
    %1101 = vmatprep.subr.mxu0 0.0
    %1102 = vmatpush1.msra.mxu0 %v1065
    %1103 = vmatprep.subr.mxu0 0.0
    %1104 = vmatpush1.msra.mxu0 %v1066
    %1105 = vmatprep.subr.mxu0 0.0
    %1106 = vmatpush1.msra.mxu0 %v1067
    %1107 = vmatprep.subr.mxu0 0.0
    %1108 = vmatpush1.msra.mxu0 %v1068
    %1109 = vmatprep.subr.mxu0 0.0
    %1110 = vmatpush1.msra.mxu0 %v1069
    %1111 = vmatprep.subr.mxu0 0.0
    %1112 = vmatpush1.msra.mxu0 %v1070
    %1113 = vmatprep.subr.mxu0 0.0
    %1114 = vmatpush1.msra.mxu0 %v1071
    %1115 = vmatprep.subr.mxu0 0.0
    %1116 = vmatpush1.msra.mxu0 %v1072
    %1117 = vmatprep.subr.mxu0 0.0
    %1118 = vmatpush1.msra.mxu0 %v1073
    %1119 = vmatprep.subr.mxu0 0.0
    %1120 = vmatpush1.msra.mxu0 %v1074
    %1121 = vmatprep.subr.mxu0 0.0
    %1122 = vmatpush1.msra.mxu0 %v1075
    %1123 = vmatprep.subr.mxu0 0.0
    %1124 = vmatpush1.msra.mxu0 %v1076
    %1125 = vmatprep.subr.mxu0 0.0
    %1126 = vmatpush1.msra.mxu0 %v1077
    %1127 = vmatprep.subr.mxu0 0.0
    %1128 = vmatpush1.msra.mxu0 %v1078
    %1129 = vmatprep.subr.mxu0 0.0
    %1130 = vmatpush1.msra.mxu0 0.0
    %1131 = vmatprep.subr.mxu0 0.0
    %1132 = vmatpush1.msra.mxu0 0.0
    %1133 = vmatprep.subr.mxu0 0.0
    %1134 = vmatpush1.msra.mxu0 0.0
    %1135 = vmatprep.subr.mxu0 0.0
    %1136 = vmatpush1.msra.mxu0 0.0
    %1137 = vmatprep.subr.mxu0 0.0
    %1138 = vmatpush1.msra.mxu0 0.0
    %1139 = vmatprep.subr.mxu0 0.0
    %1140 = vmatpush1.msra.mxu0 0.0
    %1141 = vmatprep.subr.mxu0 0.0
    %1142 = vmatpush1.msra.mxu0 0.0
    %1143 = vmatprep.subr.mxu0 0.0
    %1144 = vmatpush1.msra.mxu0 0.0
    %1145 = vmatprep.subr.mxu0 0.0
    %1146 = vmatpush1.msra.mxu0 0.0
    %1147 = vmatprep.subr.mxu0 0.0
    %1148 = vmatpush1.msra.mxu0 0.0
    %1149 = vmatprep.subr.mxu0 0.0
    %1150 = vmatpush1.msra.mxu0 0.0
    %1151 = vmatprep.subr.mxu0 0.0
    %1152 = vmatpush1.msra.mxu0 0.0
    %1153 = vmatprep.subr.mxu0 0.0
    %1154 = vmatpush1.msra.mxu0 0.0
    %1155 = vmatprep.subr.mxu0 0.0
    %1156 = vmatpush1.msra.mxu0 0.0
    %1157 = vmatprep.subr.mxu0 0.0
    %1158 = vmatpush1.msra.mxu0 0.0
    %1159 = vmatprep.subr.mxu0 0.0
    %1160 = vmatpush1.msra.mxu0 0.0
    %1161 = vmatprep.mubr.f32.mxu0 0.0
    %1162 = vmatmul.mubr.f32.gmra.mrb[0].mxu0 0.0
    %v1163 = vpop.f32.mrb[0].mxu0
    %v1164 = vadd.f32 %v1095, %v1163
    %v1165 = vpop.f32.mrb[0].mxu0
    %1166 = vdwg.mxu0
    %v1167 = vmul.f32 %v1088, %v1164
    %v1168 = vadd.f32 %v1062, %v1167
    %v1169 = vtanh.pop %v1168
    %v1170 = vsub.f32 1.0, %v1090
    %v1171 = vmul.f32 %v1170, %v1169
    %v1172 = vmul.f32 %v1090, 0.0
    %v1173 = vadd.f32 %v1171, %v1172
    %v1174 = vsel %vm441, %v1173, 0.0
    %vm1175 = vcmp.gt.s32.totalorder %v440, 1
    %s1176 = smul.u32 1, 3
    %s1177 = smul.addr %s1176, 8
    %s1178 = scalar_lea.vmem [#allocation2], %s1177
    %v1179 = vld [vmem:[%s1178] sm:$0xff]
    %v1180 = vld [vmem:[%s1178 + $0x8] sm:$0xff]
    %v1181 = vld [vmem:[%s1178 + $0x10] sm:$0xff]
    %1182 = vmatprep.subr.mxu0 %v449
    %1183 = vmatpush1.msra.mxu0 %v448
    %1184 = vmatprep.subr.mxu0 %v452
    %1185 = vmatpush1.msra.mxu0 %v451
    %1186 = vmatprep.subr.mxu0 %v455
    %1187 = vmatpush1.msra.mxu0 %v454
    %1188 = vmatprep.subr.mxu0 %v458
    %1189 = vmatpush1.msra.mxu0 %v457
    %1190 = vmatprep.subr.mxu0 %v461
    %1191 = vmatpush1.msra.mxu0 %v460
    %1192 = vmatprep.subr.mxu0 %v464
    %1193 = vmatpush1.msra.mxu0 %v463
    %1194 = vmatprep.subr.mxu0 %v467
    %1195 = vmatpush1.msra.mxu0 %v466
    %1196 = vmatprep.subr.mxu0 %v470
    %1197 = vmatpush1.msra.mxu0 %v469
    %1198 = vmatprep.subr.mxu0 %v473
    %1199 = vmatpush1.msra.mxu0 %v472
    %1200 = vmatprep.subr.mxu0 %v476
    %1201 = vmatpush1.msra.mxu0 %v475
    %1202 = vmatprep.subr.mxu0 %v479
    %1203 = vmatpush1.msra.mxu0 %v478
    %1204 = vmatprep.subr.mxu0 %v482
    %1205 = vmatpush1.msra.mxu0 %v481
    %1206 = vmatprep.subr.mxu0 %v485
    %1207 = vmatpush1.msra.mxu0 %v484
    %1208 = vmatprep.subr.mxu0 %v488
    %1209 = vmatpush1.msra.mxu0 %v487
    %1210 = vmatprep.subr.mxu0 %v491
    %1211 = vmatpush1.msra.mxu0 %v490
    %1212 = vmatprep.subr.mxu0 %v494
    %1213 = vmatpush1.msra.mxu0 %v493
    %1214 = vmatprep.subr.mxu0 0.0
    %1215 = vmatpush1.msra.mxu0 0.0
    %1216 = vmatprep.subr.mxu0 0.0
    %1217 = vmatpush1.msra.mxu0 0.0
    %1218 = vmatprep.subr.mxu0 0.0
    %1219 = vmatpush1.msra.mxu0 0.0
    %1220 = vmatprep.subr.mxu0 0.0
    %1221 = vmatpush1.msra.mxu0 0.0
    %1222 = vmatprep.subr.mxu0 0.0
    %1223 = vmatpush1.msra.mxu0 0.0
    %1224 = vmatprep.subr.mxu0 0.0
    %1225 = vmatpush1.msra.mxu0 0.0
    %1226 = vmatprep.subr.mxu0 0.0
    %1227 = vmatpush1.msra.mxu0 0.0
    %1228 = vmatprep.subr.mxu0 0.0
    %1229 = vmatpush1.msra.mxu0 0.0
    %1230 = vmatprep.subr.mxu0 0.0
    %1231 = vmatpush1.msra.mxu0 0.0
    %1232 = vmatprep.subr.mxu0 0.0
    %1233 = vmatpush1.msra.mxu0 0.0
    %1234 = vmatprep.subr.mxu0 0.0
    %1235 = vmatpush1.msra.mxu0 0.0
    %1236 = vmatprep.subr.mxu0 0.0
    %1237 = vmatpush1.msra.mxu0 0.0
    %1238 = vmatprep.subr.mxu0 0.0
    %1239 = vmatpush1.msra.mxu0 0.0
    %1240 = vmatprep.subr.mxu0 0.0
    %1241 = vmatpush1.msra.mxu0 0.0
    %1242 = vmatprep.subr.mxu0 0.0
    %1243 = vmatpush1.msra.mxu0 0.0
    %1244 = vmatprep.subr.mxu0 0.0
    %1245 = vmatpush1.msra.mxu0 0.0
    %1246 = vmatprep.mubr.f32.mxu0 0.0
    %1247 = vmatmul.mubr.f32.gmra.mrb[0].mxu0 %v665
    %v1248 = vpop.f32.mrb[0].mxu0
    %v1249 = vadd.f32 0.0, %v1248
    %v1250 = vpop.f32.mrb[0].mxu0
    %v1251 = vadd.f32 0.0, %v1250
    %1252 = vdwg.mxu0
    %1253 = vmatprep.subr.mxu0 0.0
    %1254 = vmatpush1.msra.mxu0 %v450
    %1255 = vmatprep.subr.mxu0 0.0
    %1256 = vmatpush1.msra.mxu0 %v453
    %1257 = vmatprep.subr.mxu0 0.0
    %1258 = vmatpush1.msra.mxu0 %v456
    %1259 = vmatprep.subr.mxu0 0.0
    %1260 = vmatpush1.msra.mxu0 %v459
    %1261 = vmatprep.subr.mxu0 0.0
    %1262 = vmatpush1.msra.mxu0 %v462
    %1263 = vmatprep.subr.mxu0 0.0
    %1264 = vmatpush1.msra.mxu0 %v465
    %1265 = vmatprep.subr.mxu0 0.0
    %1266 = vmatpush1.msra.mxu0 %v468
    %1267 = vmatprep.subr.mxu0 0.0
    %1268 = vmatpush1.msra.mxu0 %v471
    %1269 = vmatprep.subr.mxu0 0.0
    %1270 = vmatpush1.msra.mxu0 %v474
    %1271 = vmatprep.subr.mxu0 0.0
    %1272 = vmatpush1.msra.mxu0 %v477
    %1273 = vmatprep.subr.mxu0 0.0
    %1274 = vmatpush1.msra.mxu0 %v480
    %1275 = vmatprep.subr.mxu0 0.0
    %1276 = vmatpush1.msra.mxu0 %v483
    %1277 = vmatprep.subr.mxu0 0.0
    %1278 = vmatpush1.msra.mxu0 %v486
    %1279 = vmatprep.subr.mxu0 0.0
    %1280 = vmatpush1.msra.mxu0 %v489
    %1281 = vmatprep.subr.mxu0 0.0
    %1282 = vmatpush1.msra.mxu0 %v492
    %1283 = vmatprep.subr.mxu0 0.0
    %1284 = vmatpush1.msra.mxu0 %v495
    %1285 = vmatprep.subr.mxu0 0.0
    %1286 = vmatpush1.msra.mxu0 0.0
    %1287 = vmatprep.subr.mxu0 0.0
    %1288 = vmatpush1.msra.mxu0 0.0
    %1289 = vmatprep.subr.mxu0 0.0
    %1290 = vmatpush1.msra.mxu0 0.0
    %1291 = vmatprep.subr.mxu0 0.0
    %1292 = vmatpush1.msra.mxu0 0.0
    %1293 = vmatprep.subr.mxu0 0.0
    %1294 = vmatpush1.msra.mxu0 0.0
    %1295 = vmatprep.subr.mxu0 0.0
    %1296 = vmatpush1.msra.mxu0 0.0
    %1297 = vmatprep.subr.mxu0 0.0
    %1298 = vmatpush1.msra.mxu0 0.0
    %1299 = vmatprep.subr.mxu0 0.0
    %1300 = vmatpush1.msra.mxu0 0.0
    %1301 = vmatprep.subr.mxu0 0.0
    %1302 = vmatpush1.msra.mxu0 0.0
    %1303 = vmatprep.subr.mxu0 0.0
    %1304 = vmatpush1.msra.mxu0 0.0
    %1305 = vmatprep.subr.mxu0 0.0
    %1306 = vmatpush1.msra.mxu0 0.0
    %1307 = vmatprep.subr.mxu0 0.0
    %1308 = vmatpush1.msra.mxu0 0.0
    %1309 = vmatprep.subr.mxu0 0.0
    %1310 = vmatpush1.msra.mxu0 0.0
    %1311 = vmatprep.subr.mxu0 0.0
    %1312 = vmatpush1.msra.mxu0 0.0
    %1313 = vmatprep.subr.mxu0 0.0
    %1314 = vmatpush1.msra.mxu0 0.0
    %1315 = vmatprep.subr.mxu0 0.0
    %1316 = vmatpush1.msra.mxu0 0.0
    %1317 = vmatprep.mubr.f32.mxu0 0.0
    %1318 = vmatmul.mubr.f32.gmra.mrb[0].mxu0 %v665
    %v1319 = vpop.f32.mrb[0].mxu0
    %v1320 = vadd.f32 0.0, %v1319
    %v1321 = vpop.f32.mrb[0].mxu0
    %1322 = vdwg.mxu0
    %v1323 = vadd.f32 %v1179, %v1249
    %v1324 = vadd.f32 %v1180, %v1251
    %v1325 = vxor.u32 %v1323, 2147483648
    %v1326 = vxor.u32 %v1324, 2147483648
    %v1327 = vmul.f32 %v1325, 1.442695
    %v1328 = vpow.pop %v1327
    %v1329 = vmul.f32 %v1326, 1.442695
    %v1330 = vpow.pop %v1329
    %v1331 = vadd.f32 %v1328, 1.0
    %v1332 = vadd.f32 %v1330, 1.0
    %v1333 = vrcp.pop %v1331
    %v1334 = vmul.f32 1.0, %v1333
    %v1335 = vrcp.pop %v1332
    %v1336 = vmul.f32 1.0, %v1335
    %v1337 = vadd.f32 %v1320, %v655
    %v1338 = vmul.f32 %v1334, %v1337
    %v1339 = vadd.f32 %v1181, %v1338
    %v1340 = vtanh.pop %v1339
    %v1341 = vsub.f32 1.0, %v1336
    %v1342 = vmul.f32 %v1341, %v1340
    %v1343 = vmul.f32 %v1336, %v665
    %v1344 = vadd.f32 %v1342, %v1343
    %v1345 = vsel %vm1175, %v1344, %v665
    %1346 = vmatprep.subr.mxu0 %v715
    %1347 = vmatpush1.msra.mxu0 %v714
    %1348 = vmatprep.subr.mxu0 %v718
    %1349 = vmatpush1.msra.mxu0 %v717
    %1350 = vmatprep.subr.mxu0 %v721
    %1351 = vmatpush1.msra.mxu0 %v720
    %1352 = vmatprep.subr.mxu0 %v724
    %1353 = vmatpush1.msra.mxu0 %v723
    %1354 = vmatprep.subr.mxu0 %v727
    %1355 = vmatpush1.msra.mxu0 %v726
    %1356 = vmatprep.subr.mxu0 %v730
    %1357 = vmatpush1.msra.mxu0 %v729
    %1358 = vmatprep.subr.mxu0 %v733
    %1359 = vmatpush1.msra.mxu0 %v732
    %1360 = vmatprep.subr.mxu0 %v736
    %1361 = vmatpush1.msra.mxu0 %v735
    %1362 = vmatprep.subr.mxu0 %v739
    %1363 = vmatpush1.msra.mxu0 %v738
    %1364 = vmatprep.subr.mxu0 %v742
    %1365 = vmatpush1.msra.mxu0 %v741
    %1366 = vmatprep.subr.mxu0 %v745
    %1367 = vmatpush1.msra.mxu0 %v744
    %1368 = vmatprep.subr.mxu0 %v748
    %1369 = vmatpush1.msra.mxu0 %v747
    %1370 = vmatprep.subr.mxu0 %v751
    %1371 = vmatpush1.msra.mxu0 %v750
    %1372 = vmatprep.subr.mxu0 %v754
    %1373 = vmatpush1.msra.mxu0 %v753
    %1374 = vmatprep.subr.mxu0 %v757
    %1375 = vmatpush1.msra.mxu0 %v756
    %1376 = vmatprep.subr.mxu0 %v760
    %1377 = vmatpush1.msra.mxu0 %v759
    %1378 = vmatprep.subr.mxu0 0.0
    %1379 = vmatpush1.msra.mxu0 0.0
    %1380 = vmatprep.subr.mxu0 0.0
    %1381 = vmatpush1.msra.mxu0 0.0
    %1382 = vmatprep.subr.mxu0 0.0
    %1383 = vmatpush1.msra.mxu0 0.0
    %1384 = vmatprep.subr.mxu0 0.0
    %1385 = vmatpush1.msra.mxu0 0.0
    %1386 = vmatprep.subr.mxu0 0.0
    %1387 = vmatpush1.msra.mxu0 0.0
    %1388 = vmatprep.subr.mxu0 0.0
    %1389 = vmatpush1.msra.mxu0 0.0
    %1390 = vmatprep.subr.mxu0 0.0
    %1391 = vmatpush1.msra.mxu0 0.0
    %1392 = vmatprep.subr.mxu0 0.0
    %1393 = vmatpush1.msra.mxu0 0.0
    %1394 = vmatprep.subr.mxu0 0.0
    %1395 = vmatpush1.msra.mxu0 0.0
    %1396 = vmatprep.subr.mxu0 0.0
    %1397 = vmatpush1.msra.mxu0 0.0
    %1398 = vmatprep.subr.mxu0 0.0
    %1399 = vmatpush1.msra.mxu0 0.0
    %1400 = vmatprep.subr.mxu0 0.0
    %1401 = vmatpush1.msra.mxu0 0.0
    %1402 = vmatprep.subr.mxu0 0.0
    %1403 = vmatpush1.msra.mxu0 0.0
    %1404 = vmatprep.subr.mxu0 0.0
    %1405 = vmatpush1.msra.mxu0 0.0
    %1406 = vmatprep.subr.mxu0 0.0
    %1407 = vmatpush1.msra.mxu0 0.0
    %1408 = vmatprep.subr.mxu0 0.0
    %1409 = vmatpush1.msra.mxu0 0.0
    %1410 = vmatprep.mubr.f32.mxu0 0.0
    %1411 = vmatmul.mubr.f32.gmra.mrb[0].mxu0 %v1174
    %v1412 = vpop.f32.mrb[0].mxu0
    %v1413 = vadd.f32 0.0, %v1412
    %v1414 = vpop.f32.mrb[0].mxu0
    %v1415 = vadd.f32 0.0, %v1414
    %1416 = vdwg.mxu0
    %1417 = vmatprep.subr.mxu0 0.0
    %1418 = vmatpush1.msra.mxu0 %v716
    %1419 = vmatprep.subr.mxu0 0.0
    %1420 = vmatpush1.msra.mxu0 %v719
    %1421 = vmatprep.subr.mxu0 0.0
    %1422 = vmatpush1.msra.mxu0 %v722
    %1423 = vmatprep.subr.mxu0 0.0
    %1424 = vmatpush1.msra.mxu0 %v725
    %1425 = vmatprep.subr.mxu0 0.0
    %1426 = vmatpush1.msra.mxu0 %v728
    %1427 = vmatprep.subr.mxu0 0.0
    %1428 = vmatpush1.msra.mxu0 %v731
    %1429 = vmatprep.subr.mxu0 0.0
    %1430 = vmatpush1.msra.mxu0 %v734
    %1431 = vmatprep.subr.mxu0 0.0
    %1432 = vmatpush1.msra.mxu0 %v737
    %1433 = vmatprep.subr.mxu0 0.0
    %1434 = vmatpush1.msra.mxu0 %v740
    %1435 = vmatprep.subr.mxu0 0.0
    %1436 = vmatpush1.msra.mxu0 %v743
    %1437 = vmatprep.subr.mxu0 0.0
    %1438 = vmatpush1.msra.mxu0 %v746
    %1439 = vmatprep.subr.mxu0 0.0
    %1440 = vmatpush1.msra.mxu0 %v749
    %1441 = vmatprep.subr.mxu0 0.0
    %1442 = vmatpush1.msra.mxu0 %v752
    %1443 = vmatprep.subr.mxu0 0.0
    %1444 = vmatpush1.msra.mxu0 %v755
    %1445 = vmatprep.subr.mxu0 0.0
    %1446 = vmatpush1.msra.mxu0 %v758
    %1447 = vmatprep.subr.mxu0 0.0
    %1448 = vmatpush1.msra.mxu0 %v761
    %1449 = vmatprep.subr.mxu0 0.0
    %1450 = vmatpush1.msra.mxu0 0.0
    %1451 = vmatprep.subr.mxu0 0.0
    %1452 = vmatpush1.msra.mxu0 0.0
    %1453 = vmatprep.subr.mxu0 0.0
    %1454 = vmatpush1.msra.mxu0 0.0
    %1455 = vmatprep.subr.mxu0 0.0
    %1456 = vmatpush1.msra.mxu0 0.0
    %1457 = vmatprep.subr.mxu0 0.0
    %1458 = vmatpush1.msra.mxu0 0.0
    %1459 = vmatprep.subr.mxu0 0.0
    %1460 = vmatpush1.msra.mxu0 0.0
    %1461 = vmatprep.subr.mxu0 0.0
    %1462 = vmatpush1.msra.mxu0 0.0
    %1463 = vmatprep.subr.mxu0 0.0
    %1464 = vmatpush1.msra.mxu0 0.0
    %1465 = vmatprep.subr.mxu0 0.0
    %1466 = vmatpush1.msra.mxu0 0.0
    %1467 = vmatprep.subr.mxu0 0.0
    %1468 = vmatpush1.msra.mxu0 0.0
    %1469 = vmatprep.subr.mxu0 0.0
    %1470 = vmatpush1.msra.mxu0 0.0
    %1471 = vmatprep.subr.mxu0 0.0
    %1472 = vmatpush1.msra.mxu0 0.0
    %1473 = vmatprep.subr.mxu0 0.0
    %1474 = vmatpush1.msra.mxu0 0.0
    %1475 = vmatprep.subr.mxu0 0.0
    %1476 = vmatpush1.msra.mxu0 0.0
    %1477 = vmatprep.subr.mxu0 0.0
    %1478 = vmatpush1.msra.mxu0 0.0
    %1479 = vmatprep.subr.mxu0 0.0
    %1480 = vmatpush1.msra.mxu0 0.0
    %1481 = vmatprep.mubr.f32.mxu0 0.0
    %1482 = vmatmul.mubr.f32.gmra.mrb[0].mxu0 %v1174
    %v1483 = vpop.f32.mrb[0].mxu0
    %v1484 = vadd.f32 0.0, %v1483
    %v1485 = vpop.f32.mrb[0].mxu0
    %1486 = vdwg.mxu0
    %1487 = vmatprep.subr.mxu0 %v667
    %1488 = vmatpush1.msra.mxu0 %v666
    %1489 = vmatprep.subr.mxu0 %v670
    %1490 = vmatpush1.msra.mxu0 %v669
    %1491 = vmatprep.subr.mxu0 %v673
    %1492 = vmatpush1.msra.mxu0 %v672
    %1493 = vmatprep.subr.mxu0 %v676
    %1494 = vmatpush1.msra.mxu0 %v675
    %1495 = vmatprep.subr.mxu0 %v679
    %1496 = vmatpush1.msra.mxu0 %v678
    %1497 = vmatprep.subr.mxu0 %v682
    %1498 = vmatpush1.msra.mxu0 %v681
    %1499 = vmatprep.subr.mxu0 %v685
    %1500 = vmatpush1.msra.mxu0 %v684
    %1501 = vmatprep.subr.mxu0 %v688
    %1502 = vmatpush1.msra.mxu0 %v687
    %1503 = vmatprep.subr.mxu0 %v691
    %1504 = vmatpush1.msra.mxu0 %v690
    %1505 = vmatprep.subr.mxu0 %v694
    %1506 = vmatpush1.msra.mxu0 %v693
    %1507 = vmatprep.subr.mxu0 %v697
    %1508 = vmatpush1.msra.mxu0 %v696
    %1509 = vmatprep.subr.mxu0 %v700
    %1510 = vmatpush1.msra.mxu0 %v699
    %1511 = vmatprep.subr.mxu0 %v703
    %1512 = vmatpush1.msra.mxu0 %v702
    %1513 = vmatprep.subr.mxu0 %v706
    %1514 = vmatpush1.msra.mxu0 %v705
    %1515 = vmatprep.subr.mxu0 %v709
    %1516 = vmatpush1.msra.mxu0 %v708
    %1517 = vmatprep.subr.mxu0 %v712
    %1518 = vmatpush1.msra.mxu0 %v711
    %1519 = vmatprep.subr.mxu0 0.0
    %1520 = vmatpush1.msra.mxu0 0.0
    %1521 = vmatprep.subr.mxu0 0.0
    %1522 = vmatpush1.msra.mxu0 0.0
    %1523 = vmatprep.subr.mxu0 0.0
    %1524 = vmatpush1.msra.mxu0 0.0
    %1525 = vmatprep.subr.mxu0 0.0
    %1526 = vmatpush1.msra.mxu0 0.0
    %1527 = vmatprep.subr.mxu0 0.0
    %1528 = vmatpush1.msra.mxu0 0.0
    %1529 = vmatprep.subr.mxu0 0.0
    %1530 = vmatpush1.msra.mxu0 0.0
    %1531 = vmatprep.subr.mxu0 0.0
    %1532 = vmatpush1.msra.mxu0 0.0
    %1533 = vmatprep.subr.mxu0 0.0
    %1534 = vmatpush1.msra.mxu0 0.0
    %1535 = vmatprep.subr.mxu0 0.0
    %1536 = vmatpush1.msra.mxu0 0.0
    %1537 = vmatprep.subr.mxu0 0.0
    %1538 = vmatpush1.msra.mxu0 0.0
    %1539 = vmatprep.subr.mxu0 0.0
    %1540 = vmatpush1.msra.mxu0 0.0
    %1541 = vmatprep.subr.mxu0 0.0
    %1542 = vmatpush1.msra.mxu0 0.0
    %1543 = vmatprep.subr.mxu0 0.0
    %1544 = vmatpush1.msra.mxu0 0.0
    %1545 = vmatprep.subr.mxu0 0.0
    %1546 = vmatpush1.msra.mxu0 0.0
    %1547 = vmatprep.subr.mxu0 0.0
    %1548 = vmatpush1.msra.mxu0 0.0
    %1549 = vmatprep.subr.mxu0 0.0
    %1550 = vmatpush1.msra.mxu0 0.0
    %1551 = vmatprep.mubr.f32.mxu0 0.0
    %1552 = vmatmul.mubr.f32.gmra.mrb[0].mxu0 %v1345
    %v1553 = vpop.f32.mrb[0].mxu0
    %v1554 = vadd.f32 %v1413, %v1553
    %v1555 = vpop.f32.mrb[0].mxu0
    %v1556 = vadd.f32 %v1415, %v1555
    %1557 = vdwg.mxu0
    %1558 = vmatprep.subr.mxu0 0.0
    %1559 = vmatpush1.msra.mxu0 %v668
    %1560 = vmatprep.subr.mxu0 0.0
    %1561 = vmatpush1.msra.mxu0 %v671
    %1562 = vmatprep.subr.mxu0 0.0
    %1563 = vmatpush1.msra.mxu0 %v674
    %1564 = vmatprep.subr.mxu0 0.0
    %1565 = vmatpush1.msra.mxu0 %v677
    %1566 = vmatprep.subr.mxu0 0.0
    %1567 = vmatpush1.msra.mxu0 %v680
    %1568 = vmatprep.subr.mxu0 0.0
    %1569 = vmatpush1.msra.mxu0 %v683
    %1570 = vmatprep.subr.mxu0 0.0
    %1571 = vmatpush1.msra.mxu0 %v686
    %1572 = vmatprep.subr.mxu0 0.0
    %1573 = vmatpush1.msra.mxu0 %v689
    %1574 = vmatprep.subr.mxu0 0.0
    %1575 = vmatpush1.msra.mxu0 %v692
    %1576 = vmatprep.subr.mxu0 0.0
    %1577 = vmatpush1.msra.mxu0 %v695
    %1578 = vmatprep.subr.mxu0 0.0
    %1579 = vmatpush1.msra.mxu0 %v698
    %1580 = vmatprep.subr.mxu0 0.0
    %1581 = vmatpush1.msra.mxu0 %v701
    %1582 = vmatprep.subr.mxu0 0.0
    %1583 = vmatpush1.msra.mxu0 %v704
    %1584 = vmatprep.subr.mxu0 0.0
    %1585 = vmatpush1.msra.mxu0 %v707
    %1586 = vmatprep.subr.mxu0 0.0
    %1587 = vmatpush1.msra.mxu0 %v710
    %1588 = vmatprep.subr.mxu0 0.0
    %1589 = vmatpush1.msra.mxu0 %v713
    %1590 = vmatprep.subr.mxu0 0.0
    %1591 = vmatpush1.msra.mxu0 0.0
    %1592 = vmatprep.subr.mxu0 0.0
    %1593 = vmatpush1.msra.mxu0 0.0
    %1594 = vmatprep.subr.mxu0 0.0
    %1595 = vmatpush1.msra.mxu0 0.0
    %1596 = vmatprep.subr.mxu0 0.0
    %1597 = vmatpush1.msra.mxu0 0.0
    %1598 = vmatprep.subr.mxu0 0.0
    %1599 = vmatpush1.msra.mxu0 0.0
    %1600 = vmatprep.subr.mxu0 0.0
    %1601 = vmatpush1.msra.mxu0 0.0
    %1602 = vmatprep.subr.mxu0 0.0
    %1603 = vmatpush1.msra.mxu0 0.0
    %1604 = vmatprep.subr.mxu0 0.0
    %1605 = vmatpush1.msra.mxu0 0.0
    %1606 = vmatprep.subr.mxu0 0.0
    %1607 = vmatpush1.msra.mxu0 0.0
    %1608 = vmatprep.subr.mxu0 0.0
    %1609 = vmatpush1.msra.mxu0 0.0
    %1610 = vmatprep.subr.mxu0 0.0
    %1611 = vmatpush1.msra.mxu0 0.0
    %1612 = vmatprep.subr.mxu0 0.0
    %1613 = vmatpush1.msra.mxu0 0.0
    %1614 = vmatprep.subr.mxu0 0.0
    %1615 = vmatpush1.msra.mxu0 0.0
    %1616 = vmatprep.subr.mxu0 0.0
    %1617 = vmatpush1.msra.mxu0 0.0
    %1618 = vmatprep.subr.mxu0 0.0
    %1619 = vmatpush1.msra.mxu0 0.0
    %1620 = vmatprep.subr.mxu0 0.0
    %1621 = vmatpush1.msra.mxu0 0.0
    %1622 = vmatprep.mubr.f32.mxu0 0.0
    %1623 = vmatmul.mubr.f32.gmra.mrb[0].mxu0 %v1345
    %v1624 = vpop.f32.mrb[0].mxu0
    %v1625 = vadd.f32 %v1484, %v1624
    %v1626 = vpop.f32.mrb[0].mxu0
    %1627 = vdwg.mxu0
    %v1628 = vadd.f32 %v1554, %v1048
    %v1629 = vadd.f32 %v1556, %v1052
    %v1630 = vadd.f32 %v1625, %v1056
    %v1631 = vxor.u32 %v1628, 2147483648
    %v1632 = vxor.u32 %v1629, 2147483648
    %v1633 = vmul.f32 %v1631, 1.442695
    %v1634 = vpow.pop %v1633
    %v1635 = vmul.f32 %v1632, 1.442695
    %v1636 = vpow.pop %v1635
    %v1637 = vadd.f32 %v1634, 1.0
    %v1638 = vadd.f32 %v1636, 1.0
    %v1639 = vrcp.pop %v1637
    %v1640 = vmul.f32 1.0, %v1639
    %v1641 = vrcp.pop %v1638
    %v1642 = vmul.f32 1.0, %v1641
    %1643 = vmatprep.subr.mxu0 0.0
    %1644 = vmatpush1.msra.mxu0 %v1063
    %1645 = vmatprep.subr.mxu0 0.0
    %1646 = vmatpush1.msra.mxu0 %v1064
    %1647 = vmatprep.subr.mxu0 0.0
    %1648 = vmatpush1.msra.mxu0 %v1065
    %1649 = vmatprep.subr.mxu0 0.0
    %1650 = vmatpush1.msra.mxu0 %v1066
    %1651 = vmatprep.subr.mxu0 0.0
    %1652 = vmatpush1.msra.mxu0 %v1067
    %1653 = vmatprep.subr.mxu0 0.0
    %1654 = vmatpush1.msra.mxu0 %v1068
    %1655 = vmatprep.subr.mxu0 0.0
    %1656 = vmatpush1.msra.mxu0 %v1069
    %1657 = vmatprep.subr.mxu0 0.0
    %1658 = vmatpush1.msra.mxu0 %v1070
    %1659 = vmatprep.subr.mxu0 0.0
    %1660 = vmatpush1.msra.mxu0 %v1071
    %1661 = vmatprep.subr.mxu0 0.0
    %1662 = vmatpush1.msra.mxu0 %v1072
    %1663 = vmatprep.subr.mxu0 0.0
    %1664 = vmatpush1.msra.mxu0 %v1073
    %1665 = vmatprep.subr.mxu0 0.0
    %1666 = vmatpush1.msra.mxu0 %v1074
    %1667 = vmatprep.subr.mxu0 0.0
    %1668 = vmatpush1.msra.mxu0 %v1075
    %1669 = vmatprep.subr.mxu0 0.0
    %1670 = vmatpush1.msra.mxu0 %v1076
    %1671 = vmatprep.subr.mxu0 0.0
    %1672 = vmatpush1.msra.mxu0 %v1077
    %1673 = vmatprep.subr.mxu0 0.0
    %1674 = vmatpush1.msra.mxu0 %v1078
    %1675 = vmatprep.subr.mxu0 0.0
    %1676 = vmatpush1.msra.mxu0 0.0
    %1677 = vmatprep.subr.mxu0 0.0
    %1678 = vmatpush1.msra.mxu0 0.0
    %1679 = vmatprep.subr.mxu0 0.0
    %1680 = vmatpush1.msra.mxu0 0.0
    %1681 = vmatprep.subr.mxu0 0.0
    %1682 = vmatpush1.msra.mxu0 0.0
    %1683 = vmatprep.subr.mxu0 0.0
    %1684 = vmatpush1.msra.mxu0 0.0
    %1685 = vmatprep.subr.mxu0 0.0
    %1686 = vmatpush1.msra.mxu0 0.0
    %1687 = vmatprep.subr.mxu0 0.0
    %1688 = vmatpush1.msra.mxu0 0.0
    %1689 = vmatprep.subr.mxu0 0.0
    %1690 = vmatpush1.msra.mxu0 0.0
    %1691 = vmatprep.subr.mxu0 0.0
    %1692 = vmatpush1.msra.mxu0 0.0
    %1693 = vmatprep.subr.mxu0 0.0
    %1694 = vmatpush1.msra.mxu0 0.0
    %1695 = vmatprep.subr.mxu0 0.0
    %1696 = vmatpush1.msra.mxu0 0.0
    %1697 = vmatprep.subr.mxu0 0.0
    %1698 = vmatpush1.msra.mxu0 0.0
    %1699 = vmatprep.subr.mxu0 0.0
    %1700 = vmatpush1.msra.mxu0 0.0
    %1701 = vmatprep.subr.mxu0 0.0
    %1702 = vmatpush1.msra.mxu0 0.0
    %1703 = vmatprep.subr.mxu0 0.0
    %1704 = vmatpush1.msra.mxu0 0.0
    %1705 = vmatprep.subr.mxu0 0.0
    %1706 = vmatpush1.msra.mxu0 0.0
    %1707 = vmatprep.mubr.f32.mxu0 0.0
    %1708 = vmatmul.mubr.f32.gmra.mrb[0].mxu0 %v1174
    %v1709 = vpop.f32.mrb[0].mxu0
    %v1710 = vadd.f32 %v1095, %v1709
    %v1711 = vpop.f32.mrb[0].mxu0
    %1712 = vdwg.mxu0
    %v1713 = vmul.f32 %v1640, %v1710
    %v1714 = vadd.f32 %v1630, %v1713
    %v1715 = vtanh.pop %v1714
    %v1716 = vsub.f32 1.0, %v1642
    %v1717 = vmul.f32 %v1716, %v1715
    %v1718 = vmul.f32 %v1642, %v1174
    %v1719 = vadd.f32 %v1717, %v1718
    %v1720 = vsel %vm1175, %v1719, %v1174
    %vm1721 = vcmp.gt.s32.totalorder %v440, 2
    %s1722 = smul.u32 2, 3
    %s1723 = smul.addr %s1722, 8
    %s1724 = scalar_lea.vmem [#allocation2], %s1723
    %v1725 = vld [vmem:[%s1724] sm:$0xff]
    %v1726 = vld [vmem:[%s1724 + $0x8] sm:$0xff]
    %v1727 = vld [vmem:[%s1724 + $0x10] sm:$0xff]
    %1728 = vmatprep.subr.mxu0 %v449
    %1729 = vmatpush1.msra.mxu0 %v448
    %1730 = vmatprep.subr.mxu0 %v452
    %1731 = vmatpush1.msra.mxu0 %v451
    %1732 = vmatprep.subr.mxu0 %v455
    %1733 = vmatpush1.msra.mxu0 %v454
    %1734 = vmatprep.subr.mxu0 %v458
    %1735 = vmatpush1.msra.mxu0 %v457
    %1736 = vmatprep.subr.mxu0 %v461
    %1737 = vmatpush1.msra.mxu0 %v460
    %1738 = vmatprep.subr.mxu0 %v464
    %1739 = vmatpush1.msra.mxu0 %v463
    %1740 = vmatprep.subr.mxu0 %v467
    %1741 = vmatpush1.msra.mxu0 %v466
    %1742 = vmatprep.subr.mxu0 %v470
    %1743 = vmatpush1.msra.mxu0 %v469
    %1744 = vmatprep.subr.mxu0 %v473
    %1745 = vmatpush1.msra.mxu0 %v472
    %1746 = vmatprep.subr.mxu0 %v476
    %1747 = vmatpush1.msra.mxu0 %v475
    %1748 = vmatprep.subr.mxu0 %v479
    %1749 = vmatpush1.msra.mxu0 %v478
    %1750 = vmatprep.subr.mxu0 %v482
    %1751 = vmatpush1.msra.mxu0 %v481
    %1752 = vmatprep.subr.mxu0 %v485
    %1753 = vmatpush1.msra.mxu0 %v484
    %1754 = vmatprep.subr.mxu0 %v488
    %1755 = vmatpush1.msra.mxu0 %v487
    %1756 = vmatprep.subr.mxu0 %v491
    %1757 = vmatpush1.msra.mxu0 %v490
    %1758 = vmatprep.subr.mxu0 %v494
    %1759 = vmatpush1.msra.mxu0 %v493
    %1760 = vmatprep.subr.mxu0 0.0
    %1761 = vmatpush1.msra.mxu0 0.0
    %1762 = vmatprep.subr.mxu0 0.0
    %1763 = vmatpush1.msra.mxu0 0.0
    %1764 = vmatprep.subr.mxu0 0.0
    %1765 = vmatpush1.msra.mxu0 0.0
    %1766 = vmatprep.subr.mxu0 0.0
    %1767 = vmatpush1.msra.mxu0 0.0
    %1768 = vmatprep.subr.mxu0 0.0
    %1769 = vmatpush1.msra.mxu0 0.0
    %1770 = vmatprep.subr.mxu0 0.0
    %1771 = vmatpush1.msra.mxu0 0.0
    %1772 = vmatprep.subr.mxu0 0.0
    %1773 = vmatpush1.msra.mxu0 0.0
    %1774 = vmatprep.subr.mxu0 0.0
    %1775 = vmatpush1.msra.mxu0 0.0
    %1776 = vmatprep.subr.mxu0 0.0
    %1777 = vmatpush1.msra.mxu0 0.0
    %1778 = vmatprep.subr.mxu0 0.0
    %1779 = vmatpush1.msra.mxu0 0.0
    %1780 = vmatprep.subr.mxu0 0.0
    %1781 = vmatpush1.msra.mxu0 0.0
    %1782 = vmatprep.subr.mxu0 0.0
    %1783 = vmatpush1.msra.mxu0 0.0
    %1784 = vmatprep.subr.mxu0 0.0
    %1785 = vmatpush1.msra.mxu0 0.0
    %1786 = vmatprep.subr.mxu0 0.0
    %1787 = vmatpush1.msra.mxu0 0.0
    %1788 = vmatprep.subr.mxu0 0.0
    %1789 = vmatpush1.msra.mxu0 0.0
    %1790 = vmatprep.subr.mxu0 0.0
    %1791 = vmatpush1.msra.mxu0 0.0
    %1792 = vmatprep.mubr.f32.mxu0 0.0
    %1793 = vmatmul.mubr.f32.gmra.mrb[0].mxu0 %v1345
    %v1794 = vpop.f32.mrb[0].mxu0
    %v1795 = vadd.f32 0.0, %v1794
    %v1796 = vpop.f32.mrb[0].mxu0
    %v1797 = vadd.f32 0.0, %v1796
    %1798 = vdwg.mxu0
    %1799 = vmatprep.subr.mxu0 0.0
    %1800 = vmatpush1.msra.mxu0 %v450
    %1801 = vmatprep.subr.mxu0 0.0
    %1802 = vmatpush1.msra.mxu0 %v453
    %1803 = vmatprep.subr.mxu0 0.0
    %1804 = vmatpush1.msra.mxu0 %v456
    %1805 = vmatprep.subr.mxu0 0.0
    %1806 = vmatpush1.msra.mxu0 %v459
    %1807 = vmatprep.subr.mxu0 0.0
    %1808 = vmatpush1.msra.mxu0 %v462
    %1809 = vmatprep.subr.mxu0 0.0
    %1810 = vmatpush1.msra.mxu0 %v465
    %1811 = vmatprep.subr.mxu0 0.0
    %1812 = vmatpush1.msra.mxu0 %v468
    %1813 = vmatprep.subr.mxu0 0.0
    %1814 = vmatpush1.msra.mxu0 %v471
    %1815 = vmatprep.subr.mxu0 0.0
    %1816 = vmatpush1.msra.mxu0 %v474
    %1817 = vmatprep.subr.mxu0 0.0
    %1818 = vmatpush1.msra.mxu0 %v477
    %1819 = vmatprep.subr.mxu0 0.0
    %1820 = vmatpush1.msra.mxu0 %v480
    %1821 = vmatprep.subr.mxu0 0.0
    %1822 = vmatpush1.msra.mxu0 %v483
    %1823 = vmatprep.subr.mxu0 0.0
    %1824 = vmatpush1.msra.mxu0 %v486
    %1825 = vmatprep.subr.mxu0 0.0
    %1826 = vmatpush1.msra.mxu0 %v489
    %1827 = vmatprep.subr.mxu0 0.0
    %1828 = vmatpush1.msra.mxu0 %v492
    %1829 = vmatprep.subr.mxu0 0.0
    %1830 = vmatpush1.msra.mxu0 %v495
    %1831 = vmatprep.subr.mxu0 0.0
    %1832 = vmatpush1.msra.mxu0 0.0
    %1833 = vmatprep.subr.mxu0 0.0
    %1834 = vmatpush1.msra.mxu0 0.0
    %1835 = vmatprep.subr.mxu0 0.0
    %1836 = vmatpush1.msra.mxu0 0.0
    %1837 = vmatprep.subr.mxu0 0.0
    %1838 = vmatpush1.msra.mxu0 0.0
    %1839 = vmatprep.subr.mxu0 0.0
    %1840 = vmatpush1.msra.mxu0 0.0
    %1841 = vmatprep.subr.mxu0 0.0
    %1842 = vmatpush1.msra.mxu0 0.0
    %1843 = vmatprep.subr.mxu0 0.0
    %1844 = vmatpush1.msra.mxu0 0.0
    %1845 = vmatprep.subr.mxu0 0.0
    %1846 = vmatpush1.msra.mxu0 0.0
    %1847 = vmatprep.subr.mxu0 0.0
    %1848 = vmatpush1.msra.mxu0 0.0
    %1849 = vmatprep.subr.mxu0 0.0
    %1850 = vmatpush1.msra.mxu0 0.0
    %1851 = vmatprep.subr.mxu0 0.0
    %1852 = vmatpush1.msra.mxu0 0.0
    %1853 = vmatprep.subr.mxu0 0.0
    %1854 = vmatpush1.msra.mxu0 0.0
    %1855 = vmatprep.subr.mxu0 0.0
    %1856 = vmatpush1.msra.mxu0 0.0
    %1857 = vmatprep.subr.mxu0 0.0
    %1858 = vmatpush1.msra.mxu0 0.0
    %1859 = vmatprep.subr.mxu0 0.0
    %1860 = vmatpush1.msra.mxu0 0.0
    %1861 = vmatprep.subr.mxu0 0.0
    %1862 = vmatpush1.msra.mxu0 0.0
    %1863 = vmatprep.mubr.f32.mxu0 0.0
    %1864 = vmatmul.mubr.f32.gmra.mrb[0].mxu0 %v1345
    %v1865 = vpop.f32.mrb[0].mxu0
    %v1866 = vadd.f32 0.0, %v1865
    %v1867 = vpop.f32.mrb[0].mxu0
    %1868 = vdwg.mxu0
    %v1869 = vadd.f32 %v1725, %v1795
    %v1870 = vadd.f32 %v1726, %v1797
    %v1871 = vxor.u32 %v1869, 2147483648
    %v1872 = vxor.u32 %v1870, 2147483648
    %v1873 = vmul.f32 %v1871, 1.442695
    %v1874 = vpow.pop %v1873
    %v1875 = vmul.f32 %v1872, 1.442695
    %v1876 = vpow.pop %v1875
    %v1877 = vadd.f32 %v1874, 1.0
    %v1878 = vadd.f32 %v1876, 1.0
    %v1879 = vrcp.pop %v1877
    %v1880 = vmul.f32 1.0, %v1879
    %v1881 = vrcp.pop %v1878
    %v1882 = vmul.f32 1.0, %v1881
    %v1883 = vadd.f32 %v1866, %v655
    %v1884 = vmul.f32 %v1880, %v1883
    %v1885 = vadd.f32 %v1727, %v1884
    %v1886 = vtanh.pop %v1885
    %v1887 = vsub.f32 1.0, %v1882
    %v1888 = vmul.f32 %v1887, %v1886
    %v1889 = vmul.f32 %v1882, %v1345
    %v1890 = vadd.f32 %v1888, %v1889
    %v1891 = vsel %vm1721, %v1890, %v1345
    %1892 = vmatprep.subr.mxu0 %v715
    %1893 = vmatpush1.msra.mxu0 %v714
    %1894 = vmatprep.subr.mxu0 %v718
    %1895 = vmatpush1.msra.mxu0 %v717
    %1896 = vmatprep.subr.mxu0 %v721
    %1897 = vmatpush1.msra.mxu0 %v720
    %1898 = vmatprep.subr.mxu0 %v724
    %1899 = vmatpush1.msra.mxu0 %v723
    %1900 = vmatprep.subr.mxu0 %v727
    %1901 = vmatpush1.msra.mxu0 %v726
    %1902 = vmatprep.subr.mxu0 %v730
    %1903 = vmatpush1.msra.mxu0 %v729
    %1904 = vmatprep.subr.mxu0 %v733
    %1905 = vmatpush1.msra.mxu0 %v732
    %1906 = vmatprep.subr.mxu0 %v736
    %1907 = vmatpush1.msra.mxu0 %v735
    %1908 = vmatprep.subr.mxu0 %v739
    %1909 = vmatpush1.msra.mxu0 %v738
    %1910 = vmatprep.subr.mxu0 %v742
    %1911 = vmatpush1.msra.mxu0 %v741
    %1912 = vmatprep.subr.mxu0 %v745
    %1913 = vmatpush1.msra.mxu0 %v744
    %1914 = vmatprep.subr.mxu0 %v748
    %1915 = vmatpush1.msra.mxu0 %v747
    %1916 = vmatprep.subr.mxu0 %v751
    %1917 = vmatpush1.msra.mxu0 %v750
    %1918 = vmatprep.subr.mxu0 %v754
    %1919 = vmatpush1.msra.mxu0 %v753
    %1920 = vmatprep.subr.mxu0 %v757
    %1921 = vmatpush1.msra.mxu0 %v756
    %1922 = vmatprep.subr.mxu0 %v760
    %1923 = vmatpush1.msra.mxu0 %v759
    %1924 = vmatprep.subr.mxu0 0.0
    %1925 = vmatpush1.msra.mxu0 0.0
    %1926 = vmatprep.subr.mxu0 0.0
    %1927 = vmatpush1.msra.mxu0 0.0
    %1928 = vmatprep.subr.mxu0 0.0
    %1929 = vmatpush1.msra.mxu0 0.0
    %1930 = vmatprep.subr.mxu0 0.0
    %1931 = vmatpush1.msra.mxu0 0.0
    %1932 = vmatprep.subr.mxu0 0.0
    %1933 = vmatpush1.msra.mxu0 0.0
    %1934 = vmatprep.subr.mxu0 0.0
    %1935 = vmatpush1.msra.mxu0 0.0
    %1936 = vmatprep.subr.mxu0 0.0
    %1937 = vmatpush1.msra.mxu0 0.0
    %1938 = vmatprep.subr.mxu0 0.0
    %1939 = vmatpush1.msra.mxu0 0.0
    %1940 = vmatprep.subr.mxu0 0.0
    %1941 = vmatpush1.msra.mxu0 0.0
    %1942 = vmatprep.subr.mxu0 0.0
    %1943 = vmatpush1.msra.mxu0 0.0
    %1944 = vmatprep.subr.mxu0 0.0
    %1945 = vmatpush1.msra.mxu0 0.0
    %1946 = vmatprep.subr.mxu0 0.0
    %1947 = vmatpush1.msra.mxu0 0.0
    %1948 = vmatprep.subr.mxu0 0.0
    %1949 = vmatpush1.msra.mxu0 0.0
    %1950 = vmatprep.subr.mxu0 0.0
    %1951 = vmatpush1.msra.mxu0 0.0
    %1952 = vmatprep.subr.mxu0 0.0
    %1953 = vmatpush1.msra.mxu0 0.0
    %1954 = vmatprep.subr.mxu0 0.0
    %1955 = vmatpush1.msra.mxu0 0.0
    %1956 = vmatprep.mubr.f32.mxu0 0.0
    %1957 = vmatmul.mubr.f32.gmra.mrb[0].mxu0 %v1720
    %v1958 = vpop.f32.mrb[0].mxu0
    %v1959 = vadd.f32 0.0, %v1958
    %v1960 = vpop.f32.mrb[0].mxu0
    %v1961 = vadd.f32 0.0, %v1960
    %1962 = vdwg.mxu0
    %1963 = vmatprep.subr.mxu0 0.0
    %1964 = vmatpush1.msra.mxu0 %v716
    %1965 = vmatprep.subr.mxu0 0.0
    %1966 = vmatpush1.msra.mxu0 %v719
    %1967 = vmatprep.subr.mxu0 0.0
    %1968 = vmatpush1.msra.mxu0 %v722
    %1969 = vmatprep.subr.mxu0 0.0
    %1970 = vmatpush1.msra.mxu0 %v725
    %1971 = vmatprep.subr.mxu0 0.0
    %1972 = vmatpush1.msra.mxu0 %v728
    %1973 = vmatprep.subr.mxu0 0.0
    %1974 = vmatpush1.msra.mxu0 %v731
    %1975 = vmatprep.subr.mxu0 0.0
    %1976 = vmatpush1.msra.mxu0 %v734
    %1977 = vmatprep.subr.mxu0 0.0
    %1978 = vmatpush1.msra.mxu0 %v737
    %1979 = vmatprep.subr.mxu0 0.0
    %1980 = vmatpush1.msra.mxu0 %v740
    %1981 = vmatprep.subr.mxu0 0.0
    %1982 = vmatpush1.msra.mxu0 %v743
    %1983 = vmatprep.subr.mxu0 0.0
    %1984 = vmatpush1.msra.mxu0 %v746
    %1985 = vmatprep.subr.mxu0 0.0
    %1986 = vmatpush1.msra.mxu0 %v749
    %1987 = vmatprep.subr.mxu0 0.0
    %1988 = vmatpush1.msra.mxu0 %v752
    %1989 = vmatprep.subr.mxu0 0.0
    %1990 = vmatpush1.msra.mxu0 %v755
    %1991 = vmatprep.subr.mxu0 0.0
    %1992 = vmatpush1.msra.mxu0 %v758
    %1993 = vmatprep.subr.mxu0 0.0
    %1994 = vmatpush1.msra.mxu0 %v761
    %1995 = vmatprep.subr.mxu0 0.0
    %1996 = vmatpush1.msra.mxu0 0.0
    %1997 = vmatprep.subr.mxu0 0.0
    %1998 = vmatpush1.msra.mxu0 0.0
    %1999 = vmatprep.subr.mxu0 0.0
    %2000 = vmatpush1.msra.mxu0 0.0
    %2001 = vmatprep.subr.mxu0 0.0
    %2002 = vmatpush1.msra.mxu0 0.0
    %2003 = vmatprep.subr.mxu0 0.0
    %2004 = vmatpush1.msra.mxu0 0.0
    %2005 = vmatprep.subr.mxu0 0.0
    %2006 = vmatpush1.msra.mxu0 0.0
    %2007 = vmatprep.subr.mxu0 0.0
    %2008 = vmatpush1.msra.mxu0 0.0
    %2009 = vmatprep.subr.mxu0 0.0
    %2010 = vmatpush1.msra.mxu0 0.0
    %2011 = vmatprep.subr.mxu0 0.0
    %2012 = vmatpush1.msra.mxu0 0.0
    %2013 = vmatprep.subr.mxu0 0.0
    %2014 = vmatpush1.msra.mxu0 0.0
    %2015 = vmatprep.subr.mxu0 0.0
    %2016 = vmatpush1.msra.mxu0 0.0
    %2017 = vmatprep.subr.mxu0 0.0
    %2018 = vmatpush1.msra.mxu0 0.0
    %2019 = vmatprep.subr.mxu0 0.0
    %2020 = vmatpush1.msra.mxu0 0.0
    %2021 = vmatprep.subr.mxu0 0.0
    %2022 = vmatpush1.msra.mxu0 0.0
    %2023 = vmatprep.subr.mxu0 0.0
    %2024 = vmatpush1.msra.mxu0 0.0
    %2025 = vmatprep.subr.mxu0 0.0
    %2026 = vmatpush1.msra.mxu0 0.0
    %2027 = vmatprep.mubr.f32.mxu0 0.0
    %2028 = vmatmul.mubr.f32.gmra.mrb[0].mxu0 %v1720
    %v2029 = vpop.f32.mrb[0].mxu0
    %v2030 = vadd.f32 0.0, %v2029
    %v2031 = vpop.f32.mrb[0].mxu0
    %2032 = vdwg.mxu0
    %2033 = vmatprep.subr.mxu0 %v667
    %2034 = vmatpush1.msra.mxu0 %v666
    %2035 = vmatprep.subr.mxu0 %v670
    %2036 = vmatpush1.msra.mxu0 %v669
    %2037 = vmatprep.subr.mxu0 %v673
    %2038 = vmatpush1.msra.mxu0 %v672
    %2039 = vmatprep.subr.mxu0 %v676
    %2040 = vmatpush1.msra.mxu0 %v675
    %2041 = vmatprep.subr.mxu0 %v679
    %2042 = vmatpush1.msra.mxu0 %v678
    %2043 = vmatprep.subr.mxu0 %v682
    %2044 = vmatpush1.msra.mxu0 %v681
    %2045 = vmatprep.subr.mxu0 %v685
    %2046 = vmatpush1.msra.mxu0 %v684
    %2047 = vmatprep.subr.mxu0 %v688
    %2048 = vmatpush1.msra.mxu0 %v687
    %2049 = vmatprep.subr.mxu0 %v691
    %2050 = vmatpush1.msra.mxu0 %v690
    %2051 = vmatprep.subr.mxu0 %v694
    %2052 = vmatpush1.msra.mxu0 %v693
    %2053 = vmatprep.subr.mxu0 %v697
    %2054 = vmatpush1.msra.mxu0 %v696
    %2055 = vmatprep.subr.mxu0 %v700
    %2056 = vmatpush1.msra.mxu0 %v699
    %2057 = vmatprep.subr.mxu0 %v703
    %2058 = vmatpush1.msra.mxu0 %v702
    %2059 = vmatprep.subr.mxu0 %v706
    %2060 = vmatpush1.msra.mxu0 %v705
    %2061 = vmatprep.subr.mxu0 %v709
    %2062 = vmatpush1.msra.mxu0 %v708
    %2063 = vmatprep.subr.mxu0 %v712
    %2064 = vmatpush1.msra.mxu0 %v711
    %2065 = vmatprep.subr.mxu0 0.0
    %2066 = vmatpush1.msra.mxu0 0.0
    %2067 = vmatprep.subr.mxu0 0.0
    %2068 = vmatpush1.msra.mxu0 0.0
    %2069 = vmatprep.subr.mxu0 0.0
    %2070 = vmatpush1.msra.mxu0 0.0
    %2071 = vmatprep.subr.mxu0 0.0
    %2072 = vmatpush1.msra.mxu0 0.0
    %2073 = vmatprep.subr.mxu0 0.0
    %2074 = vmatpush1.msra.mxu0 0.0
    %2075 = vmatprep.subr.mxu0 0.0
    %2076 = vmatpush1.msra.mxu0 0.0
    %2077 = vmatprep.subr.mxu0 0.0
    %2078 = vmatpush1.msra.mxu0 0.0
    %2079 = vmatprep.subr.mxu0 0.0
    %2080 = vmatpush1.msra.mxu0 0.0
    %2081 = vmatprep.subr.mxu0 0.0
    %2082 = vmatpush1.msra.mxu0 0.0
    %2083 = vmatprep.subr.mxu0 0.0
    %2084 = vmatpush1.msra.mxu0 0.0
    %2085 = vmatprep.subr.mxu0 0.0
    %2086 = vmatpush1.msra.mxu0 0.0
    %2087 = vmatprep.subr.mxu0 0.0
    %2088 = vmatpush1.msra.mxu0 0.0
    %2089 = vmatprep.subr.mxu0 0.0
    %2090 = vmatpush1.msra.mxu0 0.0
    %2091 = vmatprep.subr.mxu0 0.0
    %2092 = vmatpush1.msra.mxu0 0.0
    %2093 = vmatprep.subr.mxu0 0.0
    %2094 = vmatpush1.msra.mxu0 0.0
    %2095 = vmatprep.subr.mxu0 0.0
    %2096 = vmatpush1.msra.mxu0 0.0
    %2097 = vmatprep.mubr.f32.mxu0 0.0
    %2098 = vmatmul.mubr.f32.gmra.mrb[0].mxu0 %v1891
    %v2099 = vpop.f32.mrb[0].mxu0
    %v2100 = vadd.f32 %v1959, %v2099
    %v2101 = vpop.f32.mrb[0].mxu0
    %v2102 = vadd.f32 %v1961, %v2101
    %2103 = vdwg.mxu0
    %2104 = vmatprep.subr.mxu0 0.0
    %2105 = vmatpush1.msra.mxu0 %v668
    %2106 = vmatprep.subr.mxu0 0.0
    %2107 = vmatpush1.msra.mxu0 %v671
    %2108 = vmatprep.subr.mxu0 0.0
    %2109 = vmatpush1.msra.mxu0 %v674
    %2110 = vmatprep.subr.mxu0 0.0
    %2111 = vmatpush1.msra.mxu0 %v677
    %2112 = vmatprep.subr.mxu0 0.0
    %2113 = vmatpush1.msra.mxu0 %v680
    %2114 = vmatprep.subr.mxu0 0.0
    %2115 = vmatpush1.msra.mxu0 %v683
    %2116 = vmatprep.subr.mxu0 0.0
    %2117 = vmatpush1.msra.mxu0 %v686
    %2118 = vmatprep.subr.mxu0 0.0
    %2119 = vmatpush1.msra.mxu0 %v689
    %2120 = vmatprep.subr.mxu0 0.0
    %2121 = vmatpush1.msra.mxu0 %v692
    %2122 = vmatprep.subr.mxu0 0.0
    %2123 = vmatpush1.msra.mxu0 %v695
    %2124 = vmatprep.subr.mxu0 0.0
    %2125 = vmatpush1.msra.mxu0 %v698
    %2126 = vmatprep.subr.mxu0 0.0
    %2127 = vmatpush1.msra.mxu0 %v701
    %2128 = vmatprep.subr.mxu0 0.0
    %2129 = vmatpush1.msra.mxu0 %v704
    %2130 = vmatprep.subr.mxu0 0.0
    %2131 = vmatpush1.msra.mxu0 %v707
    %2132 = vmatprep.subr.mxu0 0.0
    %2133 = vmatpush1.msra.mxu0 %v710
    %2134 = vmatprep.subr.mxu0 0.0
    %2135 = vmatpush1.msra.mxu0 %v713
    %2136 = vmatprep.subr.mxu0 0.0
    %2137 = vmatpush1.msra.mxu0 0.0
    %2138 = vmatprep.subr.mxu0 0.0
    %2139 = vmatpush1.msra.mxu0 0.0
    %2140 = vmatprep.subr.mxu0 0.0
    %2141 = vmatpush1.msra.mxu0 0.0
    %2142 = vmatprep.subr.mxu0 0.0
    %2143 = vmatpush1.msra.mxu0 0.0
    %2144 = vmatprep.subr.mxu0 0.0
    %2145 = vmatpush1.msra.mxu0 0.0
    %2146 = vmatprep.subr.mxu0 0.0
    %2147 = vmatpush1.msra.mxu0 0.0
    %2148 = vmatprep.subr.mxu0 0.0
    %2149 = vmatpush1.msra.mxu0 0.0
    %2150 = vmatprep.subr.mxu0 0.0
    %2151 = vmatpush1.msra.mxu0 0.0
    %2152 = vmatprep.subr.mxu0 0.0
    %2153 = vmatpush1.msra.mxu0 0.0
    %2154 = vmatprep.subr.mxu0 0.0
    %2155 = vmatpush1.msra.mxu0 0.0
    %2156 = vmatprep.subr.mxu0 0.0
    %2157 = vmatpush1.msra.mxu0 0.0
    %2158 = vmatprep.subr.mxu0 0.0
    %2159 = vmatpush1.msra.mxu0 0.0
    %2160 = vmatprep.subr.mxu0 0.0
    %2161 = vmatpush1.msra.mxu0 0.0
    %2162 = vmatprep.subr.mxu0 0.0
    %2163 = vmatpush1.msra.mxu0 0.0
    %2164 = vmatprep.subr.mxu0 0.0
    %2165 = vmatpush1.msra.mxu0 0.0
    %2166 = vmatprep.subr.mxu0 0.0
    %2167 = vmatpush1.msra.mxu0 0.0
    %2168 = vmatprep.mubr.f32.mxu0 0.0
    %2169 = vmatmul.mubr.f32.gmra.mrb[0].mxu0 %v1891
    %v2170 = vpop.f32.mrb[0].mxu0
    %v2171 = vadd.f32 %v2030, %v2170
    %v2172 = vpop.f32.mrb[0].mxu0
    %2173 = vdwg.mxu0
    %v2174 = vadd.f32 %v2100, %v1048
    %v2175 = vadd.f32 %v2102, %v1052
    %v2176 = vadd.f32 %v2171, %v1056
    %v2177 = vxor.u32 %v2174, 2147483648
    %v2178 = vxor.u32 %v2175, 2147483648
    %v2179 = vmul.f32 %v2177, 1.442695
    %v2180 = vpow.pop %v2179
    %v2181 = vmul.f32 %v2178, 1.442695
    %v2182 = vpow.pop %v2181
    %v2183 = vadd.f32 %v2180, 1.0
    %v2184 = vadd.f32 %v2182, 1.0
    %v2185 = vrcp.pop %v2183
    %v2186 = vmul.f32 1.0, %v2185
    %v2187 = vrcp.pop %v2184
    %v2188 = vmul.f32 1.0, %v2187
    %2189 = vmatprep.subr.mxu0 0.0
    %2190 = vmatpush1.msra.mxu0 %v1063
    %2191 = vmatprep.subr.mxu0 0.0
    %2192 = vmatpush1.msra.mxu0 %v1064
    %2193 = vmatprep.subr.mxu0 0.0
    %2194 = vmatpush1.msra.mxu0 %v1065
    %2195 = vmatprep.subr.mxu0 0.0
    %2196 = vmatpush1.msra.mxu0 %v1066
    %2197 = vmatprep.subr.mxu0 0.0
    %2198 = vmatpush1.msra.mxu0 %v1067
    %2199 = vmatprep.subr.mxu0 0.0
    %2200 = vmatpush1.msra.mxu0 %v1068
    %2201 = vmatprep.subr.mxu0 0.0
    %2202 = vmatpush1.msra.mxu0 %v1069
    %2203 = vmatprep.subr.mxu0 0.0
    %2204 = vmatpush1.msra.mxu0 %v1070
    %2205 = vmatprep.subr.mxu0 0.0
    %2206 = vmatpush1.msra.mxu0 %v1071
    %2207 = vmatprep.subr.mxu0 0.0
    %2208 = vmatpush1.msra.mxu0 %v1072
    %2209 = vmatprep.subr.mxu0 0.0
    %2210 = vmatpush1.msra.mxu0 %v1073
    %2211 = vmatprep.subr.mxu0 0.0
    %2212 = vmatpush1.msra.mxu0 %v1074
    %2213 = vmatprep.subr.mxu0 0.0
    %2214 = vmatpush1.msra.mxu0 %v1075
    %2215 = vmatprep.subr.mxu0 0.0
    %2216 = vmatpush1.msra.mxu0 %v1076
    %2217 = vmatprep.subr.mxu0 0.0
    %2218 = vmatpush1.msra.mxu0 %v1077
    %2219 = vmatprep.subr.mxu0 0.0
    %2220 = vmatpush1.msra.mxu0 %v1078
    %2221 = vmatprep.subr.mxu0 0.0
    %2222 = vmatpush1.msra.mxu0 0.0
    %2223 = vmatprep.subr.mxu0 0.0
    %2224 = vmatpush1.msra.mxu0 0.0
    %2225 = vmatprep.subr.mxu0 0.0
    %2226 = vmatpush1.msra.mxu0 0.0
    %2227 = vmatprep.subr.mxu0 0.0
    %2228 = vmatpush1.msra.mxu0 0.0
    %2229 = vmatprep.subr.mxu0 0.0
    %2230 = vmatpush1.msra.mxu0 0.0
    %2231 = vmatprep.subr.mxu0 0.0
    %2232 = vmatpush1.msra.mxu0 0.0
    %2233 = vmatprep.subr.mxu0 0.0
    %2234 = vmatpush1.msra.mxu0 0.0
    %2235 = vmatprep.subr.mxu0 0.0
    %2236 = vmatpush1.msra.mxu0 0.0
    %2237 = vmatprep.subr.mxu0 0.0
    %2238 = vmatpush1.msra.mxu0 0.0
    %2239 = vmatprep.subr.mxu0 0.0
    %2240 = vmatpush1.msra.mxu0 0.0
    %2241 = vmatprep.subr.mxu0 0.0
    %2242 = vmatpush1.msra.mxu0 0.0
    %2243 = vmatprep.subr.mxu0 0.0
    %2244 = vmatpush1.msra.mxu0 0.0
    %2245 = vmatprep.subr.mxu0 0.0
    %2246 = vmatpush1.msra.mxu0 0.0
    %2247 = vmatprep.subr.mxu0 0.0
    %2248 = vmatpush1.msra.mxu0 0.0
    %2249 = vmatprep.subr.mxu0 0.0
    %2250 = vmatpush1.msra.mxu0 0.0
    %2251 = vmatprep.subr.mxu0 0.0
    %2252 = vmatpush1.msra.mxu0 0.0
    %2253 = vmatprep.mubr.f32.mxu0 0.0
    %2254 = vmatmul.mubr.f32.gmra.mrb[0].mxu0 %v1720
    %v2255 = vpop.f32.mrb[0].mxu0
    %v2256 = vadd.f32 %v1095, %v2255
    %v2257 = vpop.f32.mrb[0].mxu0
    %2258 = vdwg.mxu0
    %v2259 = vmul.f32 %v2186, %v2256
    %v2260 = vadd.f32 %v2176, %v2259
    %v2261 = vtanh.pop %v2260
    %v2262 = vsub.f32 1.0, %v2188
    %v2263 = vmul.f32 %v2262, %v2261
    %v2264 = vmul.f32 %v2188, %v1720
    %v2265 = vadd.f32 %v2263, %v2264
    %v2266 = vsel %vm1721, %v2265, %v1720
    %vm2267 = vcmp.gt.s32.totalorder %v440, 3
    %s2268 = smul.u32 3, 3
    %s2269 = smul.addr %s2268, 8
    %s2270 = scalar_lea.vmem [#allocation2], %s2269
    %v2271 = vld [vmem:[%s2270] sm:$0xff]
    %v2272 = vld [vmem:[%s2270 + $0x8] sm:$0xff]
    %v2273 = vld [vmem:[%s2270 + $0x10] sm:$0xff]
    %2274 = vmatprep.subr.mxu0 %v449
    %2275 = vmatpush1.msra.mxu0 %v448
    %2276 = vmatprep.subr.mxu0 %v452
    %2277 = vmatpush1.msra.mxu0 %v451
    %2278 = vmatprep.subr.mxu0 %v455
    %2279 = vmatpush1.msra.mxu0 %v454
    %2280 = vmatprep.subr.mxu0 %v458
    %2281 = vmatpush1.msra.mxu0 %v457
    %2282 = vmatprep.subr.mxu0 %v461
    %2283 = vmatpush1.msra.mxu0 %v460
    %2284 = vmatprep.subr.mxu0 %v464
    %2285 = vmatpush1.msra.mxu0 %v463
    %2286 = vmatprep.subr.mxu0 %v467
    %2287 = vmatpush1.msra.mxu0 %v466
    %2288 = vmatprep.subr.mxu0 %v470
    %2289 = vmatpush1.msra.mxu0 %v469
    %2290 = vmatprep.subr.mxu0 %v473
    %2291 = vmatpush1.msra.mxu0 %v472
    %2292 = vmatprep.subr.mxu0 %v476
    %2293 = vmatpush1.msra.mxu0 %v475
    %2294 = vmatprep.subr.mxu0 %v479
    %2295 = vmatpush1.msra.mxu0 %v478
    %2296 = vmatprep.subr.mxu0 %v482
    %2297 = vmatpush1.msra.mxu0 %v481
    %2298 = vmatprep.subr.mxu0 %v485
    %2299 = vmatpush1.msra.mxu0 %v484
    %2300 = vmatprep.subr.mxu0 %v488
    %2301 = vmatpush1.msra.mxu0 %v487
    %2302 = vmatprep.subr.mxu0 %v491
    %2303 = vmatpush1.msra.mxu0 %v490
    %2304 = vmatprep.subr.mxu0 %v494
    %2305 = vmatpush1.msra.mxu0 %v493
    %2306 = vmatprep.subr.mxu0 0.0
    %2307 = vmatpush1.msra.mxu0 0.0
    %2308 = vmatprep.subr.mxu0 0.0
    %2309 = vmatpush1.msra.mxu0 0.0
    %2310 = vmatprep.subr.mxu0 0.0
    %2311 = vmatpush1.msra.mxu0 0.0
    %2312 = vmatprep.subr.mxu0 0.0
    %2313 = vmatpush1.msra.mxu0 0.0
    %2314 = vmatprep.subr.mxu0 0.0
    %2315 = vmatpush1.msra.mxu0 0.0
    %2316 = vmatprep.subr.mxu0 0.0
    %2317 = vmatpush1.msra.mxu0 0.0
    %2318 = vmatprep.subr.mxu0 0.0
    %2319 = vmatpush1.msra.mxu0 0.0
    %2320 = vmatprep.subr.mxu0 0.0
    %2321 = vmatpush1.msra.mxu0 0.0
    %2322 = vmatprep.subr.mxu0 0.0
    %2323 = vmatpush1.msra.mxu0 0.0
    %2324 = vmatprep.subr.mxu0 0.0
    %2325 = vmatpush1.msra.mxu0 0.0
    %2326 = vmatprep.subr.mxu0 0.0
    %2327 = vmatpush1.msra.mxu0 0.0
    %2328 = vmatprep.subr.mxu0 0.0
    %2329 = vmatpush1.msra.mxu0 0.0
    %2330 = vmatprep.subr.mxu0 0.0
    %2331 = vmatpush1.msra.mxu0 0.0
    %2332 = vmatprep.subr.mxu0 0.0
    %2333 = vmatpush1.msra.mxu0 0.0
    %2334 = vmatprep.subr.mxu0 0.0
    %2335 = vmatpush1.msra.mxu0 0.0
    %2336 = vmatprep.subr.mxu0 0.0
    %2337 = vmatpush1.msra.mxu0 0.0
    %2338 = vmatprep.mubr.f32.mxu0 0.0
    %2339 = vmatmul.mubr.f32.gmra.mrb[0].mxu0 %v1891
    %v2340 = vpop.f32.mrb[0].mxu0
    %v2341 = vadd.f32 0.0, %v2340
    %v2342 = vpop.f32.mrb[0].mxu0
    %v2343 = vadd.f32 0.0, %v2342
    %2344 = vdwg.mxu0
    %2345 = vmatprep.subr.mxu0 0.0
    %2346 = vmatpush1.msra.mxu0 %v450
    %2347 = vmatprep.subr.mxu0 0.0
    %2348 = vmatpush1.msra.mxu0 %v453
    %2349 = vmatprep.subr.mxu0 0.0
    %2350 = vmatpush1.msra.mxu0 %v456
    %2351 = vmatprep.subr.mxu0 0.0
    %2352 = vmatpush1.msra.mxu0 %v459
    %2353 = vmatprep.subr.mxu0 0.0
    %2354 = vmatpush1.msra.mxu0 %v462
    %2355 = vmatprep.subr.mxu0 0.0
    %2356 = vmatpush1.msra.mxu0 %v465
    %2357 = vmatprep.subr.mxu0 0.0
    %2358 = vmatpush1.msra.mxu0 %v468
    %2359 = vmatprep.subr.mxu0 0.0
    %2360 = vmatpush1.msra.mxu0 %v471
    %2361 = vmatprep.subr.mxu0 0.0
    %2362 = vmatpush1.msra.mxu0 %v474
    %2363 = vmatprep.subr.mxu0 0.0
    %2364 = vmatpush1.msra.mxu0 %v477
    %2365 = vmatprep.subr.mxu0 0.0
    %2366 = vmatpush1.msra.mxu0 %v480
    %2367 = vmatprep.subr.mxu0 0.0
    %2368 = vmatpush1.msra.mxu0 %v483
    %2369 = vmatprep.subr.mxu0 0.0
    %2370 = vmatpush1.msra.mxu0 %v486
    %2371 = vmatprep.subr.mxu0 0.0
    %2372 = vmatpush1.msra.mxu0 %v489
    %2373 = vmatprep.subr.mxu0 0.0
    %2374 = vmatpush1.msra.mxu0 %v492
    %2375 = vmatprep.subr.mxu0 0.0
    %2376 = vmatpush1.msra.mxu0 %v495
    %2377 = vmatprep.subr.mxu0 0.0
    %2378 = vmatpush1.msra.mxu0 0.0
    %2379 = vmatprep.subr.mxu0 0.0
    %2380 = vmatpush1.msra.mxu0 0.0
    %2381 = vmatprep.subr.mxu0 0.0
    %2382 = vmatpush1.msra.mxu0 0.0
    %2383 = vmatprep.subr.mxu0 0.0
    %2384 = vmatpush1.msra.mxu0 0.0
    %2385 = vmatprep.subr.mxu0 0.0
    %2386 = vmatpush1.msra.mxu0 0.0
    %2387 = vmatprep.subr.mxu0 0.0
    %2388 = vmatpush1.msra.mxu0 0.0
    %2389 = vmatprep.subr.mxu0 0.0
    %2390 = vmatpush1.msra.mxu0 0.0
    %2391 = vmatprep.subr.mxu0 0.0
    %2392 = vmatpush1.msra.mxu0 0.0
    %2393 = vmatprep.subr.mxu0 0.0
    %2394 = vmatpush1.msra.mxu0 0.0
    %2395 = vmatprep.subr.mxu0 0.0
    %2396 = vmatpush1.msra.mxu0 0.0
    %2397 = vmatprep.subr.mxu0 0.0
    %2398 = vmatpush1.msra.mxu0 0.0
    %2399 = vmatprep.subr.mxu0 0.0
    %2400 = vmatpush1.msra.mxu0 0.0
    %2401 = vmatprep.subr.mxu0 0.0
    %2402 = vmatpush1.msra.mxu0 0.0
    %2403 = vmatprep.subr.mxu0 0.0
    %2404 = vmatpush1.msra.mxu0 0.0
    %2405 = vmatprep.subr.mxu0 0.0
    %2406 = vmatpush1.msra.mxu0 0.0
    %2407 = vmatprep.subr.mxu0 0.0
    %2408 = vmatpush1.msra.mxu0 0.0
    %2409 = vmatprep.mubr.f32.mxu0 0.0
    %2410 = vmatmul.mubr.f32.gmra.mrb[0].mxu0 %v1891
    %v2411 = vpop.f32.mrb[0].mxu0
    %v2412 = vadd.f32 0.0, %v2411
    %v2413 = vpop.f32.mrb[0].mxu0
    %2414 = vdwg.mxu0
    %v2415 = vadd.f32 %v2271, %v2341
    %v2416 = vadd.f32 %v2272, %v2343
    %v2417 = vxor.u32 %v2415, 2147483648
    %v2418 = vxor.u32 %v2416, 2147483648
    %v2419 = vmul.f32 %v2417, 1.442695
    %v2420 = vpow.pop %v2419
    %v2421 = vmul.f32 %v2418, 1.442695
    %v2422 = vpow.pop %v2421
    %v2423 = vadd.f32 %v2420, 1.0
    %v2424 = vadd.f32 %v2422, 1.0
    %v2425 = vrcp.pop %v2423
    %v2426 = vmul.f32 1.0, %v2425
    %v2427 = vrcp.pop %v2424
    %v2428 = vmul.f32 1.0, %v2427
    %v2429 = vadd.f32 %v2412, %v655
    %v2430 = vmul.f32 %v2426, %v2429
    %v2431 = vadd.f32 %v2273, %v2430
    %v2432 = vtanh.pop %v2431
    %v2433 = vsub.f32 1.0, %v2428
    %v2434 = vmul.f32 %v2433, %v2432
    %v2435 = vmul.f32 %v2428, %v1891
    %v2436 = vadd.f32 %v2434, %v2435
    %v2437 = vsel %vm2267, %v2436, %v1891
    %2438 = vmatprep.subr.mxu0 %v715
    %2439 = vmatpush1.msra.mxu0 %v714
    %2440 = vmatprep.subr.mxu0 %v718
    %2441 = vmatpush1.msra.mxu0 %v717
    %2442 = vmatprep.subr.mxu0 %v721
    %2443 = vmatpush1.msra.mxu0 %v720
    %2444 = vmatprep.subr.mxu0 %v724
    %2445 = vmatpush1.msra.mxu0 %v723
    %2446 = vmatprep.subr.mxu0 %v727
    %2447 = vmatpush1.msra.mxu0 %v726
    %2448 = vmatprep.subr.mxu0 %v730
    %2449 = vmatpush1.msra.mxu0 %v729
    %2450 = vmatprep.subr.mxu0 %v733
    %2451 = vmatpush1.msra.mxu0 %v732
    %2452 = vmatprep.subr.mxu0 %v736
    %2453 = vmatpush1.msra.mxu0 %v735
    %2454 = vmatprep.subr.mxu0 %v739
    %2455 = vmatpush1.msra.mxu0 %v738
    %2456 = vmatprep.subr.mxu0 %v742
    %2457 = vmatpush1.msra.mxu0 %v741
    %2458 = vmatprep.subr.mxu0 %v745
    %2459 = vmatpush1.msra.mxu0 %v744
    %2460 = vmatprep.subr.mxu0 %v748
    %2461 = vmatpush1.msra.mxu0 %v747
    %2462 = vmatprep.subr.mxu0 %v751
    %2463 = vmatpush1.msra.mxu0 %v750
    %2464 = vmatprep.subr.mxu0 %v754
    %2465 = vmatpush1.msra.mxu0 %v753
    %2466 = vmatprep.subr.mxu0 %v757
    %2467 = vmatpush1.msra.mxu0 %v756
    %2468 = vmatprep.subr.mxu0 %v760
    %2469 = vmatpush1.msra.mxu0 %v759
    %2470 = vmatprep.subr.mxu0 0.0
    %2471 = vmatpush1.msra.mxu0 0.0
    %2472 = vmatprep.subr.mxu0 0.0
    %2473 = vmatpush1.msra.mxu0 0.0
    %2474 = vmatprep.subr.mxu0 0.0
    %2475 = vmatpush1.msra.mxu0 0.0
    %2476 = vmatprep.subr.mxu0 0.0
    %2477 = vmatpush1.msra.mxu0 0.0
    %2478 = vmatprep.subr.mxu0 0.0
    %2479 = vmatpush1.msra.mxu0 0.0
    %2480 = vmatprep.subr.mxu0 0.0
    %2481 = vmatpush1.msra.mxu0 0.0
    %2482 = vmatprep.subr.mxu0 0.0
    %2483 = vmatpush1.msra.mxu0 0.0
    %2484 = vmatprep.subr.mxu0 0.0
    %2485 = vmatpush1.msra.mxu0 0.0
    %2486 = vmatprep.subr.mxu0 0.0
    %2487 = vmatpush1.msra.mxu0 0.0
    %2488 = vmatprep.subr.mxu0 0.0
    %2489 = vmatpush1.msra.mxu0 0.0
    %2490 = vmatprep.subr.mxu0 0.0
    %2491 = vmatpush1.msra.mxu0 0.0
    %2492 = vmatprep.subr.mxu0 0.0
    %2493 = vmatpush1.msra.mxu0 0.0
    %2494 = vmatprep.subr.mxu0 0.0
    %2495 = vmatpush1.msra.mxu0 0.0
    %2496 = vmatprep.subr.mxu0 0.0
    %2497 = vmatpush1.msra.mxu0 0.0
    %2498 = vmatprep.subr.mxu0 0.0
    %2499 = vmatpush1.msra.mxu0 0.0
    %2500 = vmatprep.subr.mxu0 0.0
    %2501 = vmatpush1.msra.mxu0 0.0
    %2502 = vmatprep.mubr.f32.mxu0 0.0
    %2503 = vmatmul.mubr.f32.gmra.mrb[0].mxu0 %v2266
    %v2504 = vpop.f32.mrb[0].mxu0
    %v2505 = vadd.f32 0.0, %v2504
    %v2506 = vpop.f32.mrb[0].mxu0
    %v2507 = vadd.f32 0.0, %v2506
    %2508 = vdwg.mxu0
    %2509 = vmatprep.subr.mxu0 0.0
    %2510 = vmatpush1.msra.mxu0 %v716
    %2511 = vmatprep.subr.mxu0 0.0
    %2512 = vmatpush1.msra.mxu0 %v719
    %2513 = vmatprep.subr.mxu0 0.0
    %2514 = vmatpush1.msra.mxu0 %v722
    %2515 = vmatprep.subr.mxu0 0.0
    %2516 = vmatpush1.msra.mxu0 %v725
    %2517 = vmatprep.subr.mxu0 0.0
    %2518 = vmatpush1.msra.mxu0 %v728
    %2519 = vmatprep.subr.mxu0 0.0
    %2520 = vmatpush1.msra.mxu0 %v731
    %2521 = vmatprep.subr.mxu0 0.0
    %2522 = vmatpush1.msra.mxu0 %v734
    %2523 = vmatprep.subr.mxu0 0.0
    %2524 = vmatpush1.msra.mxu0 %v737
    %2525 = vmatprep.subr.mxu0 0.0
    %2526 = vmatpush1.msra.mxu0 %v740
    %2527 = vmatprep.subr.mxu0 0.0
    %2528 = vmatpush1.msra.mxu0 %v743
    %2529 = vmatprep.subr.mxu0 0.0
    %2530 = vmatpush1.msra.mxu0 %v746
    %2531 = vmatprep.subr.mxu0 0.0
    %2532 = vmatpush1.msra.mxu0 %v749
    %2533 = vmatprep.subr.mxu0 0.0
    %2534 = vmatpush1.msra.mxu0 %v752
    %2535 = vmatprep.subr.mxu0 0.0
    %2536 = vmatpush1.msra.mxu0 %v755
    %2537 = vmatprep.subr.mxu0 0.0
    %2538 = vmatpush1.msra.mxu0 %v758
    %2539 = vmatprep.subr.mxu0 0.0
    %2540 = vmatpush1.msra.mxu0 %v761
    %2541 = vmatprep.subr.mxu0 0.0
    %2542 = vmatpush1.msra.mxu0 0.0
    %2543 = vmatprep.subr.mxu0 0.0
    %2544 = vmatpush1.msra.mxu0 0.0
    %2545 = vmatprep.subr.mxu0 0.0
    %2546 = vmatpush1.msra.mxu0 0.0
    %2547 = vmatprep.subr.mxu0 0.0
    %2548 = vmatpush1.msra.mxu0 0.0
    %2549 = vmatprep.subr.mxu0 0.0
    %2550 = vmatpush1.msra.mxu0 0.0
    %2551 = vmatprep.subr.mxu0 0.0
    %2552 = vmatpush1.msra.mxu0 0.0
    %2553 = vmatprep.subr.mxu0 0.0
    %2554 = vmatpush1.msra.mxu0 0.0
    %2555 = vmatprep.subr.mxu0 0.0
    %2556 = vmatpush1.msra.mxu0 0.0
    %2557 = vmatprep.subr.mxu0 0.0
    %2558 = vmatpush1.msra.mxu0 0.0
    %2559 = vmatprep.subr.mxu0 0.0
    %2560 = vmatpush1.msra.mxu0 0.0
    %2561 = vmatprep.subr.mxu0 0.0
    %2562 = vmatpush1.msra.mxu0 0.0
    %2563 = vmatprep.subr.mxu0 0.0
    %2564 = vmatpush1.msra.mxu0 0.0
    %2565 = vmatprep.subr.mxu0 0.0
    %2566 = vmatpush1.msra.mxu0 0.0
    %2567 = vmatprep.subr.mxu0 0.0
    %2568 = vmatpush1.msra.mxu0 0.0
    %2569 = vmatprep.subr.mxu0 0.0
    %2570 = vmatpush1.msra.mxu0 0.0
    %2571 = vmatprep.subr.mxu0 0.0
    %2572 = vmatpush1.msra.mxu0 0.0
    %2573 = vmatprep.mubr.f32.mxu0 0.0
    %2574 = vmatmul.mubr.f32.gmra.mrb[0].mxu0 %v2266
    %v2575 = vpop.f32.mrb[0].mxu0
    %v2576 = vadd.f32 0.0, %v2575
    %v2577 = vpop.f32.mrb[0].mxu0
    %2578 = vdwg.mxu0
    %2579 = vmatprep.subr.mxu0 %v667
    %2580 = vmatpush1.msra.mxu0 %v666
    %2581 = vmatprep.subr.mxu0 %v670
    %2582 = vmatpush1.msra.mxu0 %v669
    %2583 = vmatprep.subr.mxu0 %v673
    %2584 = vmatpush1.msra.mxu0 %v672
    %2585 = vmatprep.subr.mxu0 %v676
    %2586 = vmatpush1.msra.mxu0 %v675
    %2587 = vmatprep.subr.mxu0 %v679
    %2588 = vmatpush1.msra.mxu0 %v678
    %2589 = vmatprep.subr.mxu0 %v682
    %2590 = vmatpush1.msra.mxu0 %v681
    %2591 = vmatprep.subr.mxu0 %v685
    %2592 = vmatpush1.msra.mxu0 %v684
    %2593 = vmatprep.subr.mxu0 %v688
    %2594 = vmatpush1.msra.mxu0 %v687
    %2595 = vmatprep.subr.mxu0 %v691
    %2596 = vmatpush1.msra.mxu0 %v690
    %2597 = vmatprep.subr.mxu0 %v694
    %2598 = vmatpush1.msra.mxu0 %v693
    %2599 = vmatprep.subr.mxu0 %v697
    %2600 = vmatpush1.msra.mxu0 %v696
    %2601 = vmatprep.subr.mxu0 %v700
    %2602 = vmatpush1.msra.mxu0 %v699
    %2603 = vmatprep.subr.mxu0 %v703
    %2604 = vmatpush1.msra.mxu0 %v702
    %2605 = vmatprep.subr.mxu0 %v706
    %2606 = vmatpush1.msra.mxu0 %v705
    %2607 = vmatprep.subr.mxu0 %v709
    %2608 = vmatpush1.msra.mxu0 %v708
    %2609 = vmatprep.subr.mxu0 %v712
    %2610 = vmatpush1.msra.mxu0 %v711
    %2611 = vmatprep.subr.mxu0 0.0
    %2612 = vmatpush1.msra.mxu0 0.0
    %2613 = vmatprep.subr.mxu0 0.0
    %2614 = vmatpush1.msra.mxu0 0.0
    %2615 = vmatprep.subr.mxu0 0.0
    %2616 = vmatpush1.msra.mxu0 0.0
    %2617 = vmatprep.subr.mxu0 0.0
    %2618 = vmatpush1.msra.mxu0 0.0
    %2619 = vmatprep.subr.mxu0 0.0
    %2620 = vmatpush1.msra.mxu0 0.0
    %2621 = vmatprep.subr.mxu0 0.0
    %2622 = vmatpush1.msra.mxu0 0.0
    %2623 = vmatprep.subr.mxu0 0.0
    %2624 = vmatpush1.msra.mxu0 0.0
    %2625 = vmatprep.subr.mxu0 0.0
    %2626 = vmatpush1.msra.mxu0 0.0
    %2627 = vmatprep.subr.mxu0 0.0
    %2628 = vmatpush1.msra.mxu0 0.0
    %2629 = vmatprep.subr.mxu0 0.0
    %2630 = vmatpush1.msra.mxu0 0.0
    %2631 = vmatprep.subr.mxu0 0.0
    %2632 = vmatpush1.msra.mxu0 0.0
    %2633 = vmatprep.subr.mxu0 0.0
    %2634 = vmatpush1.msra.mxu0 0.0
    %2635 = vmatprep.subr.mxu0 0.0
    %2636 = vmatpush1.msra.mxu0 0.0
    %2637 = vmatprep.subr.mxu0 0.0
    %2638 = vmatpush1.msra.mxu0 0.0
    %2639 = vmatprep.subr.mxu0 0.0
    %2640 = vmatpush1.msra.mxu0 0.0
    %2641 = vmatprep.subr.mxu0 0.0
    %2642 = vmatpush1.msra.mxu0 0.0
    %2643 = vmatprep.mubr.f32.mxu0 0.0
    %2644 = vmatmul.mubr.f32.gmra.mrb[0].mxu0 %v2437
    %v2645 = vpop.f32.mrb[0].mxu0
    %v2646 = vadd.f32 %v2505, %v2645
    %v2647 = vpop.f32.mrb[0].mxu0
    %v2648 = vadd.f32 %v2507, %v2647
    %2649 = vdwg.mxu0
    %2650 = vmatprep.subr.mxu0 0.0
    %2651 = vmatpush1.msra.mxu0 %v668
    %2652 = vmatprep.subr.mxu0 0.0
    %2653 = vmatpush1.msra.mxu0 %v671
    %2654 = vmatprep.subr.mxu0 0.0
    %2655 = vmatpush1.msra.mxu0 %v674
    %2656 = vmatprep.subr.mxu0 0.0
    %2657 = vmatpush1.msra.mxu0 %v677
    %2658 = vmatprep.subr.mxu0 0.0
    %2659 = vmatpush1.msra.mxu0 %v680
    %2660 = vmatprep.subr.mxu0 0.0
    %2661 = vmatpush1.msra.mxu0 %v683
    %2662 = vmatprep.subr.mxu0 0.0
    %2663 = vmatpush1.msra.mxu0 %v686
    %2664 = vmatprep.subr.mxu0 0.0
    %2665 = vmatpush1.msra.mxu0 %v689
    %2666 = vmatprep.subr.mxu0 0.0
    %2667 = vmatpush1.msra.mxu0 %v692
    %2668 = vmatprep.subr.mxu0 0.0
    %2669 = vmatpush1.msra.mxu0 %v695
    %2670 = vmatprep.subr.mxu0 0.0
    %2671 = vmatpush1.msra.mxu0 %v698
    %2672 = vmatprep.subr.mxu0 0.0
    %2673 = vmatpush1.msra.mxu0 %v701
    %2674 = vmatprep.subr.mxu0 0.0
    %2675 = vmatpush1.msra.mxu0 %v704
    %2676 = vmatprep.subr.mxu0 0.0
    %2677 = vmatpush1.msra.mxu0 %v707
    %2678 = vmatprep.subr.mxu0 0.0
    %2679 = vmatpush1.msra.mxu0 %v710
    %2680 = vmatprep.subr.mxu0 0.0
    %2681 = vmatpush1.msra.mxu0 %v713
    %2682 = vmatprep.subr.mxu0 0.0
    %2683 = vmatpush1.msra.mxu0 0.0
    %2684 = vmatprep.subr.mxu0 0.0
    %2685 = vmatpush1.msra.mxu0 0.0
    %2686 = vmatprep.subr.mxu0 0.0
    %2687 = vmatpush1.msra.mxu0 0.0
    %2688 = vmatprep.subr.mxu0 0.0
    %2689 = vmatpush1.msra.mxu0 0.0
    %2690 = vmatprep.subr.mxu0 0.0
    %2691 = vmatpush1.msra.mxu0 0.0
    %2692 = vmatprep.subr.mxu0 0.0
    %2693 = vmatpush1.msra.mxu0 0.0
    %2694 = vmatprep.subr.mxu0 0.0
    %2695 = vmatpush1.msra.mxu0 0.0
    %2696 = vmatprep.subr.mxu0 0.0
    %2697 = vmatpush1.msra.mxu0 0.0
    %2698 = vmatprep.subr.mxu0 0.0
    %2699 = vmatpush1.msra.mxu0 0.0
    %2700 = vmatprep.subr.mxu0 0.0
    %2701 = vmatpush1.msra.mxu0 0.0
    %2702 = vmatprep.subr.mxu0 0.0
    %2703 = vmatpush1.msra.mxu0 0.0
    %2704 = vmatprep.subr.mxu0 0.0
    %2705 = vmatpush1.msra.mxu0 0.0
    %2706 = vmatprep.subr.mxu0 0.0
    %2707 = vmatpush1.msra.mxu0 0.0
    %2708 = vmatprep.subr.mxu0 0.0
    %2709 = vmatpush1.msra.mxu0 0.0
    %2710 = vmatprep.subr.mxu0 0.0
    %2711 = vmatpush1.msra.mxu0 0.0
    %2712 = vmatprep.subr.mxu0 0.0
    %2713 = vmatpush1.msra.mxu0 0.0
    %2714 = vmatprep.mubr.f32.mxu0 0.0
    %2715 = vmatmul.mubr.f32.gmra.mrb[0].mxu0 %v2437
    %v2716 = vpop.f32.mrb[0].mxu0
    %v2717 = vadd.f32 %v2576, %v2716
    %v2718 = vpop.f32.mrb[0].mxu0
    %2719 = vdwg.mxu0
    %v2720 = vadd.f32 %v2646, %v1048
    %v2721 = vadd.f32 %v2648, %v1052
    %v2722 = vadd.f32 %v2717, %v1056
    %v2723 = vxor.u32 %v2720, 2147483648
    %v2724 = vxor.u32 %v2721, 2147483648
    %v2725 = vmul.f32 %v2723, 1.442695
    %v2726 = vpow.pop %v2725
    %v2727 = vmul.f32 %v2724, 1.442695
    %v2728 = vpow.pop %v2727
    %v2729 = vadd.f32 %v2726, 1.0
    %v2730 = vadd.f32 %v2728, 1.0
    %v2731 = vrcp.pop %v2729
    %v2732 = vmul.f32 1.0, %v2731
    %v2733 = vrcp.pop %v2730
    %v2734 = vmul.f32 1.0, %v2733
    %2735 = vmatprep.subr.mxu0 0.0
    %2736 = vmatpush1.msra.mxu0 %v1063
    %2737 = vmatprep.subr.mxu0 0.0
    %2738 = vmatpush1.msra.mxu0 %v1064
    %2739 = vmatprep.subr.mxu0 0.0
    %2740 = vmatpush1.msra.mxu0 %v1065
    %2741 = vmatprep.subr.mxu0 0.0
    %2742 = vmatpush1.msra.mxu0 %v1066
    %2743 = vmatprep.subr.mxu0 0.0
    %2744 = vmatpush1.msra.mxu0 %v1067
    %2745 = vmatprep.subr.mxu0 0.0
    %2746 = vmatpush1.msra.mxu0 %v1068
    %2747 = vmatprep.subr.mxu0 0.0
    %2748 = vmatpush1.msra.mxu0 %v1069
    %2749 = vmatprep.subr.mxu0 0.0
    %2750 = vmatpush1.msra.mxu0 %v1070
    %2751 = vmatprep.subr.mxu0 0.0
    %2752 = vmatpush1.msra.mxu0 %v1071
    %2753 = vmatprep.subr.mxu0 0.0
    %2754 = vmatpush1.msra.mxu0 %v1072
    %2755 = vmatprep.subr.mxu0 0.0
    %2756 = vmatpush1.msra.mxu0 %v1073
    %2757 = vmatprep.subr.mxu0 0.0
    %2758 = vmatpush1.msra.mxu0 %v1074
    %2759 = vmatprep.subr.mxu0 0.0
    %2760 = vmatpush1.msra.mxu0 %v1075
    %2761 = vmatprep.subr.mxu0 0.0
    %2762 = vmatpush1.msra.mxu0 %v1076
    %2763 = vmatprep.subr.mxu0 0.0
    %2764 = vmatpush1.msra.mxu0 %v1077
    %2765 = vmatprep.subr.mxu0 0.0
    %2766 = vmatpush1.msra.mxu0 %v1078
    %2767 = vmatprep.subr.mxu0 0.0
    %2768 = vmatpush1.msra.mxu0 0.0
    %2769 = vmatprep.subr.mxu0 0.0
    %2770 = vmatpush1.msra.mxu0 0.0
    %2771 = vmatprep.subr.mxu0 0.0
    %2772 = vmatpush1.msra.mxu0 0.0
    %2773 = vmatprep.subr.mxu0 0.0
    %2774 = vmatpush1.msra.mxu0 0.0
    %2775 = vmatprep.subr.mxu0 0.0
    %2776 = vmatpush1.msra.mxu0 0.0
    %2777 = vmatprep.subr.mxu0 0.0
    %2778 = vmatpush1.msra.mxu0 0.0
    %2779 = vmatprep.subr.mxu0 0.0
    %2780 = vmatpush1.msra.mxu0 0.0
    %2781 = vmatprep.subr.mxu0 0.0
    %2782 = vmatpush1.msra.mxu0 0.0
    %2783 = vmatprep.subr.mxu0 0.0
    %2784 = vmatpush1.msra.mxu0 0.0
    %2785 = vmatprep.subr.mxu0 0.0
    %2786 = vmatpush1.msra.mxu0 0.0
    %2787 = vmatprep.subr.mxu0 0.0
    %2788 = vmatpush1.msra.mxu0 0.0
    %2789 = vmatprep.subr.mxu0 0.0
    %2790 = vmatpush1.msra.mxu0 0.0
    %2791 = vmatprep.subr.mxu0 0.0
    %2792 = vmatpush1.msra.mxu0 0.0
    %2793 = vmatprep.subr.mxu0 0.0
    %2794 = vmatpush1.msra.mxu0 0.0
    %2795 = vmatprep.subr.mxu0 0.0
    %2796 = vmatpush1.msra.mxu0 0.0
    %2797 = vmatprep.subr.mxu0 0.0
    %2798 = vmatpush1.msra.mxu0 0.0
    %2799 = vmatprep.mubr.f32.mxu0 0.0
    %2800 = vmatmul.mubr.f32.gmra.mrb[0].mxu0 %v2266
    %v2801 = vpop.f32.mrb[0].mxu0
    %v2802 = vadd.f32 %v1095, %v2801
    %v2803 = vpop.f32.mrb[0].mxu0
    %2804 = vdwg.mxu0
    %v2805 = vmul.f32 %v2732, %v2802
    %v2806 = vadd.f32 %v2722, %v2805
    %v2807 = vtanh.pop %v2806
    %v2808 = vsub.f32 1.0, %v2734
    %v2809 = vmul.f32 %v2808, %v2807
    %v2810 = vmul.f32 %v2734, %v2266
    %v2811 = vadd.f32 %v2809, %v2810
    %v2812 = vsel %vm2267, %v2811, %v2266
    %vm2813 = vcmp.gt.s32.totalorder %v440, 4
    %s2814 = smul.u32 4, 3
    %s2815 = smul.addr %s2814, 8
    %s2816 = scalar_lea.vmem [#allocation2], %s2815
    %v2817 = vld [vmem:[%s2816] sm:$0xff]
    %v2818 = vld [vmem:[%s2816 + $0x8] sm:$0xff]
    %v2819 = vld [vmem:[%s2816 + $0x10] sm:$0xff]
    %2820 = vmatprep.subr.mxu0 %v449
    %2821 = vmatpush1.msra.mxu0 %v448
    %2822 = vmatprep.subr.mxu0 %v452
    %2823 = vmatpush1.msra.mxu0 %v451
    %2824 = vmatprep.subr.mxu0 %v455
    %2825 = vmatpush1.msra.mxu0 %v454
    %2826 = vmatprep.subr.mxu0 %v458
    %2827 = vmatpush1.msra.mxu0 %v457
    %2828 = vmatprep.subr.mxu0 %v461
    %2829 = vmatpush1.msra.mxu0 %v460
    %2830 = vmatprep.subr.mxu0 %v464
    %2831 = vmatpush1.msra.mxu0 %v463
    %2832 = vmatprep.subr.mxu0 %v467
    %2833 = vmatpush1.msra.mxu0 %v466
    %2834 = vmatprep.subr.mxu0 %v470
    %2835 = vmatpush1.msra.mxu0 %v469
    %2836 = vmatprep.subr.mxu0 %v473
    %2837 = vmatpush1.msra.mxu0 %v472
    %2838 = vmatprep.subr.mxu0 %v476
    %2839 = vmatpush1.msra.mxu0 %v475
    %2840 = vmatprep.subr.mxu0 %v479
    %2841 = vmatpush1.msra.mxu0 %v478
    %2842 = vmatprep.subr.mxu0 %v482
    %2843 = vmatpush1.msra.mxu0 %v481
    %2844 = vmatprep.subr.mxu0 %v485
    %2845 = vmatpush1.msra.mxu0 %v484
    %2846 = vmatprep.subr.mxu0 %v488
    %2847 = vmatpush1.msra.mxu0 %v487
    %2848 = vmatprep.subr.mxu0 %v491
    %2849 = vmatpush1.msra.mxu0 %v490
    %2850 = vmatprep.subr.mxu0 %v494
    %2851 = vmatpush1.msra.mxu0 %v493
    %2852 = vmatprep.subr.mxu0 0.0
    %2853 = vmatpush1.msra.mxu0 0.0
    %2854 = vmatprep.subr.mxu0 0.0
    %2855 = vmatpush1.msra.mxu0 0.0
    %2856 = vmatprep.subr.mxu0 0.0
    %2857 = vmatpush1.msra.mxu0 0.0
    %2858 = vmatprep.subr.mxu0 0.0
    %2859 = vmatpush1.msra.mxu0 0.0
    %2860 = vmatprep.subr.mxu0 0.0
    %2861 = vmatpush1.msra.mxu0 0.0
    %2862 = vmatprep.subr.mxu0 0.0
    %2863 = vmatpush1.msra.mxu0 0.0
    %2864 = vmatprep.subr.mxu0 0.0
    %2865 = vmatpush1.msra.mxu0 0.0
    %2866 = vmatprep.subr.mxu0 0.0
    %2867 = vmatpush1.msra.mxu0 0.0
    %2868 = vmatprep.subr.mxu0 0.0
    %2869 = vmatpush1.msra.mxu0 0.0
    %2870 = vmatprep.subr.mxu0 0.0
    %2871 = vmatpush1.msra.mxu0 0.0
    %2872 = vmatprep.subr.mxu0 0.0
    %2873 = vmatpush1.msra.mxu0 0.0
    %2874 = vmatprep.subr.mxu0 0.0
    %2875 = vmatpush1.msra.mxu0 0.0
    %2876 = vmatprep.subr.mxu0 0.0
    %2877 = vmatpush1.msra.mxu0 0.0
    %2878 = vmatprep.subr.mxu0 0.0
    %2879 = vmatpush1.msra.mxu0 0.0
    %2880 = vmatprep.subr.mxu0 0.0
    %2881 = vmatpush1.msra.mxu0 0.0
    %2882 = vmatprep.subr.mxu0 0.0
    %2883 = vmatpush1.msra.mxu0 0.0
    %2884 = vmatprep.mubr.f32.mxu0 0.0
    %2885 = vmatmul.mubr.f32.gmra.mrb[0].mxu0 %v2437
    %v2886 = vpop.f32.mrb[0].mxu0
    %v2887 = vadd.f32 0.0, %v2886
    %v2888 = vpop.f32.mrb[0].mxu0
    %v2889 = vadd.f32 0.0, %v2888
    %2890 = vdwg.mxu0
    %2891 = vmatprep.subr.mxu0 0.0
    %2892 = vmatpush1.msra.mxu0 %v450
    %2893 = vmatprep.subr.mxu0 0.0
    %2894 = vmatpush1.msra.mxu0 %v453
    %2895 = vmatprep.subr.mxu0 0.0
    %2896 = vmatpush1.msra.mxu0 %v456
    %2897 = vmatprep.subr.mxu0 0.0
    %2898 = vmatpush1.msra.mxu0 %v459
    %2899 = vmatprep.subr.mxu0 0.0
    %2900 = vmatpush1.msra.mxu0 %v462
    %2901 = vmatprep.subr.mxu0 0.0
    %2902 = vmatpush1.msra.mxu0 %v465
    %2903 = vmatprep.subr.mxu0 0.0
    %2904 = vmatpush1.msra.mxu0 %v468
    %2905 = vmatprep.subr.mxu0 0.0
    %2906 = vmatpush1.msra.mxu0 %v471
    %2907 = vmatprep.subr.mxu0 0.0
    %2908 = vmatpush1.msra.mxu0 %v474
    %2909 = vmatprep.subr.mxu0 0.0
    %2910 = vmatpush1.msra.mxu0 %v477
    %2911 = vmatprep.subr.mxu0 0.0
    %2912 = vmatpush1.msra.mxu0 %v480
    %2913 = vmatprep.subr.mxu0 0.0
    %2914 = vmatpush1.msra.mxu0 %v483
    %2915 = vmatprep.subr.mxu0 0.0
    %2916 = vmatpush1.msra.mxu0 %v486
    %2917 = vmatprep.subr.mxu0 0.0
    %2918 = vmatpush1.msra.mxu0 %v489
    %2919 = vmatprep.subr.mxu0 0.0
    %2920 = vmatpush1.msra.mxu0 %v492
    %2921 = vmatprep.subr.mxu0 0.0
    %2922 = vmatpush1.msra.mxu0 %v495
    %2923 = vmatprep.subr.mxu0 0.0
    %2924 = vmatpush1.msra.mxu0 0.0
    %2925 = vmatprep.subr.mxu0 0.0
    %2926 = vmatpush1.msra.mxu0 0.0
    %2927 = vmatprep.subr.mxu0 0.0
    %2928 = vmatpush1.msra.mxu0 0.0
    %2929 = vmatprep.subr.mxu0 0.0
    %2930 = vmatpush1.msra.mxu0 0.0
    %2931 = vmatprep.subr.mxu0 0.0
    %2932 = vmatpush1.msra.mxu0 0.0
    %2933 = vmatprep.subr.mxu0 0.0
    %2934 = vmatpush1.msra.mxu0 0.0
    %2935 = vmatprep.subr.mxu0 0.0
    %2936 = vmatpush1.msra.mxu0 0.0
    %2937 = vmatprep.subr.mxu0 0.0
    %2938 = vmatpush1.msra.mxu0 0.0
    %2939 = vmatprep.subr.mxu0 0.0
    %2940 = vmatpush1.msra.mxu0 0.0
    %2941 = vmatprep.subr.mxu0 0.0
    %2942 = vmatpush1.msra.mxu0 0.0
    %2943 = vmatprep.subr.mxu0 0.0
    %2944 = vmatpush1.msra.mxu0 0.0
    %2945 = vmatprep.subr.mxu0 0.0
    %2946 = vmatpush1.msra.mxu0 0.0
    %2947 = vmatprep.subr.mxu0 0.0
    %2948 = vmatpush1.msra.mxu0 0.0
    %2949 = vmatprep.subr.mxu0 0.0
    %2950 = vmatpush1.msra.mxu0 0.0
    %2951 = vmatprep.subr.mxu0 0.0
    %2952 = vmatpush1.msra.mxu0 0.0
    %2953 = vmatprep.subr.mxu0 0.0
    %2954 = vmatpush1.msra.mxu0 0.0
    %2955 = vmatprep.mubr.f32.mxu0 0.0
    %2956 = vmatmul.mubr.f32.gmra.mrb[0].mxu0 %v2437
    %v2957 = vpop.f32.mrb[0].mxu0
    %v2958 = vadd.f32 0.0, %v2957
    %v2959 = vpop.f32.mrb[0].mxu0
    %2960 = vdwg.mxu0
    %v2961 = vadd.f32 %v2817, %v2887
    %v2962 = vadd.f32 %v2818, %v2889
    %v2963 = vxor.u32 %v2961, 2147483648
    %v2964 = vxor.u32 %v2962, 2147483648
    %v2965 = vmul.f32 %v2963, 1.442695
    %v2966 = vpow.pop %v2965
    %v2967 = vmul.f32 %v2964, 1.442695
    %v2968 = vpow.pop %v2967
    %v2969 = vadd.f32 %v2966, 1.0
    %v2970 = vadd.f32 %v2968, 1.0
    %v2971 = vrcp.pop %v2969
    %v2972 = vmul.f32 1.0, %v2971
    %v2973 = vrcp.pop %v2970
    %v2974 = vmul.f32 1.0, %v2973
    %v2975 = vadd.f32 %v2958, %v655
    %v2976 = vmul.f32 %v2972, %v2975
    %v2977 = vadd.f32 %v2819, %v2976
    %v2978 = vtanh.pop %v2977
    %v2979 = vsub.f32 1.0, %v2974
    %v2980 = vmul.f32 %v2979, %v2978
    %v2981 = vmul.f32 %v2974, %v2437
    %v2982 = vadd.f32 %v2980, %v2981
    %v2983 = vsel %vm2813, %v2982, %v2437
    %2984 = vmatprep.subr.mxu0 %v715
    %2985 = vmatpush1.msra.mxu0 %v714
    %2986 = vmatprep.subr.mxu0 %v718
    %2987 = vmatpush1.msra.mxu0 %v717
    %2988 = vmatprep.subr.mxu0 %v721
    %2989 = vmatpush1.msra.mxu0 %v720
    %2990 = vmatprep.subr.mxu0 %v724
    %2991 = vmatpush1.msra.mxu0 %v723
    %2992 = vmatprep.subr.mxu0 %v727
    %2993 = vmatpush1.msra.mxu0 %v726
    %2994 = vmatprep.subr.mxu0 %v730
    %2995 = vmatpush1.msra.mxu0 %v729
    %2996 = vmatprep.subr.mxu0 %v733
    %2997 = vmatpush1.msra.mxu0 %v732
    %2998 = vmatprep.subr.mxu0 %v736
    %2999 = vmatpush1.msra.mxu0 %v735
    %3000 = vmatprep.subr.mxu0 %v739
    %3001 = vmatpush1.msra.mxu0 %v738
    %3002 = vmatprep.subr.mxu0 %v742
    %3003 = vmatpush1.msra.mxu0 %v741
    %3004 = vmatprep.subr.mxu0 %v745
    %3005 = vmatpush1.msra.mxu0 %v744
    %3006 = vmatprep.subr.mxu0 %v748
    %3007 = vmatpush1.msra.mxu0 %v747
    %3008 = vmatprep.subr.mxu0 %v751
    %3009 = vmatpush1.msra.mxu0 %v750
    %3010 = vmatprep.subr.mxu0 %v754
    %3011 = vmatpush1.msra.mxu0 %v753
    %3012 = vmatprep.subr.mxu0 %v757
    %3013 = vmatpush1.msra.mxu0 %v756
    %3014 = vmatprep.subr.mxu0 %v760
    %3015 = vmatpush1.msra.mxu0 %v759
    %3016 = vmatprep.subr.mxu0 0.0
    %3017 = vmatpush1.msra.mxu0 0.0
    %3018 = vmatprep.subr.mxu0 0.0
    %3019 = vmatpush1.msra.mxu0 0.0
    %3020 = vmatprep.subr.mxu0 0.0
    %3021 = vmatpush1.msra.mxu0 0.0
    %3022 = vmatprep.subr.mxu0 0.0
    %3023 = vmatpush1.msra.mxu0 0.0
    %3024 = vmatprep.subr.mxu0 0.0
    %3025 = vmatpush1.msra.mxu0 0.0
    %3026 = vmatprep.subr.mxu0 0.0
    %3027 = vmatpush1.msra.mxu0 0.0
    %3028 = vmatprep.subr.mxu0 0.0
    %3029 = vmatpush1.msra.mxu0 0.0
    %3030 = vmatprep.subr.mxu0 0.0
    %3031 = vmatpush1.msra.mxu0 0.0
    %3032 = vmatprep.subr.mxu0 0.0
    %3033 = vmatpush1.msra.mxu0 0.0
    %3034 = vmatprep.subr.mxu0 0.0
    %3035 = vmatpush1.msra.mxu0 0.0
    %3036 = vmatprep.subr.mxu0 0.0
    %3037 = vmatpush1.msra.mxu0 0.0
    %3038 = vmatprep.subr.mxu0 0.0
    %3039 = vmatpush1.msra.mxu0 0.0
    %3040 = vmatprep.subr.mxu0 0.0
    %3041 = vmatpush1.msra.mxu0 0.0
    %3042 = vmatprep.subr.mxu0 0.0
    %3043 = vmatpush1.msra.mxu0 0.0
    %3044 = vmatprep.subr.mxu0 0.0
    %3045 = vmatpush1.msra.mxu0 0.0
    %3046 = vmatprep.subr.mxu0 0.0
    %3047 = vmatpush1.msra.mxu0 0.0
    %3048 = vmatprep.mubr.f32.mxu0 0.0
    %3049 = vmatmul.mubr.f32.gmra.mrb[0].mxu0 %v2812
    %v3050 = vpop.f32.mrb[0].mxu0
    %v3051 = vadd.f32 0.0, %v3050
    %v3052 = vpop.f32.mrb[0].mxu0
    %v3053 = vadd.f32 0.0, %v3052
    %3054 = vdwg.mxu0
    %3055 = vmatprep.subr.mxu0 0.0
    %3056 = vmatpush1.msra.mxu0 %v716
    %3057 = vmatprep.subr.mxu0 0.0
    %3058 = vmatpush1.msra.mxu0 %v719
    %3059 = vmatprep.subr.mxu0 0.0
    %3060 = vmatpush1.msra.mxu0 %v722
    %3061 = vmatprep.subr.mxu0 0.0
    %3062 = vmatpush1.msra.mxu0 %v725
    %3063 = vmatprep.subr.mxu0 0.0
    %3064 = vmatpush1.msra.mxu0 %v728
    %3065 = vmatprep.subr.mxu0 0.0
    %3066 = vmatpush1.msra.mxu0 %v731
    %3067 = vmatprep.subr.mxu0 0.0
    %3068 = vmatpush1.msra.mxu0 %v734
    %3069 = vmatprep.subr.mxu0 0.0
    %3070 = vmatpush1.msra.mxu0 %v737
    %3071 = vmatprep.subr.mxu0 0.0
    %3072 = vmatpush1.msra.mxu0 %v740
    %3073 = vmatprep.subr.mxu0 0.0
    %3074 = vmatpush1.msra.mxu0 %v743
    %3075 = vmatprep.subr.mxu0 0.0
    %3076 = vmatpush1.msra.mxu0 %v746
    %3077 = vmatprep.subr.mxu0 0.0
    %3078 = vmatpush1.msra.mxu0 %v749
    %3079 = vmatprep.subr.mxu0 0.0
    %3080 = vmatpush1.msra.mxu0 %v752
    %3081 = vmatprep.subr.mxu0 0.0
    %3082 = vmatpush1.msra.mxu0 %v755
    %3083 = vmatprep.subr.mxu0 0.0
    %3084 = vmatpush1.msra.mxu0 %v758
    %3085 = vmatprep.subr.mxu0 0.0
    %3086 = vmatpush1.msra.mxu0 %v761
    %3087 = vmatprep.subr.mxu0 0.0
    %3088 = vmatpush1.msra.mxu0 0.0
    %3089 = vmatprep.subr.mxu0 0.0
    %3090 = vmatpush1.msra.mxu0 0.0
    %3091 = vmatprep.subr.mxu0 0.0
    %3092 = vmatpush1.msra.mxu0 0.0
    %3093 = vmatprep.subr.mxu0 0.0
    %3094 = vmatpush1.msra.mxu0 0.0
    %3095 = vmatprep.subr.mxu0 0.0
    %3096 = vmatpush1.msra.mxu0 0.0
    %3097 = vmatprep.subr.mxu0 0.0
    %3098 = vmatpush1.msra.mxu0 0.0
    %3099 = vmatprep.subr.mxu0 0.0
    %3100 = vmatpush1.msra.mxu0 0.0
    %3101 = vmatprep.subr.mxu0 0.0
    %3102 = vmatpush1.msra.mxu0 0.0
    %3103 = vmatprep.subr.mxu0 0.0
    %3104 = vmatpush1.msra.mxu0 0.0
    %3105 = vmatprep.subr.mxu0 0.0
    %3106 = vmatpush1.msra.mxu0 0.0
    %3107 = vmatprep.subr.mxu0 0.0
    %3108 = vmatpush1.msra.mxu0 0.0
    %3109 = vmatprep.subr.mxu0 0.0
    %3110 = vmatpush1.msra.mxu0 0.0
    %3111 = vmatprep.subr.mxu0 0.0
    %3112 = vmatpush1.msra.mxu0 0.0
    %3113 = vmatprep.subr.mxu0 0.0
    %3114 = vmatpush1.msra.mxu0 0.0
    %3115 = vmatprep.subr.mxu0 0.0
    %3116 = vmatpush1.msra.mxu0 0.0
    %3117 = vmatprep.subr.mxu0 0.0
    %3118 = vmatpush1.msra.mxu0 0.0
    %3119 = vmatprep.mubr.f32.mxu0 0.0
    %3120 = vmatmul.mubr.f32.gmra.mrb[0].mxu0 %v2812
    %v3121 = vpop.f32.mrb[0].mxu0
    %v3122 = vadd.f32 0.0, %v3121
    %v3123 = vpop.f32.mrb[0].mxu0
    %3124 = vdwg.mxu0
    %3125 = vmatprep.subr.mxu0 %v667
    %3126 = vmatpush1.msra.mxu0 %v666
    %3127 = vmatprep.subr.mxu0 %v670
    %3128 = vmatpush1.msra.mxu0 %v669
    %3129 = vmatprep.subr.mxu0 %v673
    %3130 = vmatpush1.msra.mxu0 %v672
    %3131 = vmatprep.subr.mxu0 %v676
    %3132 = vmatpush1.msra.mxu0 %v675
    %3133 = vmatprep.subr.mxu0 %v679
    %3134 = vmatpush1.msra.mxu0 %v678
    %3135 = vmatprep.subr.mxu0 %v682
    %3136 = vmatpush1.msra.mxu0 %v681
    %3137 = vmatprep.subr.mxu0 %v685
    %3138 = vmatpush1.msra.mxu0 %v684
    %3139 = vmatprep.subr.mxu0 %v688
    %3140 = vmatpush1.msra.mxu0 %v687
    %3141 = vmatprep.subr.mxu0 %v691
    %3142 = vmatpush1.msra.mxu0 %v690
    %3143 = vmatprep.subr.mxu0 %v694
    %3144 = vmatpush1.msra.mxu0 %v693
    %3145 = vmatprep.subr.mxu0 %v697
    %3146 = vmatpush1.msra.mxu0 %v696
    %3147 = vmatprep.subr.mxu0 %v700
    %3148 = vmatpush1.msra.mxu0 %v699
    %3149 = vmatprep.subr.mxu0 %v703
    %3150 = vmatpush1.msra.mxu0 %v702
    %3151 = vmatprep.subr.mxu0 %v706
    %3152 = vmatpush1.msra.mxu0 %v705
    %3153 = vmatprep.subr.mxu0 %v709
    %3154 = vmatpush1.msra.mxu0 %v708
    %3155 = vmatprep.subr.mxu0 %v712
    %3156 = vmatpush1.msra.mxu0 %v711
    %3157 = vmatprep.subr.mxu0 0.0
    %3158 = vmatpush1.msra.mxu0 0.0
    %3159 = vmatprep.subr.mxu0 0.0
    %3160 = vmatpush1.msra.mxu0 0.0
    %3161 = vmatprep.subr.mxu0 0.0
    %3162 = vmatpush1.msra.mxu0 0.0
    %3163 = vmatprep.subr.mxu0 0.0
    %3164 = vmatpush1.msra.mxu0 0.0
    %3165 = vmatprep.subr.mxu0 0.0
    %3166 = vmatpush1.msra.mxu0 0.0
    %3167 = vmatprep.subr.mxu0 0.0
    %3168 = vmatpush1.msra.mxu0 0.0
    %3169 = vmatprep.subr.mxu0 0.0
    %3170 = vmatpush1.msra.mxu0 0.0
    %3171 = vmatprep.subr.mxu0 0.0
    %3172 = vmatpush1.msra.mxu0 0.0
    %3173 = vmatprep.subr.mxu0 0.0
    %3174 = vmatpush1.msra.mxu0 0.0
    %3175 = vmatprep.subr.mxu0 0.0
    %3176 = vmatpush1.msra.mxu0 0.0
    %3177 = vmatprep.subr.mxu0 0.0
    %3178 = vmatpush1.msra.mxu0 0.0
    %3179 = vmatprep.subr.mxu0 0.0
    %3180 = vmatpush1.msra.mxu0 0.0
    %3181 = vmatprep.subr.mxu0 0.0
    %3182 = vmatpush1.msra.mxu0 0.0
    %3183 = vmatprep.subr.mxu0 0.0
    %3184 = vmatpush1.msra.mxu0 0.0
    %3185 = vmatprep.subr.mxu0 0.0
    %3186 = vmatpush1.msra.mxu0 0.0
    %3187 = vmatprep.subr.mxu0 0.0
    %3188 = vmatpush1.msra.mxu0 0.0
    %3189 = vmatprep.mubr.f32.mxu0 0.0
    %3190 = vmatmul.mubr.f32.gmra.mrb[0].mxu0 %v2983
    %v3191 = vpop.f32.mrb[0].mxu0
    %v3192 = vadd.f32 %v3051, %v3191
    %v3193 = vpop.f32.mrb[0].mxu0
    %v3194 = vadd.f32 %v3053, %v3193
    %3195 = vdwg.mxu0
    %3196 = vmatprep.subr.mxu0 0.0
    %3197 = vmatpush1.msra.mxu0 %v668
    %3198 = vmatprep.subr.mxu0 0.0
    %3199 = vmatpush1.msra.mxu0 %v671
    %3200 = vmatprep.subr.mxu0 0.0
    %3201 = vmatpush1.msra.mxu0 %v674
    %3202 = vmatprep.subr.mxu0 0.0
    %3203 = vmatpush1.msra.mxu0 %v677
    %3204 = vmatprep.subr.mxu0 0.0
    %3205 = vmatpush1.msra.mxu0 %v680
    %3206 = vmatprep.subr.mxu0 0.0
    %3207 = vmatpush1.msra.mxu0 %v683
    %3208 = vmatprep.subr.mxu0 0.0
    %3209 = vmatpush1.msra.mxu0 %v686
    %3210 = vmatprep.subr.mxu0 0.0
    %3211 = vmatpush1.msra.mxu0 %v689
    %3212 = vmatprep.subr.mxu0 0.0
    %3213 = vmatpush1.msra.mxu0 %v692
    %3214 = vmatprep.subr.mxu0 0.0
    %3215 = vmatpush1.msra.mxu0 %v695
    %3216 = vmatprep.subr.mxu0 0.0
    %3217 = vmatpush1.msra.mxu0 %v698
    %3218 = vmatprep.subr.mxu0 0.0
    %3219 = vmatpush1.msra.mxu0 %v701
    %3220 = vmatprep.subr.mxu0 0.0
    %3221 = vmatpush1.msra.mxu0 %v704
    %3222 = vmatprep.subr.mxu0 0.0
    %3223 = vmatpush1.msra.mxu0 %v707
    %3224 = vmatprep.subr.mxu0 0.0
    %3225 = vmatpush1.msra.mxu0 %v710
    %3226 = vmatprep.subr.mxu0 0.0
    %3227 = vmatpush1.msra.mxu0 %v713
    %3228 = vmatprep.subr.mxu0 0.0
    %3229 = vmatpush1.msra.mxu0 0.0
    %3230 = vmatprep.subr.mxu0 0.0
    %3231 = vmatpush1.msra.mxu0 0.0
    %3232 = vmatprep.subr.mxu0 0.0
    %3233 = vmatpush1.msra.mxu0 0.0
    %3234 = vmatprep.subr.mxu0 0.0
    %3235 = vmatpush1.msra.mxu0 0.0
    %3236 = vmatprep.subr.mxu0 0.0
    %3237 = vmatpush1.msra.mxu0 0.0
    %3238 = vmatprep.subr.mxu0 0.0
    %3239 = vmatpush1.msra.mxu0 0.0
    %3240 = vmatprep.subr.mxu0 0.0
    %3241 = vmatpush1.msra.mxu0 0.0
    %3242 = vmatprep.subr.mxu0 0.0
    %3243 = vmatpush1.msra.mxu0 0.0
    %3244 = vmatprep.subr.mxu0 0.0
    %3245 = vmatpush1.msra.mxu0 0.0
    %3246 = vmatprep.subr.mxu0 0.0
    %3247 = vmatpush1.msra.mxu0 0.0
    %3248 = vmatprep.subr.mxu0 0.0
    %3249 = vmatpush1.msra.mxu0 0.0
    %3250 = vmatprep.subr.mxu0 0.0
    %3251 = vmatpush1.msra.mxu0 0.0
    %3252 = vmatprep.subr.mxu0 0.0
    %3253 = vmatpush1.msra.mxu0 0.0
    %3254 = vmatprep.subr.mxu0 0.0
    %3255 = vmatpush1.msra.mxu0 0.0
    %3256 = vmatprep.subr.mxu0 0.0
    %3257 = vmatpush1.msra.mxu0 0.0
    %3258 = vmatprep.subr.mxu0 0.0
    %3259 = vmatpush1.msra.mxu0 0.0
    %3260 = vmatprep.mubr.f32.mxu0 0.0
    %3261 = vmatmul.mubr.f32.gmra.mrb[0].mxu0 %v2983
    %v3262 = vpop.f32.mrb[0].mxu0
    %v3263 = vadd.f32 %v3122, %v3262
    %v3264 = vpop.f32.mrb[0].mxu0
    %3265 = vdwg.mxu0
    %v3266 = vadd.f32 %v3192, %v1048
    %v3267 = vadd.f32 %v3194, %v1052
    %v3268 = vadd.f32 %v3263, %v1056
    %v3269 = vxor.u32 %v3266, 2147483648
    %v3270 = vxor.u32 %v3267, 2147483648
    %v3271 = vmul.f32 %v3269, 1.442695
    %v3272 = vpow.pop %v3271
    %v3273 = vmul.f32 %v3270, 1.442695
    %v3274 = vpow.pop %v3273
    %v3275 = vadd.f32 %v3272, 1.0
    %v3276 = vadd.f32 %v3274, 1.0
    %v3277 = vrcp.pop %v3275
    %v3278 = vmul.f32 1.0, %v3277
    %v3279 = vrcp.pop %v3276
    %v3280 = vmul.f32 1.0, %v3279
    %3281 = vmatprep.subr.mxu0 0.0
    %3282 = vmatpush1.msra.mxu0 %v1063
    %3283 = vmatprep.subr.mxu0 0.0
    %3284 = vmatpush1.msra.mxu0 %v1064
    %3285 = vmatprep.subr.mxu0 0.0
    %3286 = vmatpush1.msra.mxu0 %v1065
    %3287 = vmatprep.subr.mxu0 0.0
    %3288 = vmatpush1.msra.mxu0 %v1066
    %3289 = vmatprep.subr.mxu0 0.0
    %3290 = vmatpush1.msra.mxu0 %v1067
    %3291 = vmatprep.subr.mxu0 0.0
    %3292 = vmatpush1.msra.mxu0 %v1068
    %3293 = vmatprep.subr.mxu0 0.0
    %3294 = vmatpush1.msra.mxu0 %v1069
    %3295 = vmatprep.subr.mxu0 0.0
    %3296 = vmatpush1.msra.mxu0 %v1070
    %3297 = vmatprep.subr.mxu0 0.0
    %3298 = vmatpush1.msra.mxu0 %v1071
    %3299 = vmatprep.subr.mxu0 0.0
    %3300 = vmatpush1.msra.mxu0 %v1072
    %3301 = vmatprep.subr.mxu0 0.0
    %3302 = vmatpush1.msra.mxu0 %v1073
    %3303 = vmatprep.subr.mxu0 0.0
    %3304 = vmatpush1.msra.mxu0 %v1074
    %3305 = vmatprep.subr.mxu0 0.0
    %3306 = vmatpush1.msra.mxu0 %v1075
    %3307 = vmatprep.subr.mxu0 0.0
    %3308 = vmatpush1.msra.mxu0 %v1076
    %3309 = vmatprep.subr.mxu0 0.0
    %3310 = vmatpush1.msra.mxu0 %v1077
    %3311 = vmatprep.subr.mxu0 0.0
    %3312 = vmatpush1.msra.mxu0 %v1078
    %3313 = vmatprep.subr.mxu0 0.0
    %3314 = vmatpush1.msra.mxu0 0.0
    %3315 = vmatprep.subr.mxu0 0.0
    %3316 = vmatpush1.msra.mxu0 0.0
    %3317 = vmatprep.subr.mxu0 0.0
    %3318 = vmatpush1.msra.mxu0 0.0
    %3319 = vmatprep.subr.mxu0 0.0
    %3320 = vmatpush1.msra.mxu0 0.0
    %3321 = vmatprep.subr.mxu0 0.0
    %3322 = vmatpush1.msra.mxu0 0.0
    %3323 = vmatprep.subr.mxu0 0.0
    %3324 = vmatpush1.msra.mxu0 0.0
    %3325 = vmatprep.subr.mxu0 0.0
    %3326 = vmatpush1.msra.mxu0 0.0
    %3327 = vmatprep.subr.mxu0 0.0
    %3328 = vmatpush1.msra.mxu0 0.0
    %3329 = vmatprep.subr.mxu0 0.0
    %3330 = vmatpush1.msra.mxu0 0.0
    %3331 = vmatprep.subr.mxu0 0.0
    %3332 = vmatpush1.msra.mxu0 0.0
    %3333 = vmatprep.subr.mxu0 0.0
    %3334 = vmatpush1.msra.mxu0 0.0
    %3335 = vmatprep.subr.mxu0 0.0
    %3336 = vmatpush1.msra.mxu0 0.0
    %3337 = vmatprep.subr.mxu0 0.0
    %3338 = vmatpush1.msra.mxu0 0.0
    %3339 = vmatprep.subr.mxu0 0.0
    %3340 = vmatpush1.msra.mxu0 0.0
    %3341 = vmatprep.subr.mxu0 0.0
    %3342 = vmatpush1.msra.mxu0 0.0
    %3343 = vmatprep.subr.mxu0 0.0
    %3344 = vmatpush1.msra.mxu0 0.0
    %3345 = vmatprep.mubr.f32.mxu0 0.0
    %3346 = vmatmul.mubr.f32.gmra.mrb[0].mxu0 %v2812
    %v3347 = vpop.f32.mrb[0].mxu0
    %v3348 = vadd.f32 %v1095, %v3347
    %v3349 = vpop.f32.mrb[0].mxu0
    %3350 = vdwg.mxu0
    %v3351 = vmul.f32 %v3278, %v3348
    %v3352 = vadd.f32 %v3268, %v3351
    %v3353 = vtanh.pop %v3352
    %v3354 = vsub.f32 1.0, %v3280
    %v3355 = vmul.f32 %v3354, %v3353
    %v3356 = vmul.f32 %v3280, %v2812
    %v3357 = vadd.f32 %v3355, %v3356
    %v3358 = vsel %vm2813, %v3357, %v2812
    %vm3359 = vcmp.gt.s32.totalorder %v440, 5
    %s3360 = smul.u32 5, 3
    %s3361 = smul.addr %s3360, 8
    %s3362 = scalar_lea.vmem [#allocation2], %s3361
    %v3363 = vld [vmem:[%s3362] sm:$0xff]
    %v3364 = vld [vmem:[%s3362 + $0x8] sm:$0xff]
    %v3365 = vld [vmem:[%s3362 + $0x10] sm:$0xff]
    %3366 = vmatprep.subr.mxu0 %v449
    %3367 = vmatpush1.msra.mxu0 %v448
    %3368 = vmatprep.subr.mxu0 %v452
    %3369 = vmatpush1.msra.mxu0 %v451
    %3370 = vmatprep.subr.mxu0 %v455
    %3371 = vmatpush1.msra.mxu0 %v454
    %3372 = vmatprep.subr.mxu0 %v458
    %3373 = vmatpush1.msra.mxu0 %v457
    %3374 = vmatprep.subr.mxu0 %v461
    %3375 = vmatpush1.msra.mxu0 %v460
    %3376 = vmatprep.subr.mxu0 %v464
    %3377 = vmatpush1.msra.mxu0 %v463
    %3378 = vmatprep.subr.mxu0 %v467
    %3379 = vmatpush1.msra.mxu0 %v466
    %3380 = vmatprep.subr.mxu0 %v470
    %3381 = vmatpush1.msra.mxu0 %v469
    %3382 = vmatprep.subr.mxu0 %v473
    %3383 = vmatpush1.msra.mxu0 %v472
    %3384 = vmatprep.subr.mxu0 %v476
    %3385 = vmatpush1.msra.mxu0 %v475
    %3386 = vmatprep.subr.mxu0 %v479
    %3387 = vmatpush1.msra.mxu0 %v478
    %3388 = vmatprep.subr.mxu0 %v482
    %3389 = vmatpush1.msra.mxu0 %v481
    %3390 = vmatprep.subr.mxu0 %v485
    %3391 = vmatpush1.msra.mxu0 %v484
    %3392 = vmatprep.subr.mxu0 %v488
    %3393 = vmatpush1.msra.mxu0 %v487
    %3394 = vmatprep.subr.mxu0 %v491
    %3395 = vmatpush1.msra.mxu0 %v490
    %3396 = vmatprep.subr.mxu0 %v494
    %3397 = vmatpush1.msra.mxu0 %v493
    %3398 = vmatprep.subr.mxu0 0.0
    %3399 = vmatpush1.msra.mxu0 0.0
    %3400 = vmatprep.subr.mxu0 0.0
    %3401 = vmatpush1.msra.mxu0 0.0
    %3402 = vmatprep.subr.mxu0 0.0
    %3403 = vmatpush1.msra.mxu0 0.0
    %3404 = vmatprep.subr.mxu0 0.0
    %3405 = vmatpush1.msra.mxu0 0.0
    %3406 = vmatprep.subr.mxu0 0.0
    %3407 = vmatpush1.msra.mxu0 0.0
    %3408 = vmatprep.subr.mxu0 0.0
    %3409 = vmatpush1.msra.mxu0 0.0
    %3410 = vmatprep.subr.mxu0 0.0
    %3411 = vmatpush1.msra.mxu0 0.0
    %3412 = vmatprep.subr.mxu0 0.0
    %3413 = vmatpush1.msra.mxu0 0.0
    %3414 = vmatprep.subr.mxu0 0.0
    %3415 = vmatpush1.msra.mxu0 0.0
    %3416 = vmatprep.subr.mxu0 0.0
    %3417 = vmatpush1.msra.mxu0 0.0
    %3418 = vmatprep.subr.mxu0 0.0
    %3419 = vmatpush1.msra.mxu0 0.0
    %3420 = vmatprep.subr.mxu0 0.0
    %3421 = vmatpush1.msra.mxu0 0.0
    %3422 = vmatprep.subr.mxu0 0.0
    %3423 = vmatpush1.msra.mxu0 0.0
    %3424 = vmatprep.subr.mxu0 0.0
    %3425 = vmatpush1.msra.mxu0 0.0
    %3426 = vmatprep.subr.mxu0 0.0
    %3427 = vmatpush1.msra.mxu0 0.0
    %3428 = vmatprep.subr.mxu0 0.0
    %3429 = vmatpush1.msra.mxu0 0.0
    %3430 = vmatprep.mubr.f32.mxu0 0.0
    %3431 = vmatmul.mubr.f32.gmra.mrb[0].mxu0 %v2983
    %v3432 = vpop.f32.mrb[0].mxu0
    %v3433 = vadd.f32 0.0, %v3432
    %v3434 = vpop.f32.mrb[0].mxu0
    %v3435 = vadd.f32 0.0, %v3434
    %3436 = vdwg.mxu0
    %3437 = vmatprep.subr.mxu0 0.0
    %3438 = vmatpush1.msra.mxu0 %v450
    %3439 = vmatprep.subr.mxu0 0.0
    %3440 = vmatpush1.msra.mxu0 %v453
    %3441 = vmatprep.subr.mxu0 0.0
    %3442 = vmatpush1.msra.mxu0 %v456
    %3443 = vmatprep.subr.mxu0 0.0
    %3444 = vmatpush1.msra.mxu0 %v459
    %3445 = vmatprep.subr.mxu0 0.0
    %3446 = vmatpush1.msra.mxu0 %v462
    %3447 = vmatprep.subr.mxu0 0.0
    %3448 = vmatpush1.msra.mxu0 %v465
    %3449 = vmatprep.subr.mxu0 0.0
    %3450 = vmatpush1.msra.mxu0 %v468
    %3451 = vmatprep.subr.mxu0 0.0
    %3452 = vmatpush1.msra.mxu0 %v471
    %3453 = vmatprep.subr.mxu0 0.0
    %3454 = vmatpush1.msra.mxu0 %v474
    %3455 = vmatprep.subr.mxu0 0.0
    %3456 = vmatpush1.msra.mxu0 %v477
    %3457 = vmatprep.subr.mxu0 0.0
    %3458 = vmatpush1.msra.mxu0 %v480
    %3459 = vmatprep.subr.mxu0 0.0
    %3460 = vmatpush1.msra.mxu0 %v483
    %3461 = vmatprep.subr.mxu0 0.0
    %3462 = vmatpush1.msra.mxu0 %v486
    %3463 = vmatprep.subr.mxu0 0.0
    %3464 = vmatpush1.msra.mxu0 %v489
    %3465 = vmatprep.subr.mxu0 0.0
    %3466 = vmatpush1.msra.mxu0 %v492
    %3467 = vmatprep.subr.mxu0 0.0
    %3468 = vmatpush1.msra.mxu0 %v495
    %3469 = vmatprep.subr.mxu0 0.0
    %3470 = vmatpush1.msra.mxu0 0.0
    %3471 = vmatprep.subr.mxu0 0.0
    %3472 = vmatpush1.msra.mxu0 0.0
    %3473 = vmatprep.subr.mxu0 0.0
    %3474 = vmatpush1.msra.mxu0 0.0
    %3475 = vmatprep.subr.mxu0 0.0
    %3476 = vmatpush1.msra.mxu0 0.0
    %3477 = vmatprep.subr.mxu0 0.0
    %3478 = vmatpush1.msra.mxu0 0.0
    %3479 = vmatprep.subr.mxu0 0.0
    %3480 = vmatpush1.msra.mxu0 0.0
    %3481 = vmatprep.subr.mxu0 0.0
    %3482 = vmatpush1.msra.mxu0 0.0
    %3483 = vmatprep.subr.mxu0 0.0
    %3484 = vmatpush1.msra.mxu0 0.0
    %3485 = vmatprep.subr.mxu0 0.0
    %3486 = vmatpush1.msra.mxu0 0.0
    %3487 = vmatprep.subr.mxu0 0.0
    %3488 = vmatpush1.msra.mxu0 0.0
    %3489 = vmatprep.subr.mxu0 0.0
    %3490 = vmatpush1.msra.mxu0 0.0
    %3491 = vmatprep.subr.mxu0 0.0
    %3492 = vmatpush1.msra.mxu0 0.0
    %3493 = vmatprep.subr.mxu0 0.0
    %3494 = vmatpush1.msra.mxu0 0.0
    %3495 = vmatprep.subr.mxu0 0.0
    %3496 = vmatpush1.msra.mxu0 0.0
    %3497 = vmatprep.subr.mxu0 0.0
    %3498 = vmatpush1.msra.mxu0 0.0
    %3499 = vmatprep.subr.mxu0 0.0
    %3500 = vmatpush1.msra.mxu0 0.0
    %3501 = vmatprep.mubr.f32.mxu0 0.0
    %3502 = vmatmul.mubr.f32.gmra.mrb[0].mxu0 %v2983
    %v3503 = vpop.f32.mrb[0].mxu0
    %v3504 = vadd.f32 0.0, %v3503
    %v3505 = vpop.f32.mrb[0].mxu0
    %3506 = vdwg.mxu0
    %v3507 = vadd.f32 %v3363, %v3433
    %v3508 = vadd.f32 %v3364, %v3435
    %v3509 = vxor.u32 %v3507, 2147483648
    %v3510 = vxor.u32 %v3508, 2147483648
    %v3511 = vmul.f32 %v3509, 1.442695
    %v3512 = vpow.pop %v3511
    %v3513 = vmul.f32 %v3510, 1.442695
    %v3514 = vpow.pop %v3513
    %v3515 = vadd.f32 %v3512, 1.0
    %v3516 = vadd.f32 %v3514, 1.0
    %v3517 = vrcp.pop %v3515
    %v3518 = vmul.f32 1.0, %v3517
    %v3519 = vrcp.pop %v3516
    %v3520 = vmul.f32 1.0, %v3519
    %v3521 = vadd.f32 %v3504, %v655
    %v3522 = vmul.f32 %v3518, %v3521
    %v3523 = vadd.f32 %v3365, %v3522
    %v3524 = vtanh.pop %v3523
    %v3525 = vsub.f32 1.0, %v3520
    %v3526 = vmul.f32 %v3525, %v3524
    %v3527 = vmul.f32 %v3520, %v2983
    %v3528 = vadd.f32 %v3526, %v3527
    %v3529 = vsel %vm3359, %v3528, %v2983
    %3530 = vmatprep.subr.mxu0 %v715
    %3531 = vmatpush1.msra.mxu0 %v714
    %3532 = vmatprep.subr.mxu0 %v718
    %3533 = vmatpush1.msra.mxu0 %v717
    %3534 = vmatprep.subr.mxu0 %v721
    %3535 = vmatpush1.msra.mxu0 %v720
    %3536 = vmatprep.subr.mxu0 %v724
    %3537 = vmatpush1.msra.mxu0 %v723
    %3538 = vmatprep.subr.mxu0 %v727
    %3539 = vmatpush1.msra.mxu0 %v726
    %3540 = vmatprep.subr.mxu0 %v730
    %3541 = vmatpush1.msra.mxu0 %v729
    %3542 = vmatprep.subr.mxu0 %v733
    %3543 = vmatpush1.msra.mxu0 %v732
    %3544 = vmatprep.subr.mxu0 %v736
    %3545 = vmatpush1.msra.mxu0 %v735
    %3546 = vmatprep.subr.mxu0 %v739
    %3547 = vmatpush1.msra.mxu0 %v738
    %3548 = vmatprep.subr.mxu0 %v742
    %3549 = vmatpush1.msra.mxu0 %v741
    %3550 = vmatprep.subr.mxu0 %v745
    %3551 = vmatpush1.msra.mxu0 %v744
    %3552 = vmatprep.subr.mxu0 %v748
    %3553 = vmatpush1.msra.mxu0 %v747
    %3554 = vmatprep.subr.mxu0 %v751
    %3555 = vmatpush1.msra.mxu0 %v750
    %3556 = vmatprep.subr.mxu0 %v754
    %3557 = vmatpush1.msra.mxu0 %v753
    %3558 = vmatprep.subr.mxu0 %v757
    %3559 = vmatpush1.msra.mxu0 %v756
    %3560 = vmatprep.subr.mxu0 %v760
    %3561 = vmatpush1.msra.mxu0 %v759
    %3562 = vmatprep.subr.mxu0 0.0
    %3563 = vmatpush1.msra.mxu0 0.0
    %3564 = vmatprep.subr.mxu0 0.0
    %3565 = vmatpush1.msra.mxu0 0.0
    %3566 = vmatprep.subr.mxu0 0.0
    %3567 = vmatpush1.msra.mxu0 0.0
    %3568 = vmatprep.subr.mxu0 0.0
    %3569 = vmatpush1.msra.mxu0 0.0
    %3570 = vmatprep.subr.mxu0 0.0
    %3571 = vmatpush1.msra.mxu0 0.0
    %3572 = vmatprep.subr.mxu0 0.0
    %3573 = vmatpush1.msra.mxu0 0.0
    %3574 = vmatprep.subr.mxu0 0.0
    %3575 = vmatpush1.msra.mxu0 0.0
    %3576 = vmatprep.subr.mxu0 0.0
    %3577 = vmatpush1.msra.mxu0 0.0
    %3578 = vmatprep.subr.mxu0 0.0
    %3579 = vmatpush1.msra.mxu0 0.0
    %3580 = vmatprep.subr.mxu0 0.0
    %3581 = vmatpush1.msra.mxu0 0.0
    %3582 = vmatprep.subr.mxu0 0.0
    %3583 = vmatpush1.msra.mxu0 0.0
    %3584 = vmatprep.subr.mxu0 0.0
    %3585 = vmatpush1.msra.mxu0 0.0
    %3586 = vmatprep.subr.mxu0 0.0
    %3587 = vmatpush1.msra.mxu0 0.0
    %3588 = vmatprep.subr.mxu0 0.0
    %3589 = vmatpush1.msra.mxu0 0.0
    %3590 = vmatprep.subr.mxu0 0.0
    %3591 = vmatpush1.msra.mxu0 0.0
    %3592 = vmatprep.subr.mxu0 0.0
    %3593 = vmatpush1.msra.mxu0 0.0
    %3594 = vmatprep.mubr.f32.mxu0 0.0
    %3595 = vmatmul.mubr.f32.gmra.mrb[0].mxu0 %v3358
    %v3596 = vpop.f32.mrb[0].mxu0
    %v3597 = vadd.f32 0.0, %v3596
    %v3598 = vpop.f32.mrb[0].mxu0
    %v3599 = vadd.f32 0.0, %v3598
    %3600 = vdwg.mxu0
    %3601 = vmatprep.subr.mxu0 0.0
    %3602 = vmatpush1.msra.mxu0 %v716
    %3603 = vmatprep.subr.mxu0 0.0
    %3604 = vmatpush1.msra.mxu0 %v719
    %3605 = vmatprep.subr.mxu0 0.0
    %3606 = vmatpush1.msra.mxu0 %v722
    %3607 = vmatprep.subr.mxu0 0.0
    %3608 = vmatpush1.msra.mxu0 %v725
    %3609 = vmatprep.subr.mxu0 0.0
    %3610 = vmatpush1.msra.mxu0 %v728
    %3611 = vmatprep.subr.mxu0 0.0
    %3612 = vmatpush1.msra.mxu0 %v731
    %3613 = vmatprep.subr.mxu0 0.0
    %3614 = vmatpush1.msra.mxu0 %v734
    %3615 = vmatprep.subr.mxu0 0.0
    %3616 = vmatpush1.msra.mxu0 %v737
    %3617 = vmatprep.subr.mxu0 0.0
    %3618 = vmatpush1.msra.mxu0 %v740
    %3619 = vmatprep.subr.mxu0 0.0
    %3620 = vmatpush1.msra.mxu0 %v743
    %3621 = vmatprep.subr.mxu0 0.0
    %3622 = vmatpush1.msra.mxu0 %v746
    %3623 = vmatprep.subr.mxu0 0.0
    %3624 = vmatpush1.msra.mxu0 %v749
    %3625 = vmatprep.subr.mxu0 0.0
    %3626 = vmatpush1.msra.mxu0 %v752
    %3627 = vmatprep.subr.mxu0 0.0
    %3628 = vmatpush1.msra.mxu0 %v755
    %3629 = vmatprep.subr.mxu0 0.0
    %3630 = vmatpush1.msra.mxu0 %v758
    %3631 = vmatprep.subr.mxu0 0.0
    %3632 = vmatpush1.msra.mxu0 %v761
    %3633 = vmatprep.subr.mxu0 0.0
    %3634 = vmatpush1.msra.mxu0 0.0
    %3635 = vmatprep.subr.mxu0 0.0
    %3636 = vmatpush1.msra.mxu0 0.0
    %3637 = vmatprep.subr.mxu0 0.0
    %3638 = vmatpush1.msra.mxu0 0.0
    %3639 = vmatprep.subr.mxu0 0.0
    %3640 = vmatpush1.msra.mxu0 0.0
    %3641 = vmatprep.subr.mxu0 0.0
    %3642 = vmatpush1.msra.mxu0 0.0
    %3643 = vmatprep.subr.mxu0 0.0
    %3644 = vmatpush1.msra.mxu0 0.0
    %3645 = vmatprep.subr.mxu0 0.0
    %3646 = vmatpush1.msra.mxu0 0.0
    %3647 = vmatprep.subr.mxu0 0.0
    %3648 = vmatpush1.msra.mxu0 0.0
    %3649 = vmatprep.subr.mxu0 0.0
    %3650 = vmatpush1.msra.mxu0 0.0
    %3651 = vmatprep.subr.mxu0 0.0
    %3652 = vmatpush1.msra.mxu0 0.0
    %3653 = vmatprep.subr.mxu0 0.0
    %3654 = vmatpush1.msra.mxu0 0.0
    %3655 = vmatprep.subr.mxu0 0.0
    %3656 = vmatpush1.msra.mxu0 0.0
    %3657 = vmatprep.subr.mxu0 0.0
    %3658 = vmatpush1.msra.mxu0 0.0
    %3659 = vmatprep.subr.mxu0 0.0
    %3660 = vmatpush1.msra.mxu0 0.0
    %3661 = vmatprep.subr.mxu0 0.0
    %3662 = vmatpush1.msra.mxu0 0.0
    %3663 = vmatprep.subr.mxu0 0.0
    %3664 = vmatpush1.msra.mxu0 0.0
    %3665 = vmatprep.mubr.f32.mxu0 0.0
    %3666 = vmatmul.mubr.f32.gmra.mrb[0].mxu0 %v3358
    %v3667 = vpop.f32.mrb[0].mxu0
    %v3668 = vadd.f32 0.0, %v3667
    %v3669 = vpop.f32.mrb[0].mxu0
    %3670 = vdwg.mxu0
    %3671 = vmatprep.subr.mxu0 %v667
    %3672 = vmatpush1.msra.mxu0 %v666
    %3673 = vmatprep.subr.mxu0 %v670
    %3674 = vmatpush1.msra.mxu0 %v669
    %3675 = vmatprep.subr.mxu0 %v673
    %3676 = vmatpush1.msra.mxu0 %v672
    %3677 = vmatprep.subr.mxu0 %v676
    %3678 = vmatpush1.msra.mxu0 %v675
    %3679 = vmatprep.subr.mxu0 %v679
    %3680 = vmatpush1.msra.mxu0 %v678
    %3681 = vmatprep.subr.mxu0 %v682
    %3682 = vmatpush1.msra.mxu0 %v681
    %3683 = vmatprep.subr.mxu0 %v685
    %3684 = vmatpush1.msra.mxu0 %v684
    %3685 = vmatprep.subr.mxu0 %v688
    %3686 = vmatpush1.msra.mxu0 %v687
    %3687 = vmatprep.subr.mxu0 %v691
    %3688 = vmatpush1.msra.mxu0 %v690
    %3689 = vmatprep.subr.mxu0 %v694
    %3690 = vmatpush1.msra.mxu0 %v693
    %3691 = vmatprep.subr.mxu0 %v697
    %3692 = vmatpush1.msra.mxu0 %v696
    %3693 = vmatprep.subr.mxu0 %v700
    %3694 = vmatpush1.msra.mxu0 %v699
    %3695 = vmatprep.subr.mxu0 %v703
    %3696 = vmatpush1.msra.mxu0 %v702
    %3697 = vmatprep.subr.mxu0 %v706
    %3698 = vmatpush1.msra.mxu0 %v705
    %3699 = vmatprep.subr.mxu0 %v709
    %3700 = vmatpush1.msra.mxu0 %v708
    %3701 = vmatprep.subr.mxu0 %v712
    %3702 = vmatpush1.msra.mxu0 %v711
    %3703 = vmatprep.subr.mxu0 0.0
    %3704 = vmatpush1.msra.mxu0 0.0
    %3705 = vmatprep.subr.mxu0 0.0
    %3706 = vmatpush1.msra.mxu0 0.0
    %3707 = vmatprep.subr.mxu0 0.0
    %3708 = vmatpush1.msra.mxu0 0.0
    %3709 = vmatprep.subr.mxu0 0.0
    %3710 = vmatpush1.msra.mxu0 0.0
    %3711 = vmatprep.subr.mxu0 0.0
    %3712 = vmatpush1.msra.mxu0 0.0
    %3713 = vmatprep.subr.mxu0 0.0
    %3714 = vmatpush1.msra.mxu0 0.0
    %3715 = vmatprep.subr.mxu0 0.0
    %3716 = vmatpush1.msra.mxu0 0.0
    %3717 = vmatprep.subr.mxu0 0.0
    %3718 = vmatpush1.msra.mxu0 0.0
    %3719 = vmatprep.subr.mxu0 0.0
    %3720 = vmatpush1.msra.mxu0 0.0
    %3721 = vmatprep.subr.mxu0 0.0
    %3722 = vmatpush1.msra.mxu0 0.0
    %3723 = vmatprep.subr.mxu0 0.0
    %3724 = vmatpush1.msra.mxu0 0.0
    %3725 = vmatprep.subr.mxu0 0.0
    %3726 = vmatpush1.msra.mxu0 0.0
    %3727 = vmatprep.subr.mxu0 0.0
    %3728 = vmatpush1.msra.mxu0 0.0
    %3729 = vmatprep.subr.mxu0 0.0
    %3730 = vmatpush1.msra.mxu0 0.0
    %3731 = vmatprep.subr.mxu0 0.0
    %3732 = vmatpush1.msra.mxu0 0.0
    %3733 = vmatprep.subr.mxu0 0.0
    %3734 = vmatpush1.msra.mxu0 0.0
    %3735 = vmatprep.mubr.f32.mxu0 0.0
    %3736 = vmatmul.mubr.f32.gmra.mrb[0].mxu0 %v3529
    %v3737 = vpop.f32.mrb[0].mxu0
    %v3738 = vadd.f32 %v3597, %v3737
    %v3739 = vpop.f32.mrb[0].mxu0
    %v3740 = vadd.f32 %v3599, %v3739
    %3741 = vdwg.mxu0
    %3742 = vmatprep.subr.mxu0 0.0
    %3743 = vmatpush1.msra.mxu0 %v668
    %3744 = vmatprep.subr.mxu0 0.0
    %3745 = vmatpush1.msra.mxu0 %v671
    %3746 = vmatprep.subr.mxu0 0.0
    %3747 = vmatpush1.msra.mxu0 %v674
    %3748 = vmatprep.subr.mxu0 0.0
    %3749 = vmatpush1.msra.mxu0 %v677
    %3750 = vmatprep.subr.mxu0 0.0
    %3751 = vmatpush1.msra.mxu0 %v680
    %3752 = vmatprep.subr.mxu0 0.0
    %3753 = vmatpush1.msra.mxu0 %v683
    %3754 = vmatprep.subr.mxu0 0.0
    %3755 = vmatpush1.msra.mxu0 %v686
    %3756 = vmatprep.subr.mxu0 0.0
    %3757 = vmatpush1.msra.mxu0 %v689
    %3758 = vmatprep.subr.mxu0 0.0
    %3759 = vmatpush1.msra.mxu0 %v692
    %3760 = vmatprep.subr.mxu0 0.0
    %3761 = vmatpush1.msra.mxu0 %v695
    %3762 = vmatprep.subr.mxu0 0.0
    %3763 = vmatpush1.msra.mxu0 %v698
    %3764 = vmatprep.subr.mxu0 0.0
    %3765 = vmatpush1.msra.mxu0 %v701
    %3766 = vmatprep.subr.mxu0 0.0
    %3767 = vmatpush1.msra.mxu0 %v704
    %3768 = vmatprep.subr.mxu0 0.0
    %3769 = vmatpush1.msra.mxu0 %v707
    %3770 = vmatprep.subr.mxu0 0.0
    %3771 = vmatpush1.msra.mxu0 %v710
    %3772 = vmatprep.subr.mxu0 0.0
    %3773 = vmatpush1.msra.mxu0 %v713
    %3774 = vmatprep.subr.mxu0 0.0
    %3775 = vmatpush1.msra.mxu0 0.0
    %3776 = vmatprep.subr.mxu0 0.0
    %3777 = vmatpush1.msra.mxu0 0.0
    %3778 = vmatprep.subr.mxu0 0.0
    %3779 = vmatpush1.msra.mxu0 0.0
    %3780 = vmatprep.subr.mxu0 0.0
    %3781 = vmatpush1.msra.mxu0 0.0
    %3782 = vmatprep.subr.mxu0 0.0
    %3783 = vmatpush1.msra.mxu0 0.0
    %3784 = vmatprep.subr.mxu0 0.0
    %3785 = vmatpush1.msra.mxu0 0.0
    %3786 = vmatprep.subr.mxu0 0.0
    %3787 = vmatpush1.msra.mxu0 0.0
    %3788 = vmatprep.subr.mxu0 0.0
    %3789 = vmatpush1.msra.mxu0 0.0
    %3790 = vmatprep.subr.mxu0 0.0
    %3791 = vmatpush1.msra.mxu0 0.0
    %3792 = vmatprep.subr.mxu0 0.0
    %3793 = vmatpush1.msra.mxu0 0.0
    %3794 = vmatprep.subr.mxu0 0.0
    %3795 = vmatpush1.msra.mxu0 0.0
    %3796 = vmatprep.subr.mxu0 0.0
    %3797 = vmatpush1.msra.mxu0 0.0
    %3798 = vmatprep.subr.mxu0 0.0
    %3799 = vmatpush1.msra.mxu0 0.0
    %3800 = vmatprep.subr.mxu0 0.0
    %3801 = vmatpush1.msra.mxu0 0.0
    %3802 = vmatprep.subr.mxu0 0.0
    %3803 = vmatpush1.msra.mxu0 0.0
    %3804 = vmatprep.subr.mxu0 0.0
    %3805 = vmatpush1.msra.mxu0 0.0
    %3806 = vmatprep.mubr.f32.mxu0 0.0
    %3807 = vmatmul.mubr.f32.gmra.mrb[0].mxu0 %v3529
    %v3808 = vpop.f32.mrb[0].mxu0
    %v3809 = vadd.f32 %v3668, %v3808
    %v3810 = vpop.f32.mrb[0].mxu0
    %3811 = vdwg.mxu0
    %v3812 = vadd.f32 %v3738, %v1048
    %v3813 = vadd.f32 %v3740, %v1052
    %v3814 = vadd.f32 %v3809, %v1056
    %v3815 = vxor.u32 %v3812, 2147483648
    %v3816 = vxor.u32 %v3813, 2147483648
    %v3817 = vmul.f32 %v3815, 1.442695
    %v3818 = vpow.pop %v3817
    %v3819 = vmul.f32 %v3816, 1.442695
    %v3820 = vpow.pop %v3819
    %v3821 = vadd.f32 %v3818, 1.0
    %v3822 = vadd.f32 %v3820, 1.0
    %v3823 = vrcp.pop %v3821
    %v3824 = vmul.f32 1.0, %v3823
    %v3825 = vrcp.pop %v3822
    %v3826 = vmul.f32 1.0, %v3825
    %3827 = vmatprep.subr.mxu0 0.0
    %3828 = vmatpush1.msra.mxu0 %v1063
    %3829 = vmatprep.subr.mxu0 0.0
    %3830 = vmatpush1.msra.mxu0 %v1064
    %3831 = vmatprep.subr.mxu0 0.0
    %3832 = vmatpush1.msra.mxu0 %v1065
    %3833 = vmatprep.subr.mxu0 0.0
    %3834 = vmatpush1.msra.mxu0 %v1066
    %3835 = vmatprep.subr.mxu0 0.0
    %3836 = vmatpush1.msra.mxu0 %v1067
    %3837 = vmatprep.subr.mxu0 0.0
    %3838 = vmatpush1.msra.mxu0 %v1068
    %3839 = vmatprep.subr.mxu0 0.0
    %3840 = vmatpush1.msra.mxu0 %v1069
    %3841 = vmatprep.subr.mxu0 0.0
    %3842 = vmatpush1.msra.mxu0 %v1070
    %3843 = vmatprep.subr.mxu0 0.0
    %3844 = vmatpush1.msra.mxu0 %v1071
    %3845 = vmatprep.subr.mxu0 0.0
    %3846 = vmatpush1.msra.mxu0 %v1072
    %3847 = vmatprep.subr.mxu0 0.0
    %3848 = vmatpush1.msra.mxu0 %v1073
    %3849 = vmatprep.subr.mxu0 0.0
    %3850 = vmatpush1.msra.mxu0 %v1074
    %3851 = vmatprep.subr.mxu0 0.0
    %3852 = vmatpush1.msra.mxu0 %v1075
    %3853 = vmatprep.subr.mxu0 0.0
    %3854 = vmatpush1.msra.mxu0 %v1076
    %3855 = vmatprep.subr.mxu0 0.0
    %3856 = vmatpush1.msra.mxu0 %v1077
    %3857 = vmatprep.subr.mxu0 0.0
    %3858 = vmatpush1.msra.mxu0 %v1078
    %3859 = vmatprep.subr.mxu0 0.0
    %3860 = vmatpush1.msra.mxu0 0.0
    %3861 = vmatprep.subr.mxu0 0.0
    %3862 = vmatpush1.msra.mxu0 0.0
    %3863 = vmatprep.subr.mxu0 0.0
    %3864 = vmatpush1.msra.mxu0 0.0
    %3865 = vmatprep.subr.mxu0 0.0
    %3866 = vmatpush1.msra.mxu0 0.0
    %3867 = vmatprep.subr.mxu0 0.0
    %3868 = vmatpush1.msra.mxu0 0.0
    %3869 = vmatprep.subr.mxu0 0.0
    %3870 = vmatpush1.msra.mxu0 0.0
    %3871 = vmatprep.subr.mxu0 0.0
    %3872 = vmatpush1.msra.mxu0 0.0
    %3873 = vmatprep.subr.mxu0 0.0
    %3874 = vmatpush1.msra.mxu0 0.0
    %3875 = vmatprep.subr.mxu0 0.0
    %3876 = vmatpush1.msra.mxu0 0.0
    %3877 = vmatprep.subr.mxu0 0.0
    %3878 = vmatpush1.msra.mxu0 0.0
    %3879 = vmatprep.subr.mxu0 0.0
    %3880 = vmatpush1.msra.mxu0 0.0
    %3881 = vmatprep.subr.mxu0 0.0
    %3882 = vmatpush1.msra.mxu0 0.0
    %3883 = vmatprep.subr.mxu0 0.0
    %3884 = vmatpush1.msra.mxu0 0.0
    %3885 = vmatprep.subr.mxu0 0.0
    %3886 = vmatpush1.msra.mxu0 0.0
    %3887 = vmatprep.subr.mxu0 0.0
    %3888 = vmatpush1.msra.mxu0 0.0
    %3889 = vmatprep.subr.mxu0 0.0
    %3890 = vmatpush1.msra.mxu0 0.0
    %3891 = vmatprep.mubr.f32.mxu0 0.0
    %3892 = vmatmul.mubr.f32.gmra.mrb[0].mxu0 %v3358
    %v3893 = vpop.f32.mrb[0].mxu0
    %v3894 = vadd.f32 %v1095, %v3893
    %v3895 = vpop.f32.mrb[0].mxu0
    %3896 = vdwg.mxu0
    %v3897 = vmul.f32 %v3824, %v3894
    %v3898 = vadd.f32 %v3814, %v3897
    %v3899 = vtanh.pop %v3898
    %v3900 = vsub.f32 1.0, %v3826
    %v3901 = vmul.f32 %v3900, %v3899
    %v3902 = vmul.f32 %v3826, %v3358
    %v3903 = vadd.f32 %v3901, %v3902
    %v3904 = vsel %vm3359, %v3903, %v3358
    %vm3905 = vcmp.gt.s32.totalorder %v440, 6
    %s3906 = smul.u32 6, 3
    %s3907 = smul.addr %s3906, 8
    %s3908 = scalar_lea.vmem [#allocation2], %s3907
    %v3909 = vld [vmem:[%s3908] sm:$0xff]
    %v3910 = vld [vmem:[%s3908 + $0x8] sm:$0xff]
    %v3911 = vld [vmem:[%s3908 + $0x10] sm:$0xff]
    %3912 = vmatprep.subr.mxu0 %v449
    %3913 = vmatpush1.msra.mxu0 %v448
    %3914 = vmatprep.subr.mxu0 %v452
    %3915 = vmatpush1.msra.mxu0 %v451
    %3916 = vmatprep.subr.mxu0 %v455
    %3917 = vmatpush1.msra.mxu0 %v454
    %3918 = vmatprep.subr.mxu0 %v458
    %3919 = vmatpush1.msra.mxu0 %v457
    %3920 = vmatprep.subr.mxu0 %v461
    %3921 = vmatpush1.msra.mxu0 %v460
    %3922 = vmatprep.subr.mxu0 %v464
    %3923 = vmatpush1.msra.mxu0 %v463
    %3924 = vmatprep.subr.mxu0 %v467
    %3925 = vmatpush1.msra.mxu0 %v466
    %3926 = vmatprep.subr.mxu0 %v470
    %3927 = vmatpush1.msra.mxu0 %v469
    %3928 = vmatprep.subr.mxu0 %v473
    %3929 = vmatpush1.msra.mxu0 %v472
    %3930 = vmatprep.subr.mxu0 %v476
    %3931 = vmatpush1.msra.mxu0 %v475
    %3932 = vmatprep.subr.mxu0 %v479
    %3933 = vmatpush1.msra.mxu0 %v478
    %3934 = vmatprep.subr.mxu0 %v482
    %3935 = vmatpush1.msra.mxu0 %v481
    %3936 = vmatprep.subr.mxu0 %v485
    %3937 = vmatpush1.msra.mxu0 %v484
    %3938 = vmatprep.subr.mxu0 %v488
    %3939 = vmatpush1.msra.mxu0 %v487
    %3940 = vmatprep.subr.mxu0 %v491
    %3941 = vmatpush1.msra.mxu0 %v490
    %3942 = vmatprep.subr.mxu0 %v494
    %3943 = vmatpush1.msra.mxu0 %v493
    %3944 = vmatprep.subr.mxu0 0.0
    %3945 = vmatpush1.msra.mxu0 0.0
    %3946 = vmatprep.subr.mxu0 0.0
    %3947 = vmatpush1.msra.mxu0 0.0
    %3948 = vmatprep.subr.mxu0 0.0
    %3949 = vmatpush1.msra.mxu0 0.0
    %3950 = vmatprep.subr.mxu0 0.0
    %3951 = vmatpush1.msra.mxu0 0.0
    %3952 = vmatprep.subr.mxu0 0.0
    %3953 = vmatpush1.msra.mxu0 0.0
    %3954 = vmatprep.subr.mxu0 0.0
    %3955 = vmatpush1.msra.mxu0 0.0
    %3956 = vmatprep.subr.mxu0 0.0
    %3957 = vmatpush1.msra.mxu0 0.0
    %3958 = vmatprep.subr.mxu0 0.0
    %3959 = vmatpush1.msra.mxu0 0.0
    %3960 = vmatprep.subr.mxu0 0.0
    %3961 = vmatpush1.msra.mxu0 0.0
    %3962 = vmatprep.subr.mxu0 0.0
    %3963 = vmatpush1.msra.mxu0 0.0
    %3964 = vmatprep.subr.mxu0 0.0
    %3965 = vmatpush1.msra.mxu0 0.0
    %3966 = vmatprep.subr.mxu0 0.0
    %3967 = vmatpush1.msra.mxu0 0.0
    %3968 = vmatprep.subr.mxu0 0.0
    %3969 = vmatpush1.msra.mxu0 0.0
    %3970 = vmatprep.subr.mxu0 0.0
    %3971 = vmatpush1.msra.mxu0 0.0
    %3972 = vmatprep.subr.mxu0 0.0
    %3973 = vmatpush1.msra.mxu0 0.0
    %3974 = vmatprep.subr.mxu0 0.0
    %3975 = vmatpush1.msra.mxu0 0.0
    %3976 = vmatprep.mubr.f32.mxu0 0.0
    %3977 = vmatmul.mubr.f32.gmra.mrb[0].mxu0 %v3529
    %v3978 = vpop.f32.mrb[0].mxu0
    %v3979 = vadd.f32 0.0, %v3978
    %v3980 = vpop.f32.mrb[0].mxu0
    %v3981 = vadd.f32 0.0, %v3980
    %3982 = vdwg.mxu0
    %3983 = vmatprep.subr.mxu0 0.0
    %3984 = vmatpush1.msra.mxu0 %v450
    %3985 = vmatprep.subr.mxu0 0.0
    %3986 = vmatpush1.msra.mxu0 %v453
    %3987 = vmatprep.subr.mxu0 0.0
    %3988 = vmatpush1.msra.mxu0 %v456
    %3989 = vmatprep.subr.mxu0 0.0
    %3990 = vmatpush1.msra.mxu0 %v459
    %3991 = vmatprep.subr.mxu0 0.0
    %3992 = vmatpush1.msra.mxu0 %v462
    %3993 = vmatprep.subr.mxu0 0.0
    %3994 = vmatpush1.msra.mxu0 %v465
    %3995 = vmatprep.subr.mxu0 0.0
    %3996 = vmatpush1.msra.mxu0 %v468
    %3997 = vmatprep.subr.mxu0 0.0
    %3998 = vmatpush1.msra.mxu0 %v471
    %3999 = vmatprep.subr.mxu0 0.0
    %4000 = vmatpush1.msra.mxu0 %v474
    %4001 = vmatprep.subr.mxu0 0.0
    %4002 = vmatpush1.msra.mxu0 %v477
    %4003 = vmatprep.subr.mxu0 0.0
    %4004 = vmatpush1.msra.mxu0 %v480
    %4005 = vmatprep.subr.mxu0 0.0
    %4006 = vmatpush1.msra.mxu0 %v483
    %4007 = vmatprep.subr.mxu0 0.0
    %4008 = vmatpush1.msra.mxu0 %v486
    %4009 = vmatprep.subr.mxu0 0.0
    %4010 = vmatpush1.msra.mxu0 %v489
    %4011 = vmatprep.subr.mxu0 0.0
    %4012 = vmatpush1.msra.mxu0 %v492
    %4013 = vmatprep.subr.mxu0 0.0
    %4014 = vmatpush1.msra.mxu0 %v495
    %4015 = vmatprep.subr.mxu0 0.0
    %4016 = vmatpush1.msra.mxu0 0.0
    %4017 = vmatprep.subr.mxu0 0.0
    %4018 = vmatpush1.msra.mxu0 0.0
    %4019 = vmatprep.subr.mxu0 0.0
    %4020 = vmatpush1.msra.mxu0 0.0
    %4021 = vmatprep.subr.mxu0 0.0
    %4022 = vmatpush1.msra.mxu0 0.0
    %4023 = vmatprep.subr.mxu0 0.0
    %4024 = vmatpush1.msra.mxu0 0.0
    %4025 = vmatprep.subr.mxu0 0.0
    %4026 = vmatpush1.msra.mxu0 0.0
    %4027 = vmatprep.subr.mxu0 0.0
    %4028 = vmatpush1.msra.mxu0 0.0
    %4029 = vmatprep.subr.mxu0 0.0
    %4030 = vmatpush1.msra.mxu0 0.0
    %4031 = vmatprep.subr.mxu0 0.0
    %4032 = vmatpush1.msra.mxu0 0.0
    %4033 = vmatprep.subr.mxu0 0.0
    %4034 = vmatpush1.msra.mxu0 0.0
    %4035 = vmatprep.subr.mxu0 0.0
    %4036 = vmatpush1.msra.mxu0 0.0
    %4037 = vmatprep.subr.mxu0 0.0
    %4038 = vmatpush1.msra.mxu0 0.0
    %4039 = vmatprep.subr.mxu0 0.0
    %4040 = vmatpush1.msra.mxu0 0.0
    %4041 = vmatprep.subr.mxu0 0.0
    %4042 = vmatpush1.msra.mxu0 0.0
    %4043 = vmatprep.subr.mxu0 0.0
    %4044 = vmatpush1.msra.mxu0 0.0
    %4045 = vmatprep.subr.mxu0 0.0
    %4046 = vmatpush1.msra.mxu0 0.0
    %4047 = vmatprep.mubr.f32.mxu0 0.0
    %4048 = vmatmul.mubr.f32.gmra.mrb[0].mxu0 %v3529
    %v4049 = vpop.f32.mrb[0].mxu0
    %v4050 = vadd.f32 0.0, %v4049
    %v4051 = vpop.f32.mrb[0].mxu0
    %4052 = vdwg.mxu0
    %v4053 = vadd.f32 %v3909, %v3979
    %v4054 = vadd.f32 %v3910, %v3981
    %v4055 = vxor.u32 %v4053, 2147483648
    %v4056 = vxor.u32 %v4054, 2147483648
    %v4057 = vmul.f32 %v4055, 1.442695
    %v4058 = vpow.pop %v4057
    %v4059 = vmul.f32 %v4056, 1.442695
    %v4060 = vpow.pop %v4059
    %v4061 = vadd.f32 %v4058, 1.0
    %v4062 = vadd.f32 %v4060, 1.0
    %v4063 = vrcp.pop %v4061
    %v4064 = vmul.f32 1.0, %v4063
    %v4065 = vrcp.pop %v4062
    %v4066 = vmul.f32 1.0, %v4065
    %v4067 = vadd.f32 %v4050, %v655
    %v4068 = vmul.f32 %v4064, %v4067
    %v4069 = vadd.f32 %v3911, %v4068
    %v4070 = vtanh.pop %v4069
    %v4071 = vsub.f32 1.0, %v4066
    %v4072 = vmul.f32 %v4071, %v4070
    %v4073 = vmul.f32 %v4066, %v3529
    %v4074 = vadd.f32 %v4072, %v4073
    %v4075 = vsel %vm3905, %v4074, %v3529
    %4076 = vmatprep.subr.mxu0 %v715
    %4077 = vmatpush1.msra.mxu0 %v714
    %4078 = vmatprep.subr.mxu0 %v718
    %4079 = vmatpush1.msra.mxu0 %v717
    %4080 = vmatprep.subr.mxu0 %v721
    %4081 = vmatpush1.msra.mxu0 %v720
    %4082 = vmatprep.subr.mxu0 %v724
    %4083 = vmatpush1.msra.mxu0 %v723
    %4084 = vmatprep.subr.mxu0 %v727
    %4085 = vmatpush1.msra.mxu0 %v726
    %4086 = vmatprep.subr.mxu0 %v730
    %4087 = vmatpush1.msra.mxu0 %v729
    %4088 = vmatprep.subr.mxu0 %v733
    %4089 = vmatpush1.msra.mxu0 %v732
    %4090 = vmatprep.subr.mxu0 %v736
    %4091 = vmatpush1.msra.mxu0 %v735
    %4092 = vmatprep.subr.mxu0 %v739
    %4093 = vmatpush1.msra.mxu0 %v738
    %4094 = vmatprep.subr.mxu0 %v742
    %4095 = vmatpush1.msra.mxu0 %v741
    %4096 = vmatprep.subr.mxu0 %v745
    %4097 = vmatpush1.msra.mxu0 %v744
    %4098 = vmatprep.subr.mxu0 %v748
    %4099 = vmatpush1.msra.mxu0 %v747
    %4100 = vmatprep.subr.mxu0 %v751
    %4101 = vmatpush1.msra.mxu0 %v750
    %4102 = vmatprep.subr.mxu0 %v754
    %4103 = vmatpush1.msra.mxu0 %v753
    %4104 = vmatprep.subr.mxu0 %v757
    %4105 = vmatpush1.msra.mxu0 %v756
    %4106 = vmatprep.subr.mxu0 %v760
    %4107 = vmatpush1.msra.mxu0 %v759
    %4108 = vmatprep.subr.mxu0 0.0
    %4109 = vmatpush1.msra.mxu0 0.0
    %4110 = vmatprep.subr.mxu0 0.0
    %4111 = vmatpush1.msra.mxu0 0.0
    %4112 = vmatprep.subr.mxu0 0.0
    %4113 = vmatpush1.msra.mxu0 0.0
    %4114 = vmatprep.subr.mxu0 0.0
    %4115 = vmatpush1.msra.mxu0 0.0
    %4116 = vmatprep.subr.mxu0 0.0
    %4117 = vmatpush1.msra.mxu0 0.0
    %4118 = vmatprep.subr.mxu0 0.0
    %4119 = vmatpush1.msra.mxu0 0.0
    %4120 = vmatprep.subr.mxu0 0.0
    %4121 = vmatpush1.msra.mxu0 0.0
    %4122 = vmatprep.subr.mxu0 0.0
    %4123 = vmatpush1.msra.mxu0 0.0
    %4124 = vmatprep.subr.mxu0 0.0
    %4125 = vmatpush1.msra.mxu0 0.0
    %4126 = vmatprep.subr.mxu0 0.0
    %4127 = vmatpush1.msra.mxu0 0.0
    %4128 = vmatprep.subr.mxu0 0.0
    %4129 = vmatpush1.msra.mxu0 0.0
    %4130 = vmatprep.subr.mxu0 0.0
    %4131 = vmatpush1.msra.mxu0 0.0
    %4132 = vmatprep.subr.mxu0 0.0
    %4133 = vmatpush1.msra.mxu0 0.0
    %4134 = vmatprep.subr.mxu0 0.0
    %4135 = vmatpush1.msra.mxu0 0.0
    %4136 = vmatprep.subr.mxu0 0.0
    %4137 = vmatpush1.msra.mxu0 0.0
    %4138 = vmatprep.subr.mxu0 0.0
    %4139 = vmatpush1.msra.mxu0 0.0
    %4140 = vmatprep.mubr.f32.mxu0 0.0
    %4141 = vmatmul.mubr.f32.gmra.mrb[0].mxu0 %v3904
    %v4142 = vpop.f32.mrb[0].mxu0
    %v4143 = vadd.f32 0.0, %v4142
    %v4144 = vpop.f32.mrb[0].mxu0
    %v4145 = vadd.f32 0.0, %v4144
    %4146 = vdwg.mxu0
    %4147 = vmatprep.subr.mxu0 0.0
    %4148 = vmatpush1.msra.mxu0 %v716
    %4149 = vmatprep.subr.mxu0 0.0
    %4150 = vmatpush1.msra.mxu0 %v719
    %4151 = vmatprep.subr.mxu0 0.0
    %4152 = vmatpush1.msra.mxu0 %v722
    %4153 = vmatprep.subr.mxu0 0.0
    %4154 = vmatpush1.msra.mxu0 %v725
    %4155 = vmatprep.subr.mxu0 0.0
    %4156 = vmatpush1.msra.mxu0 %v728
    %4157 = vmatprep.subr.mxu0 0.0
    %4158 = vmatpush1.msra.mxu0 %v731
    %4159 = vmatprep.subr.mxu0 0.0
    %4160 = vmatpush1.msra.mxu0 %v734
    %4161 = vmatprep.subr.mxu0 0.0
    %4162 = vmatpush1.msra.mxu0 %v737
    %4163 = vmatprep.subr.mxu0 0.0
    %4164 = vmatpush1.msra.mxu0 %v740
    %4165 = vmatprep.subr.mxu0 0.0
    %4166 = vmatpush1.msra.mxu0 %v743
    %4167 = vmatprep.subr.mxu0 0.0
    %4168 = vmatpush1.msra.mxu0 %v746
    %4169 = vmatprep.subr.mxu0 0.0
    %4170 = vmatpush1.msra.mxu0 %v749
    %4171 = vmatprep.subr.mxu0 0.0
    %4172 = vmatpush1.msra.mxu0 %v752
    %4173 = vmatprep.subr.mxu0 0.0
    %4174 = vmatpush1.msra.mxu0 %v755
    %4175 = vmatprep.subr.mxu0 0.0
    %4176 = vmatpush1.msra.mxu0 %v758
    %4177 = vmatprep.subr.mxu0 0.0
    %4178 = vmatpush1.msra.mxu0 %v761
    %4179 = vmatprep.subr.mxu0 0.0
    %4180 = vmatpush1.msra.mxu0 0.0
    %4181 = vmatprep.subr.mxu0 0.0
    %4182 = vmatpush1.msra.mxu0 0.0
    %4183 = vmatprep.subr.mxu0 0.0
    %4184 = vmatpush1.msra.mxu0 0.0
    %4185 = vmatprep.subr.mxu0 0.0
    %4186 = vmatpush1.msra.mxu0 0.0
    %4187 = vmatprep.subr.mxu0 0.0
    %4188 = vmatpush1.msra.mxu0 0.0
    %4189 = vmatprep.subr.mxu0 0.0
    %4190 = vmatpush1.msra.mxu0 0.0
    %4191 = vmatprep.subr.mxu0 0.0
    %4192 = vmatpush1.msra.mxu0 0.0
    %4193 = vmatprep.subr.mxu0 0.0
    %4194 = vmatpush1.msra.mxu0 0.0
    %4195 = vmatprep.subr.mxu0 0.0
    %4196 = vmatpush1.msra.mxu0 0.0
    %4197 = vmatprep.subr.mxu0 0.0
    %4198 = vmatpush1.msra.mxu0 0.0
    %4199 = vmatprep.subr.mxu0 0.0
    %4200 = vmatpush1.msra.mxu0 0.0
    %4201 = vmatprep.subr.mxu0 0.0
    %4202 = vmatpush1.msra.mxu0 0.0
    %4203 = vmatprep.subr.mxu0 0.0
    %4204 = vmatpush1.msra.mxu0 0.0
    %4205 = vmatprep.subr.mxu0 0.0
    %4206 = vmatpush1.msra.mxu0 0.0
    %4207 = vmatprep.subr.mxu0 0.0
    %4208 = vmatpush1.msra.mxu0 0.0
    %4209 = vmatprep.subr.mxu0 0.0
    %4210 = vmatpush1.msra.mxu0 0.0
    %4211 = vmatprep.mubr.f32.mxu0 0.0
    %4212 = vmatmul.mubr.f32.gmra.mrb[0].mxu0 %v3904
    %v4213 = vpop.f32.mrb[0].mxu0
    %v4214 = vadd.f32 0.0, %v4213
    %v4215 = vpop.f32.mrb[0].mxu0
    %4216 = vdwg.mxu0
    %4217 = vmatprep.subr.mxu0 %v667
    %4218 = vmatpush1.msra.mxu0 %v666
    %4219 = vmatprep.subr.mxu0 %v670
    %4220 = vmatpush1.msra.mxu0 %v669
    %4221 = vmatprep.subr.mxu0 %v673
    %4222 = vmatpush1.msra.mxu0 %v672
    %4223 = vmatprep.subr.mxu0 %v676
    %4224 = vmatpush1.msra.mxu0 %v675
    %4225 = vmatprep.subr.mxu0 %v679
    %4226 = vmatpush1.msra.mxu0 %v678
    %4227 = vmatprep.subr.mxu0 %v682
    %4228 = vmatpush1.msra.mxu0 %v681
    %4229 = vmatprep.subr.mxu0 %v685
    %4230 = vmatpush1.msra.mxu0 %v684
    %4231 = vmatprep.subr.mxu0 %v688
    %4232 = vmatpush1.msra.mxu0 %v687
    %4233 = vmatprep.subr.mxu0 %v691
    %4234 = vmatpush1.msra.mxu0 %v690
    %4235 = vmatprep.subr.mxu0 %v694
    %4236 = vmatpush1.msra.mxu0 %v693
    %4237 = vmatprep.subr.mxu0 %v697
    %4238 = vmatpush1.msra.mxu0 %v696
    %4239 = vmatprep.subr.mxu0 %v700
    %4240 = vmatpush1.msra.mxu0 %v699
    %4241 = vmatprep.subr.mxu0 %v703
    %4242 = vmatpush1.msra.mxu0 %v702
    %4243 = vmatprep.subr.mxu0 %v706
    %4244 = vmatpush1.msra.mxu0 %v705
    %4245 = vmatprep.subr.mxu0 %v709
    %4246 = vmatpush1.msra.mxu0 %v708
    %4247 = vmatprep.subr.mxu0 %v712
    %4248 = vmatpush1.msra.mxu0 %v711
    %4249 = vmatprep.subr.mxu0 0.0
    %4250 = vmatpush1.msra.mxu0 0.0
    %4251 = vmatprep.subr.mxu0 0.0
    %4252 = vmatpush1.msra.mxu0 0.0
    %4253 = vmatprep.subr.mxu0 0.0
    %4254 = vmatpush1.msra.mxu0 0.0
    %4255 = vmatprep.subr.mxu0 0.0
    %4256 = vmatpush1.msra.mxu0 0.0
    %4257 = vmatprep.subr.mxu0 0.0
    %4258 = vmatpush1.msra.mxu0 0.0
    %4259 = vmatprep.subr.mxu0 0.0
    %4260 = vmatpush1.msra.mxu0 0.0
    %4261 = vmatprep.subr.mxu0 0.0
    %4262 = vmatpush1.msra.mxu0 0.0
    %4263 = vmatprep.subr.mxu0 0.0
    %4264 = vmatpush1.msra.mxu0 0.0
    %4265 = vmatprep.subr.mxu0 0.0
    %4266 = vmatpush1.msra.mxu0 0.0
    %4267 = vmatprep.subr.mxu0 0.0
    %4268 = vmatpush1.msra.mxu0 0.0
    %4269 = vmatprep.subr.mxu0 0.0
    %4270 = vmatpush1.msra.mxu0 0.0
    %4271 = vmatprep.subr.mxu0 0.0
    %4272 = vmatpush1.msra.mxu0 0.0
    %4273 = vmatprep.subr.mxu0 0.0
    %4274 = vmatpush1.msra.mxu0 0.0
    %4275 = vmatprep.subr.mxu0 0.0
    %4276 = vmatpush1.msra.mxu0 0.0
    %4277 = vmatprep.subr.mxu0 0.0
    %4278 = vmatpush1.msra.mxu0 0.0
    %4279 = vmatprep.subr.mxu0 0.0
    %4280 = vmatpush1.msra.mxu0 0.0
    %4281 = vmatprep.mubr.f32.mxu0 0.0
    %4282 = vmatmul.mubr.f32.gmra.mrb[0].mxu0 %v4075
    %v4283 = vpop.f32.mrb[0].mxu0
    %v4284 = vadd.f32 %v4143, %v4283
    %v4285 = vpop.f32.mrb[0].mxu0
    %v4286 = vadd.f32 %v4145, %v4285
    %4287 = vdwg.mxu0
    %4288 = vmatprep.subr.mxu0 0.0
    %4289 = vmatpush1.msra.mxu0 %v668
    %4290 = vmatprep.subr.mxu0 0.0
    %4291 = vmatpush1.msra.mxu0 %v671
    %4292 = vmatprep.subr.mxu0 0.0
    %4293 = vmatpush1.msra.mxu0 %v674
    %4294 = vmatprep.subr.mxu0 0.0
    %4295 = vmatpush1.msra.mxu0 %v677
    %4296 = vmatprep.subr.mxu0 0.0
    %4297 = vmatpush1.msra.mxu0 %v680
    %4298 = vmatprep.subr.mxu0 0.0
    %4299 = vmatpush1.msra.mxu0 %v683
    %4300 = vmatprep.subr.mxu0 0.0
    %4301 = vmatpush1.msra.mxu0 %v686
    %4302 = vmatprep.subr.mxu0 0.0
    %4303 = vmatpush1.msra.mxu0 %v689
    %4304 = vmatprep.subr.mxu0 0.0
    %4305 = vmatpush1.msra.mxu0 %v692
    %4306 = vmatprep.subr.mxu0 0.0
    %4307 = vmatpush1.msra.mxu0 %v695
    %4308 = vmatprep.subr.mxu0 0.0
    %4309 = vmatpush1.msra.mxu0 %v698
    %4310 = vmatprep.subr.mxu0 0.0
    %4311 = vmatpush1.msra.mxu0 %v701
    %4312 = vmatprep.subr.mxu0 0.0
    %4313 = vmatpush1.msra.mxu0 %v704
    %4314 = vmatprep.subr.mxu0 0.0
    %4315 = vmatpush1.msra.mxu0 %v707
    %4316 = vmatprep.subr.mxu0 0.0
    %4317 = vmatpush1.msra.mxu0 %v710
    %4318 = vmatprep.subr.mxu0 0.0
    %4319 = vmatpush1.msra.mxu0 %v713
    %4320 = vmatprep.subr.mxu0 0.0
    %4321 = vmatpush1.msra.mxu0 0.0
    %4322 = vmatprep.subr.mxu0 0.0
    %4323 = vmatpush1.msra.mxu0 0.0
    %4324 = vmatprep.subr.mxu0 0.0
    %4325 = vmatpush1.msra.mxu0 0.0
    %4326 = vmatprep.subr.mxu0 0.0
    %4327 = vmatpush1.msra.mxu0 0.0
    %4328 = vmatprep.subr.mxu0 0.0
    %4329 = vmatpush1.msra.mxu0 0.0
    %4330 = vmatprep.subr.mxu0 0.0
    %4331 = vmatpush1.msra.mxu0 0.0
    %4332 = vmatprep.subr.mxu0 0.0
    %4333 = vmatpush1.msra.mxu0 0.0
    %4334 = vmatprep.subr.mxu0 0.0
    %4335 = vmatpush1.msra.mxu0 0.0
    %4336 = vmatprep.subr.mxu0 0.0
    %4337 = vmatpush1.msra.mxu0 0.0
    %4338 = vmatprep.subr.mxu0 0.0
    %4339 = vmatpush1.msra.mxu0 0.0
    %4340 = vmatprep.subr.mxu0 0.0
    %4341 = vmatpush1.msra.mxu0 0.0
    %4342 = vmatprep.subr.mxu0 0.0
    %4343 = vmatpush1.msra.mxu0 0.0
    %4344 = vmatprep.subr.mxu0 0.0
    %4345 = vmatpush1.msra.mxu0 0.0
    %4346 = vmatprep.subr.mxu0 0.0
    %4347 = vmatpush1.msra.mxu0 0.0
    %4348 = vmatprep.subr.mxu0 0.0
    %4349 = vmatpush1.msra.mxu0 0.0
    %4350 = vmatprep.subr.mxu0 0.0
    %4351 = vmatpush1.msra.mxu0 0.0
    %4352 = vmatprep.mubr.f32.mxu0 0.0
    %4353 = vmatmul.mubr.f32.gmra.mrb[0].mxu0 %v4075
    %v4354 = vpop.f32.mrb[0].mxu0
    %v4355 = vadd.f32 %v4214, %v4354
    %v4356 = vpop.f32.mrb[0].mxu0
    %4357 = vdwg.mxu0
    %v4358 = vadd.f32 %v4284, %v1048
    %v4359 = vadd.f32 %v4286, %v1052
    %v4360 = vadd.f32 %v4355, %v1056
    %v4361 = vxor.u32 %v4358, 2147483648
    %v4362 = vxor.u32 %v4359, 2147483648
    %v4363 = vmul.f32 %v4361, 1.442695
    %v4364 = vpow.pop %v4363
    %v4365 = vmul.f32 %v4362, 1.442695
    %v4366 = vpow.pop %v4365
    %v4367 = vadd.f32 %v4364, 1.0
    %v4368 = vadd.f32 %v4366, 1.0
    %v4369 = vrcp.pop %v4367
    %v4370 = vmul.f32 1.0, %v4369
    %v4371 = vrcp.pop %v4368
    %v4372 = vmul.f32 1.0, %v4371
    %4373 = vmatprep.subr.mxu0 0.0
    %4374 = vmatpush1.msra.mxu0 %v1063
    %4375 = vmatprep.subr.mxu0 0.0
    %4376 = vmatpush1.msra.mxu0 %v1064
    %4377 = vmatprep.subr.mxu0 0.0
    %4378 = vmatpush1.msra.mxu0 %v1065
    %4379 = vmatprep.subr.mxu0 0.0
    %4380 = vmatpush1.msra.mxu0 %v1066
    %4381 = vmatprep.subr.mxu0 0.0
    %4382 = vmatpush1.msra.mxu0 %v1067
    %4383 = vmatprep.subr.mxu0 0.0
    %4384 = vmatpush1.msra.mxu0 %v1068
    %4385 = vmatprep.subr.mxu0 0.0
    %4386 = vmatpush1.msra.mxu0 %v1069
    %4387 = vmatprep.subr.mxu0 0.0
    %4388 = vmatpush1.msra.mxu0 %v1070
    %4389 = vmatprep.subr.mxu0 0.0
    %4390 = vmatpush1.msra.mxu0 %v1071
    %4391 = vmatprep.subr.mxu0 0.0
    %4392 = vmatpush1.msra.mxu0 %v1072
    %4393 = vmatprep.subr.mxu0 0.0
    %4394 = vmatpush1.msra.mxu0 %v1073
    %4395 = vmatprep.subr.mxu0 0.0
    %4396 = vmatpush1.msra.mxu0 %v1074
    %4397 = vmatprep.subr.mxu0 0.0
    %4398 = vmatpush1.msra.mxu0 %v1075
    %4399 = vmatprep.subr.mxu0 0.0
    %4400 = vmatpush1.msra.mxu0 %v1076
    %4401 = vmatprep.subr.mxu0 0.0
    %4402 = vmatpush1.msra.mxu0 %v1077
    %4403 = vmatprep.subr.mxu0 0.0
    %4404 = vmatpush1.msra.mxu0 %v1078
    %4405 = vmatprep.subr.mxu0 0.0
    %4406 = vmatpush1.msra.mxu0 0.0
    %4407 = vmatprep.subr.mxu0 0.0
    %4408 = vmatpush1.msra.mxu0 0.0
    %4409 = vmatprep.subr.mxu0 0.0
    %4410 = vmatpush1.msra.mxu0 0.0
    %4411 = vmatprep.subr.mxu0 0.0
    %4412 = vmatpush1.msra.mxu0 0.0
    %4413 = vmatprep.subr.mxu0 0.0
    %4414 = vmatpush1.msra.mxu0 0.0
    %4415 = vmatprep.subr.mxu0 0.0
    %4416 = vmatpush1.msra.mxu0 0.0
    %4417 = vmatprep.subr.mxu0 0.0
    %4418 = vmatpush1.msra.mxu0 0.0
    %4419 = vmatprep.subr.mxu0 0.0
    %4420 = vmatpush1.msra.mxu0 0.0
    %4421 = vmatprep.subr.mxu0 0.0
    %4422 = vmatpush1.msra.mxu0 0.0
    %4423 = vmatprep.subr.mxu0 0.0
    %4424 = vmatpush1.msra.mxu0 0.0
    %4425 = vmatprep.subr.mxu0 0.0
    %4426 = vmatpush1.msra.mxu0 0.0
    %4427 = vmatprep.subr.mxu0 0.0
    %4428 = vmatpush1.msra.mxu0 0.0
    %4429 = vmatprep.subr.mxu0 0.0
    %4430 = vmatpush1.msra.mxu0 0.0
    %4431 = vmatprep.subr.mxu0 0.0
    %4432 = vmatpush1.msra.mxu0 0.0
    %4433 = vmatprep.subr.mxu0 0.0
    %4434 = vmatpush1.msra.mxu0 0.0
    %4435 = vmatprep.subr.mxu0 0.0
    %4436 = vmatpush1.msra.mxu0 0.0
    %4437 = vmatprep.mubr.f32.mxu0 0.0
    %4438 = vmatmul.mubr.f32.gmra.mrb[0].mxu0 %v3904
    %v4439 = vpop.f32.mrb[0].mxu0
    %v4440 = vadd.f32 %v1095, %v4439
    %v4441 = vpop.f32.mrb[0].mxu0
    %4442 = vdwg.mxu0
    %v4443 = vmul.f32 %v4370, %v4440
    %v4444 = vadd.f32 %v4360, %v4443
    %v4445 = vtanh.pop %v4444
    %v4446 = vsub.f32 1.0, %v4372
    %v4447 = vmul.f32 %v4446, %v4445
    %v4448 = vmul.f32 %v4372, %v3904
    %v4449 = vadd.f32 %v4447, %v4448
    %v4450 = vsel %vm3905, %v4449, %v3904
    %vm4451 = vcmp.gt.s32.totalorder %v440, 7
    %s4452 = smul.u32 7, 3
    %s4453 = smul.addr %s4452, 8
    %s4454 = scalar_lea.vmem [#allocation2], %s4453
    %v4455 = vld [vmem:[%s4454] sm:$0xff]
    %v4456 = vld [vmem:[%s4454 + $0x8] sm:$0xff]
    %v4457 = vld [vmem:[%s4454 + $0x10] sm:$0xff]
    %4458 = vmatprep.subr.mxu0 %v449
    %4459 = vmatpush1.msra.mxu0 %v448
    %4460 = vmatprep.subr.mxu0 %v452
    %4461 = vmatpush1.msra.mxu0 %v451
    %4462 = vmatprep.subr.mxu0 %v455
    %4463 = vmatpush1.msra.mxu0 %v454
    %4464 = vmatprep.subr.mxu0 %v458
    %4465 = vmatpush1.msra.mxu0 %v457
    %4466 = vmatprep.subr.mxu0 %v461
    %4467 = vmatpush1.msra.mxu0 %v460
    %4468 = vmatprep.subr.mxu0 %v464
    %4469 = vmatpush1.msra.mxu0 %v463
    %4470 = vmatprep.subr.mxu0 %v467
    %4471 = vmatpush1.msra.mxu0 %v466
    %4472 = vmatprep.subr.mxu0 %v470
    %4473 = vmatpush1.msra.mxu0 %v469
    %4474 = vmatprep.subr.mxu0 %v473
    %4475 = vmatpush1.msra.mxu0 %v472
    %4476 = vmatprep.subr.mxu0 %v476
    %4477 = vmatpush1.msra.mxu0 %v475
    %4478 = vmatprep.subr.mxu0 %v479
    %4479 = vmatpush1.msra.mxu0 %v478
    %4480 = vmatprep.subr.mxu0 %v482
    %4481 = vmatpush1.msra.mxu0 %v481
    %4482 = vmatprep.subr.mxu0 %v485
    %4483 = vmatpush1.msra.mxu0 %v484
    %4484 = vmatprep.subr.mxu0 %v488
    %4485 = vmatpush1.msra.mxu0 %v487
    %4486 = vmatprep.subr.mxu0 %v491
    %4487 = vmatpush1.msra.mxu0 %v490
    %4488 = vmatprep.subr.mxu0 %v494
    %4489 = vmatpush1.msra.mxu0 %v493
    %4490 = vmatprep.subr.mxu0 0.0
    %4491 = vmatpush1.msra.mxu0 0.0
    %4492 = vmatprep.subr.mxu0 0.0
    %4493 = vmatpush1.msra.mxu0 0.0
    %4494 = vmatprep.subr.mxu0 0.0
    %4495 = vmatpush1.msra.mxu0 0.0
    %4496 = vmatprep.subr.mxu0 0.0
    %4497 = vmatpush1.msra.mxu0 0.0
    %4498 = vmatprep.subr.mxu0 0.0
    %4499 = vmatpush1.msra.mxu0 0.0
    %4500 = vmatprep.subr.mxu0 0.0
    %4501 = vmatpush1.msra.mxu0 0.0
    %4502 = vmatprep.subr.mxu0 0.0
    %4503 = vmatpush1.msra.mxu0 0.0
    %4504 = vmatprep.subr.mxu0 0.0
    %4505 = vmatpush1.msra.mxu0 0.0
    %4506 = vmatprep.subr.mxu0 0.0
    %4507 = vmatpush1.msra.mxu0 0.0
    %4508 = vmatprep.subr.mxu0 0.0
    %4509 = vmatpush1.msra.mxu0 0.0
    %4510 = vmatprep.subr.mxu0 0.0
    %4511 = vmatpush1.msra.mxu0 0.0
    %4512 = vmatprep.subr.mxu0 0.0
    %4513 = vmatpush1.msra.mxu0 0.0
    %4514 = vmatprep.subr.mxu0 0.0
    %4515 = vmatpush1.msra.mxu0 0.0
    %4516 = vmatprep.subr.mxu0 0.0
    %4517 = vmatpush1.msra.mxu0 0.0
    %4518 = vmatprep.subr.mxu0 0.0
    %4519 = vmatpush1.msra.mxu0 0.0
    %4520 = vmatprep.subr.mxu0 0.0
    %4521 = vmatpush1.msra.mxu0 0.0
    %4522 = vmatprep.mubr.f32.mxu0 0.0
    %4523 = vmatmul.mubr.f32.gmra.mrb[0].mxu0 %v4075
    %v4524 = vpop.f32.mrb[0].mxu0
    %v4525 = vadd.f32 0.0, %v4524
    %v4526 = vpop.f32.mrb[0].mxu0
    %v4527 = vadd.f32 0.0, %v4526
    %4528 = vdwg.mxu0
    %4529 = vmatprep.subr.mxu0 0.0
    %4530 = vmatpush1.msra.mxu0 %v450
    %4531 = vmatprep.subr.mxu0 0.0
    %4532 = vmatpush1.msra.mxu0 %v453
    %4533 = vmatprep.subr.mxu0 0.0
    %4534 = vmatpush1.msra.mxu0 %v456
    %4535 = vmatprep.subr.mxu0 0.0
    %4536 = vmatpush1.msra.mxu0 %v459
    %4537 = vmatprep.subr.mxu0 0.0
    %4538 = vmatpush1.msra.mxu0 %v462
    %4539 = vmatprep.subr.mxu0 0.0
    %4540 = vmatpush1.msra.mxu0 %v465
    %4541 = vmatprep.subr.mxu0 0.0
    %4542 = vmatpush1.msra.mxu0 %v468
    %4543 = vmatprep.subr.mxu0 0.0
    %4544 = vmatpush1.msra.mxu0 %v471
    %4545 = vmatprep.subr.mxu0 0.0
    %4546 = vmatpush1.msra.mxu0 %v474
    %4547 = vmatprep.subr.mxu0 0.0
    %4548 = vmatpush1.msra.mxu0 %v477
    %4549 = vmatprep.subr.mxu0 0.0
    %4550 = vmatpush1.msra.mxu0 %v480
    %4551 = vmatprep.subr.mxu0 0.0
    %4552 = vmatpush1.msra.mxu0 %v483
    %4553 = vmatprep.subr.mxu0 0.0
    %4554 = vmatpush1.msra.mxu0 %v486
    %4555 = vmatprep.subr.mxu0 0.0
    %4556 = vmatpush1.msra.mxu0 %v489
    %4557 = vmatprep.subr.mxu0 0.0
    %4558 = vmatpush1.msra.mxu0 %v492
    %4559 = vmatprep.subr.mxu0 0.0
    %4560 = vmatpush1.msra.mxu0 %v495
    %4561 = vmatprep.subr.mxu0 0.0
    %4562 = vmatpush1.msra.mxu0 0.0
    %4563 = vmatprep.subr.mxu0 0.0
    %4564 = vmatpush1.msra.mxu0 0.0
    %4565 = vmatprep.subr.mxu0 0.0
    %4566 = vmatpush1.msra.mxu0 0.0
    %4567 = vmatprep.subr.mxu0 0.0
    %4568 = vmatpush1.msra.mxu0 0.0
    %4569 = vmatprep.subr.mxu0 0.0
    %4570 = vmatpush1.msra.mxu0 0.0
    %4571 = vmatprep.subr.mxu0 0.0
    %4572 = vmatpush1.msra.mxu0 0.0
    %4573 = vmatprep.subr.mxu0 0.0
    %4574 = vmatpush1.msra.mxu0 0.0
    %4575 = vmatprep.subr.mxu0 0.0
    %4576 = vmatpush1.msra.mxu0 0.0
    %4577 = vmatprep.subr.mxu0 0.0
    %4578 = vmatpush1.msra.mxu0 0.0
    %4579 = vmatprep.subr.mxu0 0.0
    %4580 = vmatpush1.msra.mxu0 0.0
    %4581 = vmatprep.subr.mxu0 0.0
    %4582 = vmatpush1.msra.mxu0 0.0
    %4583 = vmatprep.subr.mxu0 0.0
    %4584 = vmatpush1.msra.mxu0 0.0
    %4585 = vmatprep.subr.mxu0 0.0
    %4586 = vmatpush1.msra.mxu0 0.0
    %4587 = vmatprep.subr.mxu0 0.0
    %4588 = vmatpush1.msra.mxu0 0.0
    %4589 = vmatprep.subr.mxu0 0.0
    %4590 = vmatpush1.msra.mxu0 0.0
    %4591 = vmatprep.subr.mxu0 0.0
    %4592 = vmatpush1.msra.mxu0 0.0
    %4593 = vmatprep.mubr.f32.mxu0 0.0
    %4594 = vmatmul.mubr.f32.gmra.mrb[0].mxu0 %v4075
    %v4595 = vpop.f32.mrb[0].mxu0
    %v4596 = vadd.f32 0.0, %v4595
    %v4597 = vpop.f32.mrb[0].mxu0
    %4598 = vdwg.mxu0
    %v4599 = vadd.f32 %v4455, %v4525
    %v4600 = vadd.f32 %v4456, %v4527
    %v4601 = vxor.u32 %v4599, 2147483648
    %v4602 = vxor.u32 %v4600, 2147483648
    %v4603 = vmul.f32 %v4601, 1.442695
    %v4604 = vpow.pop %v4603
    %v4605 = vmul.f32 %v4602, 1.442695
    %v4606 = vpow.pop %v4605
    %v4607 = vadd.f32 %v4604, 1.0
    %v4608 = vadd.f32 %v4606, 1.0
    %v4609 = vrcp.pop %v4607
    %v4610 = vmul.f32 1.0, %v4609
    %v4611 = vrcp.pop %v4608
    %v4612 = vmul.f32 1.0, %v4611
    %v4613 = vadd.f32 %v4596, %v655
    %v4614 = vmul.f32 %v4610, %v4613
    %v4615 = vadd.f32 %v4457, %v4614
    %v4616 = vtanh.pop %v4615
    %v4617 = vsub.f32 1.0, %v4612
    %v4618 = vmul.f32 %v4617, %v4616
    %v4619 = vmul.f32 %v4612, %v4075
    %v4620 = vadd.f32 %v4618, %v4619
    %v4621 = vsel %vm4451, %v4620, %v4075
    %4622 = vmatprep.subr.mxu0 %v715
    %4623 = vmatpush1.msra.mxu0 %v714
    %4624 = vmatprep.subr.mxu0 %v718
    %4625 = vmatpush1.msra.mxu0 %v717
    %4626 = vmatprep.subr.mxu0 %v721
    %4627 = vmatpush1.msra.mxu0 %v720
    %4628 = vmatprep.subr.mxu0 %v724
    %4629 = vmatpush1.msra.mxu0 %v723
    %4630 = vmatprep.subr.mxu0 %v727
    %4631 = vmatpush1.msra.mxu0 %v726
    %4632 = vmatprep.subr.mxu0 %v730
    %4633 = vmatpush1.msra.mxu0 %v729
    %4634 = vmatprep.subr.mxu0 %v733
    %4635 = vmatpush1.msra.mxu0 %v732
    %4636 = vmatprep.subr.mxu0 %v736
    %4637 = vmatpush1.msra.mxu0 %v735
    %4638 = vmatprep.subr.mxu0 %v739
    %4639 = vmatpush1.msra.mxu0 %v738
    %4640 = vmatprep.subr.mxu0 %v742
    %4641 = vmatpush1.msra.mxu0 %v741
    %4642 = vmatprep.subr.mxu0 %v745
    %4643 = vmatpush1.msra.mxu0 %v744
    %4644 = vmatprep.subr.mxu0 %v748
    %4645 = vmatpush1.msra.mxu0 %v747
    %4646 = vmatprep.subr.mxu0 %v751
    %4647 = vmatpush1.msra.mxu0 %v750
    %4648 = vmatprep.subr.mxu0 %v754
    %4649 = vmatpush1.msra.mxu0 %v753
    %4650 = vmatprep.subr.mxu0 %v757
    %4651 = vmatpush1.msra.mxu0 %v756
    %4652 = vmatprep.subr.mxu0 %v760
    %4653 = vmatpush1.msra.mxu0 %v759
    %4654 = vmatprep.subr.mxu0 0.0
    %4655 = vmatpush1.msra.mxu0 0.0
    %4656 = vmatprep.subr.mxu0 0.0
    %4657 = vmatpush1.msra.mxu0 0.0
    %4658 = vmatprep.subr.mxu0 0.0
    %4659 = vmatpush1.msra.mxu0 0.0
    %4660 = vmatprep.subr.mxu0 0.0
    %4661 = vmatpush1.msra.mxu0 0.0
    %4662 = vmatprep.subr.mxu0 0.0
    %4663 = vmatpush1.msra.mxu0 0.0
    %4664 = vmatprep.subr.mxu0 0.0
    %4665 = vmatpush1.msra.mxu0 0.0
    %4666 = vmatprep.subr.mxu0 0.0
    %4667 = vmatpush1.msra.mxu0 0.0
    %4668 = vmatprep.subr.mxu0 0.0
    %4669 = vmatpush1.msra.mxu0 0.0
    %4670 = vmatprep.subr.mxu0 0.0
    %4671 = vmatpush1.msra.mxu0 0.0
    %4672 = vmatprep.subr.mxu0 0.0
    %4673 = vmatpush1.msra.mxu0 0.0
    %4674 = vmatprep.subr.mxu0 0.0
    %4675 = vmatpush1.msra.mxu0 0.0
    %4676 = vmatprep.subr.mxu0 0.0
    %4677 = vmatpush1.msra.mxu0 0.0
    %4678 = vmatprep.subr.mxu0 0.0
    %4679 = vmatpush1.msra.mxu0 0.0
    %4680 = vmatprep.subr.mxu0 0.0
    %4681 = vmatpush1.msra.mxu0 0.0
    %4682 = vmatprep.subr.mxu0 0.0
    %4683 = vmatpush1.msra.mxu0 0.0
    %4684 = vmatprep.subr.mxu0 0.0
    %4685 = vmatpush1.msra.mxu0 0.0
    %4686 = vmatprep.mubr.f32.mxu0 0.0
    %4687 = vmatmul.mubr.f32.gmra.mrb[0].mxu0 %v4450
    %v4688 = vpop.f32.mrb[0].mxu0
    %v4689 = vadd.f32 0.0, %v4688
    %v4690 = vpop.f32.mrb[0].mxu0
    %v4691 = vadd.f32 0.0, %v4690
    %4692 = vdwg.mxu0
    %4693 = vmatprep.subr.mxu0 0.0
    %4694 = vmatpush1.msra.mxu0 %v716
    %4695 = vmatprep.subr.mxu0 0.0
    %4696 = vmatpush1.msra.mxu0 %v719
    %4697 = vmatprep.subr.mxu0 0.0
    %4698 = vmatpush1.msra.mxu0 %v722
    %4699 = vmatprep.subr.mxu0 0.0
    %4700 = vmatpush1.msra.mxu0 %v725
    %4701 = vmatprep.subr.mxu0 0.0
    %4702 = vmatpush1.msra.mxu0 %v728
    %4703 = vmatprep.subr.mxu0 0.0
    %4704 = vmatpush1.msra.mxu0 %v731
    %4705 = vmatprep.subr.mxu0 0.0
    %4706 = vmatpush1.msra.mxu0 %v734
    %4707 = vmatprep.subr.mxu0 0.0
    %4708 = vmatpush1.msra.mxu0 %v737
    %4709 = vmatprep.subr.mxu0 0.0
    %4710 = vmatpush1.msra.mxu0 %v740
    %4711 = vmatprep.subr.mxu0 0.0
    %4712 = vmatpush1.msra.mxu0 %v743
    %4713 = vmatprep.subr.mxu0 0.0
    %4714 = vmatpush1.msra.mxu0 %v746
    %4715 = vmatprep.subr.mxu0 0.0
    %4716 = vmatpush1.msra.mxu0 %v749
    %4717 = vmatprep.subr.mxu0 0.0
    %4718 = vmatpush1.msra.mxu0 %v752
    %4719 = vmatprep.subr.mxu0 0.0
    %4720 = vmatpush1.msra.mxu0 %v755
    %4721 = vmatprep.subr.mxu0 0.0
    %4722 = vmatpush1.msra.mxu0 %v758
    %4723 = vmatprep.subr.mxu0 0.0
    %4724 = vmatpush1.msra.mxu0 %v761
    %4725 = vmatprep.subr.mxu0 0.0
    %4726 = vmatpush1.msra.mxu0 0.0
    %4727 = vmatprep.subr.mxu0 0.0
    %4728 = vmatpush1.msra.mxu0 0.0
    %4729 = vmatprep.subr.mxu0 0.0
    %4730 = vmatpush1.msra.mxu0 0.0
    %4731 = vmatprep.subr.mxu0 0.0
    %4732 = vmatpush1.msra.mxu0 0.0
    %4733 = vmatprep.subr.mxu0 0.0
    %4734 = vmatpush1.msra.mxu0 0.0
    %4735 = vmatprep.subr.mxu0 0.0
    %4736 = vmatpush1.msra.mxu0 0.0
    %4737 = vmatprep.subr.mxu0 0.0
    %4738 = vmatpush1.msra.mxu0 0.0
    %4739 = vmatprep.subr.mxu0 0.0
    %4740 = vmatpush1.msra.mxu0 0.0
    %4741 = vmatprep.subr.mxu0 0.0
    %4742 = vmatpush1.msra.mxu0 0.0
    %4743 = vmatprep.subr.mxu0 0.0
    %4744 = vmatpush1.msra.mxu0 0.0
    %4745 = vmatprep.subr.mxu0 0.0
    %4746 = vmatpush1.msra.mxu0 0.0
    %4747 = vmatprep.subr.mxu0 0.0
    %4748 = vmatpush1.msra.mxu0 0.0
    %4749 = vmatprep.subr.mxu0 0.0
    %4750 = vmatpush1.msra.mxu0 0.0
    %4751 = vmatprep.subr.mxu0 0.0
    %4752 = vmatpush1.msra.mxu0 0.0
    %4753 = vmatprep.subr.mxu0 0.0
    %4754 = vmatpush1.msra.mxu0 0.0
    %4755 = vmatprep.subr.mxu0 0.0
    %4756 = vmatpush1.msra.mxu0 0.0
    %4757 = vmatprep.mubr.f32.mxu0 0.0
    %4758 = vmatmul.mubr.f32.gmra.mrb[0].mxu0 %v4450
    %v4759 = vpop.f32.mrb[0].mxu0
    %v4760 = vadd.f32 0.0, %v4759
    %v4761 = vpop.f32.mrb[0].mxu0
    %4762 = vdwg.mxu0
    %4763 = vmatprep.subr.mxu0 %v667
    %4764 = vmatpush1.msra.mxu0 %v666
    %4765 = vmatprep.subr.mxu0 %v670
    %4766 = vmatpush1.msra.mxu0 %v669
    %4767 = vmatprep.subr.mxu0 %v673
    %4768 = vmatpush1.msra.mxu0 %v672
    %4769 = vmatprep.subr.mxu0 %v676
    %4770 = vmatpush1.msra.mxu0 %v675
    %4771 = vmatprep.subr.mxu0 %v679
    %4772 = vmatpush1.msra.mxu0 %v678
    %4773 = vmatprep.subr.mxu0 %v682
    %4774 = vmatpush1.msra.mxu0 %v681
    %4775 = vmatprep.subr.mxu0 %v685
    %4776 = vmatpush1.msra.mxu0 %v684
    %4777 = vmatprep.subr.mxu0 %v688
    %4778 = vmatpush1.msra.mxu0 %v687
    %4779 = vmatprep.subr.mxu0 %v691
    %4780 = vmatpush1.msra.mxu0 %v690
    %4781 = vmatprep.subr.mxu0 %v694
    %4782 = vmatpush1.msra.mxu0 %v693
    %4783 = vmatprep.subr.mxu0 %v697
    %4784 = vmatpush1.msra.mxu0 %v696
    %4785 = vmatprep.subr.mxu0 %v700
    %4786 = vmatpush1.msra.mxu0 %v699
    %4787 = vmatprep.subr.mxu0 %v703
    %4788 = vmatpush1.msra.mxu0 %v702
    %4789 = vmatprep.subr.mxu0 %v706
    %4790 = vmatpush1.msra.mxu0 %v705
    %4791 = vmatprep.subr.mxu0 %v709
    %4792 = vmatpush1.msra.mxu0 %v708
    %4793 = vmatprep.subr.mxu0 %v712
    %4794 = vmatpush1.msra.mxu0 %v711
    %4795 = vmatprep.subr.mxu0 0.0
    %4796 = vmatpush1.msra.mxu0 0.0
    %4797 = vmatprep.subr.mxu0 0.0
    %4798 = vmatpush1.msra.mxu0 0.0
    %4799 = vmatprep.subr.mxu0 0.0
    %4800 = vmatpush1.msra.mxu0 0.0
    %4801 = vmatprep.subr.mxu0 0.0
    %4802 = vmatpush1.msra.mxu0 0.0
    %4803 = vmatprep.subr.mxu0 0.0
    %4804 = vmatpush1.msra.mxu0 0.0
    %4805 = vmatprep.subr.mxu0 0.0
    %4806 = vmatpush1.msra.mxu0 0.0
    %4807 = vmatprep.subr.mxu0 0.0
    %4808 = vmatpush1.msra.mxu0 0.0
    %4809 = vmatprep.subr.mxu0 0.0
    %4810 = vmatpush1.msra.mxu0 0.0
    %4811 = vmatprep.subr.mxu0 0.0
    %4812 = vmatpush1.msra.mxu0 0.0
    %4813 = vmatprep.subr.mxu0 0.0
    %4814 = vmatpush1.msra.mxu0 0.0
    %4815 = vmatprep.subr.mxu0 0.0
    %4816 = vmatpush1.msra.mxu0 0.0
    %4817 = vmatprep.subr.mxu0 0.0
    %4818 = vmatpush1.msra.mxu0 0.0
    %4819 = vmatprep.subr.mxu0 0.0
    %4820 = vmatpush1.msra.mxu0 0.0
    %4821 = vmatprep.subr.mxu0 0.0
    %4822 = vmatpush1.msra.mxu0 0.0
    %4823 = vmatprep.subr.mxu0 0.0
    %4824 = vmatpush1.msra.mxu0 0.0
    %4825 = vmatprep.subr.mxu0 0.0
    %4826 = vmatpush1.msra.mxu0 0.0
    %4827 = vmatprep.mubr.f32.mxu0 0.0
    %4828 = vmatmul.mubr.f32.gmra.mrb[0].mxu0 %v4621
    %v4829 = vpop.f32.mrb[0].mxu0
    %v4830 = vadd.f32 %v4689, %v4829
    %v4831 = vpop.f32.mrb[0].mxu0
    %v4832 = vadd.f32 %v4691, %v4831
    %4833 = vdwg.mxu0
    %4834 = vmatprep.subr.mxu0 0.0
    %4835 = vmatpush1.msra.mxu0 %v668
    %4836 = vmatprep.subr.mxu0 0.0
    %4837 = vmatpush1.msra.mxu0 %v671
    %4838 = vmatprep.subr.mxu0 0.0
    %4839 = vmatpush1.msra.mxu0 %v674
    %4840 = vmatprep.subr.mxu0 0.0
    %4841 = vmatpush1.msra.mxu0 %v677
    %4842 = vmatprep.subr.mxu0 0.0
    %4843 = vmatpush1.msra.mxu0 %v680
    %4844 = vmatprep.subr.mxu0 0.0
    %4845 = vmatpush1.msra.mxu0 %v683
    %4846 = vmatprep.subr.mxu0 0.0
    %4847 = vmatpush1.msra.mxu0 %v686
    %4848 = vmatprep.subr.mxu0 0.0
    %4849 = vmatpush1.msra.mxu0 %v689
    %4850 = vmatprep.subr.mxu0 0.0
    %4851 = vmatpush1.msra.mxu0 %v692
    %4852 = vmatprep.subr.mxu0 0.0
    %4853 = vmatpush1.msra.mxu0 %v695
    %4854 = vmatprep.subr.mxu0 0.0
    %4855 = vmatpush1.msra.mxu0 %v698
    %4856 = vmatprep.subr.mxu0 0.0
    %4857 = vmatpush1.msra.mxu0 %v701
    %4858 = vmatprep.subr.mxu0 0.0
    %4859 = vmatpush1.msra.mxu0 %v704
    %4860 = vmatprep.subr.mxu0 0.0
    %4861 = vmatpush1.msra.mxu0 %v707
    %4862 = vmatprep.subr.mxu0 0.0
    %4863 = vmatpush1.msra.mxu0 %v710
    %4864 = vmatprep.subr.mxu0 0.0
    %4865 = vmatpush1.msra.mxu0 %v713
    %4866 = vmatprep.subr.mxu0 0.0
    %4867 = vmatpush1.msra.mxu0 0.0
    %4868 = vmatprep.subr.mxu0 0.0
    %4869 = vmatpush1.msra.mxu0 0.0
    %4870 = vmatprep.subr.mxu0 0.0
    %4871 = vmatpush1.msra.mxu0 0.0
    %4872 = vmatprep.subr.mxu0 0.0
    %4873 = vmatpush1.msra.mxu0 0.0
    %4874 = vmatprep.subr.mxu0 0.0
    %4875 = vmatpush1.msra.mxu0 0.0
    %4876 = vmatprep.subr.mxu0 0.0
    %4877 = vmatpush1.msra.mxu0 0.0
    %4878 = vmatprep.subr.mxu0 0.0
    %4879 = vmatpush1.msra.mxu0 0.0
    %4880 = vmatprep.subr.mxu0 0.0
    %4881 = vmatpush1.msra.mxu0 0.0
    %4882 = vmatprep.subr.mxu0 0.0
    %4883 = vmatpush1.msra.mxu0 0.0
    %4884 = vmatprep.subr.mxu0 0.0
    %4885 = vmatpush1.msra.mxu0 0.0
    %4886 = vmatprep.subr.mxu0 0.0
    %4887 = vmatpush1.msra.mxu0 0.0
    %4888 = vmatprep.subr.mxu0 0.0
    %4889 = vmatpush1.msra.mxu0 0.0
    %4890 = vmatprep.subr.mxu0 0.0
    %4891 = vmatpush1.msra.mxu0 0.0
    %4892 = vmatprep.subr.mxu0 0.0
    %4893 = vmatpush1.msra.mxu0 0.0
    %4894 = vmatprep.subr.mxu0 0.0
    %4895 = vmatpush1.msra.mxu0 0.0
    %4896 = vmatprep.subr.mxu0 0.0
    %4897 = vmatpush1.msra.mxu0 0.0
    %4898 = vmatprep.mubr.f32.mxu0 0.0
    %4899 = vmatmul.mubr.f32.gmra.mrb[0].mxu0 %v4621
    %v4900 = vpop.f32.mrb[0].mxu0
    %v4901 = vadd.f32 %v4760, %v4900
    %v4902 = vpop.f32.mrb[0].mxu0
    %4903 = vdwg.mxu0
    %v4904 = vadd.f32 %v4830, %v1048
    %v4905 = vadd.f32 %v4832, %v1052
    %v4906 = vadd.f32 %v4901, %v1056
    %v4907 = vxor.u32 %v4904, 2147483648
    %v4908 = vxor.u32 %v4905, 2147483648
    %v4909 = vmul.f32 %v4907, 1.442695
    %v4910 = vpow.pop %v4909
    %v4911 = vmul.f32 %v4908, 1.442695
    %v4912 = vpow.pop %v4911
    %v4913 = vadd.f32 %v4910, 1.0
    %v4914 = vadd.f32 %v4912, 1.0
    %v4915 = vrcp.pop %v4913
    %v4916 = vmul.f32 1.0, %v4915
    %v4917 = vrcp.pop %v4914
    %v4918 = vmul.f32 1.0, %v4917
    %4919 = vmatprep.subr.mxu0 0.0
    %4920 = vmatpush1.msra.mxu0 %v1063
    %4921 = vmatprep.subr.mxu0 0.0
    %4922 = vmatpush1.msra.mxu0 %v1064
    %4923 = vmatprep.subr.mxu0 0.0
    %4924 = vmatpush1.msra.mxu0 %v1065
    %4925 = vmatprep.subr.mxu0 0.0
    %4926 = vmatpush1.msra.mxu0 %v1066
    %4927 = vmatprep.subr.mxu0 0.0
    %4928 = vmatpush1.msra.mxu0 %v1067
    %4929 = vmatprep.subr.mxu0 0.0
    %4930 = vmatpush1.msra.mxu0 %v1068
    %4931 = vmatprep.subr.mxu0 0.0
    %4932 = vmatpush1.msra.mxu0 %v1069
    %4933 = vmatprep.subr.mxu0 0.0
    %4934 = vmatpush1.msra.mxu0 %v1070
    %4935 = vmatprep.subr.mxu0 0.0
    %4936 = vmatpush1.msra.mxu0 %v1071
    %4937 = vmatprep.subr.mxu0 0.0
    %4938 = vmatpush1.msra.mxu0 %v1072
    %4939 = vmatprep.subr.mxu0 0.0
    %4940 = vmatpush1.msra.mxu0 %v1073
    %4941 = vmatprep.subr.mxu0 0.0
    %4942 = vmatpush1.msra.mxu0 %v1074
    %4943 = vmatprep.subr.mxu0 0.0
    %4944 = vmatpush1.msra.mxu0 %v1075
    %4945 = vmatprep.subr.mxu0 0.0
    %4946 = vmatpush1.msra.mxu0 %v1076
    %4947 = vmatprep.subr.mxu0 0.0
    %4948 = vmatpush1.msra.mxu0 %v1077
    %4949 = vmatprep.subr.mxu0 0.0
    %4950 = vmatpush1.msra.mxu0 %v1078
    %4951 = vmatprep.subr.mxu0 0.0
    %4952 = vmatpush1.msra.mxu0 0.0
    %4953 = vmatprep.subr.mxu0 0.0
    %4954 = vmatpush1.msra.mxu0 0.0
    %4955 = vmatprep.subr.mxu0 0.0
    %4956 = vmatpush1.msra.mxu0 0.0
    %4957 = vmatprep.subr.mxu0 0.0
    %4958 = vmatpush1.msra.mxu0 0.0
    %4959 = vmatprep.subr.mxu0 0.0
    %4960 = vmatpush1.msra.mxu0 0.0
    %4961 = vmatprep.subr.mxu0 0.0
    %4962 = vmatpush1.msra.mxu0 0.0
    %4963 = vmatprep.subr.mxu0 0.0
    %4964 = vmatpush1.msra.mxu0 0.0
    %4965 = vmatprep.subr.mxu0 0.0
    %4966 = vmatpush1.msra.mxu0 0.0
    %4967 = vmatprep.subr.mxu0 0.0
    %4968 = vmatpush1.msra.mxu0 0.0
    %4969 = vmatprep.subr.mxu0 0.0
    %4970 = vmatpush1.msra.mxu0 0.0
    %4971 = vmatprep.subr.mxu0 0.0
    %4972 = vmatpush1.msra.mxu0 0.0
    %4973 = vmatprep.subr.mxu0 0.0
    %4974 = vmatpush1.msra.mxu0 0.0
    %4975 = vmatprep.subr.mxu0 0.0
    %4976 = vmatpush1.msra.mxu0 0.0
    %4977 = vmatprep.subr.mxu0 0.0
    %4978 = vmatpush1.msra.mxu0 0.0
    %4979 = vmatprep.subr.mxu0 0.0
    %4980 = vmatpush1.msra.mxu0 0.0
    %4981 = vmatprep.subr.mxu0 0.0
    %4982 = vmatpush1.msra.mxu0 0.0
    %4983 = vmatprep.mubr.f32.mxu0 0.0
    %4984 = vmatmul.mubr.f32.gmra.mrb[0].mxu0 %v4450
    %v4985 = vpop.f32.mrb[0].mxu0
    %v4986 = vadd.f32 %v1095, %v4985
    %v4987 = vpop.f32.mrb[0].mxu0
    %4988 = vdwg.mxu0
    %v4989 = vmul.f32 %v4916, %v4986
    %v4990 = vadd.f32 %v4906, %v4989
    %v4991 = vtanh.pop %v4990
    %v4992 = vsub.f32 1.0, %v4918
    %v4993 = vmul.f32 %v4992, %v4991
    %v4994 = vmul.f32 %v4918, %v4450
    %v4995 = vadd.f32 %v4993, %v4994
    %v4996 = vsel %vm4451, %v4995, %v4450
    %v4997 = vld [vmem:[#allocation11] sm:$0xff]
    %v4998 = vld [vmem:[#allocation11 + $0x8] sm:$0xff]
    %v4999 = vld [vmem:[#allocation11 + $0x10] sm:$0xff]
    %v5000 = vld [vmem:[#allocation11 + $0x18] sm:$0xff]
    %v5001 = vld [vmem:[#allocation11 + $0x20] sm:$0xff]
    %v5002 = vld [vmem:[#allocation11 + $0x28] sm:$0xff]
    %v5003 = vld [vmem:[#allocation11 + $0x30] sm:$0xff]
    %v5004 = vld [vmem:[#allocation11 + $0x38] sm:$0xff]
    %v5005 = vld [vmem:[#allocation11 + $0x40] sm:$0xff]
    %v5006 = vld [vmem:[#allocation11 + $0x48] sm:$0xff]
    %v5007 = vld [vmem:[#allocation11 + $0x50] sm:$0xff]
    %v5008 = vld [vmem:[#allocation11 + $0x58] sm:$0xff]
    %v5009 = vld [vmem:[#allocation11 + $0x60] sm:$0xff]
    %v5010 = vld [vmem:[#allocation11 + $0x68] sm:$0xff]
    %v5011 = vld [vmem:[#allocation11 + $0x70] sm:$0xff]
    %v5012 = vld [vmem:[#allocation11 + $0x78] sm:$0xff]
    %v5013 = vld [vmem:[#allocation12] sm:$0xff]
    %v5014 = vld [vmem:[#allocation12 + $0x8] sm:$0xff]
    %v5015 = vld [vmem:[#allocation12 + $0x10] sm:$0xff]
    %v5016 = vld [vmem:[#allocation12 + $0x18] sm:$0xff]
    %v5017 = vld [vmem:[#allocation12 + $0x20] sm:$0xff]
    %v5018 = vld [vmem:[#allocation12 + $0x28] sm:$0xff]
    %v5019 = vld [vmem:[#allocation12 + $0x30] sm:$0xff]
    %v5020 = vld [vmem:[#allocation12 + $0x38] sm:$0xff]
    %v5021 = vld [vmem:[#allocation12 + $0x40] sm:$0xff]
    %v5022 = vld [vmem:[#allocation12 + $0x48] sm:$0xff]
    %v5023 = vld [vmem:[#allocation12 + $0x50] sm:$0xff]
    %v5024 = vld [vmem:[#allocation12 + $0x58] sm:$0xff]
    %v5025 = vld [vmem:[#allocation12 + $0x60] sm:$0xff]
    %v5026 = vld [vmem:[#allocation12 + $0x68] sm:$0xff]
    %v5027 = vld [vmem:[#allocation12 + $0x70] sm:$0xff]
    %v5028 = vld [vmem:[#allocation12 + $0x78] sm:$0xff]
    %5029 = vmatprep.subr.mxu0 0.0
    %5030 = vmatpush1.msra.mxu0 %v5013
    %5031 = vmatprep.subr.mxu0 0.0
    %5032 = vmatpush1.msra.mxu0 %v5014
    %5033 = vmatprep.subr.mxu0 0.0
    %5034 = vmatpush1.msra.mxu0 %v5015
    %5035 = vmatprep.subr.mxu0 0.0
    %5036 = vmatpush1.msra.mxu0 %v5016
    %5037 = vmatprep.subr.mxu0 0.0
    %5038 = vmatpush1.msra.mxu0 %v5017
    %5039 = vmatprep.subr.mxu0 0.0
    %5040 = vmatpush1.msra.mxu0 %v5018
    %5041 = vmatprep.subr.mxu0 0.0
    %5042 = vmatpush1.msra.mxu0 %v5019
    %5043 = vmatprep.subr.mxu0 0.0
    %5044 = vmatpush1.msra.mxu0 %v5020
    %5045 = vmatprep.subr.mxu0 0.0
    %5046 = vmatpush1.msra.mxu0 %v5021
    %5047 = vmatprep.subr.mxu0 0.0
    %5048 = vmatpush1.msra.mxu0 %v5022
    %5049 = vmatprep.subr.mxu0 0.0
    %5050 = vmatpush1.msra.mxu0 %v5023
    %5051 = vmatprep.subr.mxu0 0.0
    %5052 = vmatpush1.msra.mxu0 %v5024
    %5053 = vmatprep.subr.mxu0 0.0
    %5054 = vmatpush1.msra.mxu0 %v5025
    %5055 = vmatprep.subr.mxu0 0.0
    %5056 = vmatpush1.msra.mxu0 %v5026
    %5057 = vmatprep.subr.mxu0 0.0
    %5058 = vmatpush1.msra.mxu0 %v5027
    %5059 = vmatprep.subr.mxu0 0.0
    %5060 = vmatpush1.msra.mxu0 %v5028
    %5061 = vmatprep.subr.mxu0 0.0
    %5062 = vmatpush1.msra.mxu0 0.0
    %5063 = vmatprep.subr.mxu0 0.0
    %5064 = vmatpush1.msra.mxu0 0.0
    %5065 = vmatprep.subr.mxu0 0.0
    %5066 = vmatpush1.msra.mxu0 0.0
    %5067 = vmatprep.subr.mxu0 0.0
    %5068 = vmatpush1.msra.mxu0 0.0
    %5069 = vmatprep.subr.mxu0 0.0
    %5070 = vmatpush1.msra.mxu0 0.0
    %5071 = vmatprep.subr.mxu0 0.0
    %5072 = vmatpush1.msra.mxu0 0.0
    %5073 = vmatprep.subr.mxu0 0.0
    %5074 = vmatpush1.msra.mxu0 0.0
    %5075 = vmatprep.subr.mxu0 0.0
    %5076 = vmatpush1.msra.mxu0 0.0
    %5077 = vmatprep.subr.mxu0 0.0
    %5078 = vmatpush1.msra.mxu0 0.0
    %5079 = vmatprep.subr.mxu0 0.0
    %5080 = vmatpush1.msra.mxu0 0.0
    %5081 = vmatprep.subr.mxu0 0.0
    %5082 = vmatpush1.msra.mxu0 0.0
    %5083 = vmatprep.subr.mxu0 0.0
    %5084 = vmatpush1.msra.mxu0 0.0
    %5085 = vmatprep.subr.mxu0 0.0
    %5086 = vmatpush1.msra.mxu0 0.0
    %5087 = vmatprep.subr.mxu0 0.0
    %5088 = vmatpush1.msra.mxu0 0.0
    %5089 = vmatprep.subr.mxu0 0.0
    %5090 = vmatpush1.msra.mxu0 0.0
    %5091 = vmatprep.subr.mxu0 0.0
    %5092 = vmatpush1.msra.mxu0 0.0
    %5093 = vmatprep.mubr.f32.mxu0 0.0
    %5094 = vmatmul.mubr.f32.gmra.mrb[0].mxu0 %v4996
    %v5095 = vpop.f32.mrb[0].mxu0
    %v5096 = vadd.f32 0.0, %v5095
    %v5097 = vpop.f32.mrb[0].mxu0
    %5098 = vdwg.mxu0
    %5099 = vmatprep.subr.mxu0 0.0
    %5100 = vmatpush1.msra.mxu0 %v4997
    %5101 = vmatprep.subr.mxu0 0.0
    %5102 = vmatpush1.msra.mxu0 %v4998
    %5103 = vmatprep.subr.mxu0 0.0
    %5104 = vmatpush1.msra.mxu0 %v4999
    %5105 = vmatprep.subr.mxu0 0.0
    %5106 = vmatpush1.msra.mxu0 %v5000
    %5107 = vmatprep.subr.mxu0 0.0
    %5108 = vmatpush1.msra.mxu0 %v5001
    %5109 = vmatprep.subr.mxu0 0.0
    %5110 = vmatpush1.msra.mxu0 %v5002
    %5111 = vmatprep.subr.mxu0 0.0
    %5112 = vmatpush1.msra.mxu0 %v5003
    %5113 = vmatprep.subr.mxu0 0.0
    %5114 = vmatpush1.msra.mxu0 %v5004
    %5115 = vmatprep.subr.mxu0 0.0
    %5116 = vmatpush1.msra.mxu0 %v5005
    %5117 = vmatprep.subr.mxu0 0.0
    %5118 = vmatpush1.msra.mxu0 %v5006
    %5119 = vmatprep.subr.mxu0 0.0
    %5120 = vmatpush1.msra.mxu0 %v5007
    %5121 = vmatprep.subr.mxu0 0.0
    %5122 = vmatpush1.msra.mxu0 %v5008
    %5123 = vmatprep.subr.mxu0 0.0
    %5124 = vmatpush1.msra.mxu0 %v5009
    %5125 = vmatprep.subr.mxu0 0.0
    %5126 = vmatpush1.msra.mxu0 %v5010
    %5127 = vmatprep.subr.mxu0 0.0
    %5128 = vmatpush1.msra.mxu0 %v5011
    %5129 = vmatprep.subr.mxu0 0.0
    %5130 = vmatpush1.msra.mxu0 %v5012
    %5131 = vmatprep.subr.mxu0 0.0
    %5132 = vmatpush1.msra.mxu0 0.0
    %5133 = vmatprep.subr.mxu0 0.0
    %5134 = vmatpush1.msra.mxu0 0.0
    %5135 = vmatprep.subr.mxu0 0.0
    %5136 = vmatpush1.msra.mxu0 0.0
    %5137 = vmatprep.subr.mxu0 0.0
    %5138 = vmatpush1.msra.mxu0 0.0
    %5139 = vmatprep.subr.mxu0 0.0
    %5140 = vmatpush1.msra.mxu0 0.0
    %5141 = vmatprep.subr.mxu0 0.0
    %5142 = vmatpush1.msra.mxu0 0.0
    %5143 = vmatprep.subr.mxu0 0.0
    %5144 = vmatpush1.msra.mxu0 0.0
    %5145 = vmatprep.subr.mxu0 0.0
    %5146 = vmatpush1.msra.mxu0 0.0
    %5147 = vmatprep.subr.mxu0 0.0
    %5148 = vmatpush1.msra.mxu0 0.0
    %5149 = vmatprep.subr.mxu0 0.0
    %5150 = vmatpush1.msra.mxu0 0.0
    %5151 = vmatprep.subr.mxu0 0.0
    %5152 = vmatpush1.msra.mxu0 0.0
    %5153 = vmatprep.subr.mxu0 0.0
    %5154 = vmatpush1.msra.mxu0 0.0
    %5155 = vmatprep.subr.mxu0 0.0
    %5156 = vmatpush1.msra.mxu0 0.0
    %5157 = vmatprep.subr.mxu0 0.0
    %5158 = vmatpush1.msra.mxu0 0.0
    %5159 = vmatprep.subr.mxu0 0.0
    %5160 = vmatpush1.msra.mxu0 0.0
    %5161 = vmatprep.subr.mxu0 0.0
    %5162 = vmatpush1.msra.mxu0 0.0
    %5163 = vmatprep.mubr.f32.mxu0 0.0
    %5164 = vmatmul.mubr.f32.gmra.mrb[0].mxu0 %v4621
    %v5165 = vpop.f32.mrb[0].mxu0
    %v5166 = vadd.f32 %v5096, %v5165
    %v5167 = vpop.f32.mrb[0].mxu0
    %5168 = vdwg.mxu0
    %v5169 = vld [vmem:[%s13] sm:$0x1]
    %v5171 = vlaneseq
    %v5172 = vshrl.u32 %v5171, 7
    %v5173 = vsub.s32 0, %v5172
    %v5174 = vrot.slane %v5169, %v5173
    %v5176 = vadd.f32 %v5166, %v5174
    %5177 = vst [vmem:[#allocation14] sm:$0xff] %v5176
    // Predicated region
    $region82: #{tpu_custom_call.1} parent=1 // pred_check
      _
    $region83: #{tpu_custom_call.1} parent=1 // pred_check_branch
      %5179 = sbr.rel (0) target = $region85
    $region84: #{tpu_custom_call.1} parent=1 // pred_region
      %s5181 = ssub.s32 128, 128
      %5182 = vsyncadd [#allocation5], %s5181
      %s5184 = sshll.u32 [#allocation14], 4
      %s5185 = int_to_ptr.vmem [resolvable:$true] %s5184
      %5187 = dma.vmem_to_hbm [thread:$0]  %s5185, 128, %s14, [#allocation5]
    $region85: #{tpu_custom_call.1} parent=1 // pred_fallthru
      _
    // Predicated region
    $region86: #{tpu_custom_call.1} parent=1 // pred_check
      _
    $region87: #{tpu_custom_call.1} parent=1 // pred_check_branch
      %5189 = sbr.rel (0) target = $region89
    $region88: #{tpu_custom_call.1} parent=1 // pred_region
      %5190 = dma.done [#allocation5], 128
    $region89: #{tpu_custom_call.1} parent=1 // pred_fallthru
      _
    %5191 = vsyncpa [#allocation4], 1
    %5192 = vsyncpa [#allocation7], 1
    %5193 = vsyncpa [#allocation10], 1
    %5194 = vsyncpa [#allocation13], 1
    %5195 = vsyncpa [#allocation5], 1

</llo_original>
